<compile_context>
chip_gen: v5e
topology: v5e:2x2
jax: 0.10.0
libtpu: 0.0.40
codegen_flags: <defaults>
</compile_context>

<pallas_src>
import functools
import math

import jax
import jax.numpy as jnp
import numpy as np
from jax.experimental import pallas as pl
from jax.experimental.pallas import tpu as pltpu


# --------------------------------------------------------------------------------------
# Shared in-kernel math helpers
# --------------------------------------------------------------------------------------

def _leaky_relu(x, slope):
    return jnp.where(x >= 0, x, slope * x)


def _head_lane_sum(scores, heads, C):
    """(R, H*C) -> (R, H): per-head lane reduction (avoids a >98%-padded MXU matmul)."""
    return jnp.concatenate(
        [jnp.sum(scores[:, h * C:(h + 1) * C], axis=1, keepdims=True) for h in range(heads)],
        axis=1)


def _head_lane_broadcast(v, heads, C):
    """(R, H) -> (R, H*C): repeat each head's scalar across its C feature lanes."""
    R = v.shape[0]
    return jnp.concatenate(
        [jnp.broadcast_to(v[:, h:h + 1], (R, C)) for h in range(heads)], axis=1)


def _unigat_layer_math(X, B, Mk, W, att, *, heads, C, negative_slope, mxu_dtype,
                       apply_relu, apply_log_softmax):
    """One UniGATConv layer on VMEM-resident values.

    X:(N,Fin) f32, B:(E,N) mxu_dtype, Mk:(N,E) mxu_dtype, W:(Fin,H*C) f32, att:(1,H*C) f32.
    """
    X0 = jnp.dot(X.astype(mxu_dtype), W.astype(mxu_dtype),
                 preferred_element_type=jnp.float32)                           # (N, H*C)
    Xe = jnp.dot(B, X0.astype(mxu_dtype), preferred_element_type=jnp.float32)  # (E, H*C)

    # attention logit per (edge, head): elementwise mult + per-head lane reduce
    L = _leaky_relu(_head_lane_sum(Xe * att, heads, C), negative_slope)        # (E, H)

    # per-head-global max shift: same softmax ratio as the reference per-node shift
    expL = jnp.exp(L - jnp.max(L, axis=0, keepdims=True))                      # (E, H)
    expL_b = _head_lane_broadcast(expL, heads, C)                              # (E, H*C)

    # softmax numerator folded into ONE full-width aggregation matmul for all heads
    Num = jnp.dot(Mk, (expL_b * Xe).astype(mxu_dtype),
                  preferred_element_type=jnp.float32)                          # (N, H*C)
    Den = jnp.dot(Mk.astype(jnp.float32), expL,
                  preferred_element_type=jnp.float32)                          # (N, H)
    Xv = _head_lane_broadcast(1.0 / (Den + 1e-16), heads, C) * Num             # (N, H*C)

    out = Xv + X0                                                              # residual
    if apply_relu:
        out = jnp.maximum(out, 0.0)
    if apply_log_softmax:
        z = out - jnp.max(out, axis=1, keepdims=True)
        out = z - jnp.log(jnp.sum(jnp.exp(z), axis=1, keepdims=True))
    return out


# --------------------------------------------------------------------------------------
# Fused full-stack kernel (default path): everything VMEM-resident, ONE pallas_call total
# --------------------------------------------------------------------------------------

def _stack_kernel(*refs, layer_meta, negative_slope, mxu_dtype):
    # refs = (x, B_mean, Mask, W_0, att_0, ..., W_{L-1}, att_{L-1}, out)
    x_ref, b_ref, mk_ref = refs[0], refs[1], refs[2]
    out_ref = refs[-1]
    wa = refs[3:-1]

    X = x_ref[...]                       # (N, Fin)  f32 activations
    B = b_ref[...]                       # (E, N)    mxu dtype, resident across all layers
    Mk = mk_ref[...]                     # (N, E)    mxu dtype, resident across all layers

    n = len(layer_meta)
    for i, (heads, C) in enumerate(layer_meta):
        last = i == n - 1
        X = _unigat_layer_math(
            X, B, Mk, wa[2 * i][...], wa[2 * i + 1][...],
            heads=heads, C=C, negative_slope=negative_slope, mxu_dtype=mxu_dtype,
            apply_relu=not last, apply_log_softmax=last)
    out_ref[...] = X.astype(out_ref.dtype)


def unignn_forward_fused(params, X, B_mean, Mask, *, mxu_dtype=jnp.bfloat16,
                         negative_slope=0.2):
    N, _ = X.shape
    nclass = params[-1]["heads"] * params[-1]["out_channels"]
    layer_meta = tuple((p["heads"], p["out_channels"]) for p in params)

    # Incidence matrices cast ONCE; counts are exact in bf16 (1/deg loses <0.5%).
    operands = [X, B_mean.astype(mxu_dtype), Mask.astype(mxu_dtype)]
    for p in params:
        operands.append(p["W"])
        operands.append(p["att_e"].reshape(1, -1))

    kernel = functools.partial(_stack_kernel, layer_meta=layer_meta,
                               negative_slope=negative_slope, mxu_dtype=mxu_dtype)
    return pl.pallas_call(
        kernel,
        out_shape=jax.ShapeDtypeStruct((N, nclass), jnp.float32),
        grid=(1,),
        in_specs=[pl.BlockSpec(op.shape, lambda i: (0, 0)) for op in operands],
        out_specs=pl.BlockSpec((N, nclass), lambda i: (0, 0)),
        compiler_params=pltpu.CompilerParams(
            dimension_semantics=("arbitrary",),
            vmem_limit_bytes=48 * 1024 * 1024),
    )(*operands)


def _fused_vmem_bytes(params, N, E, Fin, mxu_dtype):
    """Rough working-set estimate for the fused path (with 2x headroom for layout padding)."""
    it = jnp.dtype(mxu_dtype).itemsize
    total = N * Fin * 4 + 2 * N * E * it          # X + both incidence matrices
    act_peak = 0
    for p in params:
        fin, hc = p["W"].shape
        total += (fin * hc + hc) * 4
        act_peak = max(act_peak, 4 * (3 * N * hc + 3 * E * hc))
    return 2 * (total + act_peak)


# --------------------------------------------------------------------------------------
# Streamed fallback path: three tiled, double-buffered pallas_calls per layer
# --------------------------------------------------------------------------------------

def _project_kernel(x_ref, w_ref, out_ref, *, mxu_dtype):
    out_ref[...] = jnp.dot(x_ref[...].astype(mxu_dtype), w_ref[...].astype(mxu_dtype),
                           preferred_element_type=jnp.float32)


def _edge_kernel(b_ref, x0_ref, att_ref, xe_ref, l_ref, *, heads, out_channels,
                 negative_slope, mxu_dtype):
    Xe = jnp.dot(b_ref[...], x0_ref[...].astype(mxu_dtype),
                 preferred_element_type=jnp.float32)                      # (tE, H*C)
    l_ref[...] = _leaky_relu(_head_lane_sum(Xe * att_ref[...], heads, out_channels),
                             negative_slope)
    xe_ref[...] = Xe


def _node_kernel(mk_ref, x0_ref, xe_ref, l_ref, out_ref, *, heads, out_channels,
                 mxu_dtype, apply_relu, apply_log_softmax):
    H, C = heads, out_channels
    L = l_ref[...]                                                        # (E, H)
    Xe = xe_ref[...]                                                      # (E, H*C)
    expL = jnp.exp(L - jnp.max(L, axis=0, keepdims=True))
    expL_b = _head_lane_broadcast(expL, H, C)
    Num = jnp.dot(mk_ref[...], (expL_b * Xe).astype(mxu_dtype),
                  preferred_element_type=jnp.float32)                     # (tN, H*C)
    Den = jnp.dot(mk_ref[...].astype(jnp.float32), expL,
                  preferred_element_type=jnp.float32)                     # (tN, H)
    Xv = _head_lane_broadcast(1.0 / (Den + 1e-16), H, C) * Num
    out = Xv + x0_ref[...]
    if apply_relu:
        out = jnp.maximum(out, 0.0)
    if apply_log_softmax:
        z = out - jnp.max(out, axis=1, keepdims=True)
        out = z - jnp.log(jnp.sum(jnp.exp(z), axis=1, keepdims=True))
    out_ref[...] = out.astype(out_ref.dtype)


def _pick_tile(dim, preferred):
    if preferred is None or preferred >= dim or dim % preferred != 0:
        return dim
    return preferred


def _cparams():
    return pltpu.CompilerParams(dimension_semantics=("parallel",),
                                vmem_limit_bytes=48 * 1024 * 1024)


def unigat_layer(X, W, att_flat, B_mx, Mask_mx, *, heads, out_channels,
                 negative_slope=0.2, apply_relu=False, apply_log_softmax=False,
                 mxu_dtype=jnp.bfloat16, node_tile=128, edge_tile=128):
    N, Fin = X.shape
    E = B_mx.shape[0]
    HC = heads * out_channels
    tN = _pick_tile(N, node_tile)
    tE = _pick_tile(E, edge_tile)
    cp = _cparams()

    X0 = pl.pallas_call(
        functools.partial(_project_kernel, mxu_dtype=mxu_dtype),
        out_shape=jax.ShapeDtypeStruct((N, HC), jnp.float32),
        grid=(N // tN,),
        in_specs=[pl.BlockSpec((tN, Fin), lambda i: (i, 0)),
                  pl.BlockSpec((Fin, HC), lambda i: (0, 0))],
        out_specs=pl.BlockSpec((tN, HC), lambda i: (i, 0)),
        compiler_params=cp,
    )(X, W)

    Xe, L = pl.pallas_call(
        functools.partial(_edge_kernel, heads=heads, out_channels=out_channels,
                          negative_slope=negative_slope, mxu_dtype=mxu_dtype),
        out_shape=(jax.ShapeDtypeStruct((E, HC), jnp.float32),
                   jax.ShapeDtypeStruct((E, heads), jnp.float32)),
        grid=(E // tE,),
        in_specs=[pl.BlockSpec((tE, N), lambda e: (e, 0)),
                  pl.BlockSpec((N, HC), lambda e: (0, 0)),
                  pl.BlockSpec((1, HC), lambda e: (0, 0))],
        out_specs=(pl.BlockSpec((tE, HC), lambda e: (e, 0)),
                   pl.BlockSpec((tE, heads), lambda e: (e, 0))),
        compiler_params=cp,
    )(B_mx, X0, att_flat)

    out = pl.pallas_call(
        functools.partial(_node_kernel, heads=heads, out_channels=out_channels,
                          mxu_dtype=mxu_dtype, apply_relu=apply_relu,
                          apply_log_softmax=apply_log_softmax),
        out_shape=jax.ShapeDtypeStruct((N, HC), jnp.float32),
        grid=(N // tN,),
        in_specs=[pl.BlockSpec((tN, E), lambda i: (i, 0)),       # Mask rows (streamed)
                  pl.BlockSpec((tN, HC), lambda i: (i, 0)),      # X0 rows
                  pl.BlockSpec((E, HC), lambda i: (0, 0)),       # Xe (resident)
                  pl.BlockSpec((E, heads), lambda i: (0, 0))],   # logits (resident)
        out_specs=pl.BlockSpec((tN, HC), lambda i: (i, 0)),
        compiler_params=cp,
    )(Mask_mx, X0, Xe, L)
    return out


# --------------------------------------------------------------------------------------
# Dispatcher + model glue (parameters, incidence matrices)
# --------------------------------------------------------------------------------------

def unignn_forward_pallas(params, X, B_mean, Mask, *, mxu_dtype=jnp.bfloat16,
                          node_tile=128, edge_tile=128, force_tiled=False):
    N, Fin = X.shape
    E = B_mean.shape[0]
    if (not force_tiled
            and _fused_vmem_bytes(params, N, E, Fin, mxu_dtype) <= 24 * 1024 * 1024):
        # Fast path: whole stack fused into one kernel, incidence matrices VMEM-resident.
        return unignn_forward_fused(params, X, B_mean, Mask, mxu_dtype=mxu_dtype)

    # Streamed fallback: three tiled pallas_calls per layer.
    B_mx = B_mean.astype(mxu_dtype)
    Mask_mx = Mask.astype(mxu_dtype)
    n = len(params)
    for i, p in enumerate(params):
        last = i == n - 1
        X = unigat_layer(X, p["W"], p["att_e"].reshape(1, -1), B_mx, Mask_mx,
                         heads=p["heads"], out_channels=p["out_channels"],
                         apply_relu=not last, apply_log_softmax=last,
                         mxu_dtype=mxu_dtype, node_tile=node_tile, edge_tile=edge_tile)
    return X


def incidence_mats(vertex, edges, num_nodes, num_edges):
    counts = jnp.zeros((num_edges, num_nodes), jnp.float32).at[edges, vertex].add(1.0)
    deg = jnp.sum(counts, axis=1, keepdims=True)
    B_mean = counts / jnp.maximum(deg, 1.0)      # scatter-mean over edges
    Mask = counts.T                              # (N, E) incidence counts
    return B_mean, Mask


def init_unignn(key, nfeat, nhid, nclass, nlayer, nhead):
    layer_dims = [(nfeat, nhid, nhead)]
    for _ in range(nlayer - 2):
        layer_dims.append((nhid * nhead, nhid, nhead))
    layer_dims.append((nhid * nhead, nclass, 1))   # conv_out (heads=1)
    params = []
    for (fin, c, h) in layer_dims:
        key, kw, ka = jax.random.split(key, 3)
        lim_w = 1.0 / math.sqrt(fin)
        W = jax.random.uniform(kw, (fin, h * c), jnp.float32, -lim_w, lim_w)
        stdv = math.sqrt(6.0 / (h + c))            # glorot() on att_e
        att_e = jax.random.uniform(ka, (h, c), jnp.float32, -stdv, stdv)
        # TODO(synk): att_v is initialized in UniGATConv.__init__ but never used in forward; omitted.
        params.append(dict(W=W, att_e=att_e, heads=h, out_channels=c))
    return params


# --------------------------------------------------------------------------------------
# Pure-JAX reference (original per-incidence semantics of the PyTorch module)
# --------------------------------------------------------------------------------------

def _unigat_ref(X, W, att_e, vertex, edges, num_edges, heads, out_channels, slope=0.2):
    N = X.shape[0]
    H, C = heads, out_channels
    X0 = X @ W
    Xh = X0.reshape(N, H, C)
    Xve = Xh[vertex]
    ssum = jax.ops.segment_sum(Xve, edges, num_segments=num_edges)
    cnt = jax.ops.segment_sum(jnp.ones(vertex.shape, jnp.float32), edges, num_segments=num_edges)
    Xe = ssum / jnp.maximum(cnt, 1.0)[:, None, None]
    alpha_e = jnp.sum(Xe * att_e[None], axis=-1)
    a = alpha_e[edges]
    a = jnp.where(a >= 0, a, slope * a)
    m = jax.ops.segment_max(a, vertex, num_segments=N)
    e = jnp.exp(a - m[vertex])
    denom = jax.ops.segment_sum(e, vertex, num_segments=N)
    alpha = e / (denom[vertex] + 1e-16)
    Xev = Xe[edges] * alpha[..., None]
    Xv = jax.ops.segment_sum(Xev, vertex, num_segments=N)
    return Xv.reshape(N, H * C) + X0


def unignn_forward_ref(params, X, vertex, edges, num_edges):
    n = len(params)
    for i, p in enumerate(params):
        X = _unigat_ref(X, p["W"], p["att_e"], vertex, edges, num_edges,
                        p["heads"], p["out_channels"])
        if i < n - 1:
            X = jax.nn.relu(X)
    return jax.nn.log_softmax(X, axis=1)


# --------------------------------------------------------------------------------------
# Demo / self-test
# --------------------------------------------------------------------------------------

if __name__ == "__main__":
    key = jax.random.PRNGKey(0)
    N, num_edges, verts_per_edge = 256, 64, 8
    nfeat, nhid, nclass, nlayer, nhead = 64, 16, 8, 3, 2

    kx, kp, ki = jax.random.split(key, 3)

    # hypergraph incidence: each hyperedge contains `verts_per_edge` distinct vertices
    vperm = jax.vmap(lambda k: jax.random.permutation(k, N)[:verts_per_edge])(
        jax.random.split(ki, num_edges))
    vertex = vperm.reshape(-1).astype(jnp.int32)                                   # (M,)
    edges = jnp.repeat(jnp.arange(num_edges, dtype=jnp.int32), verts_per_edge)     # (M,)

    X = jax.random.normal(kx, (N, nfeat), jnp.float32)
    params = init_unignn(kp, nfeat, nhid, nclass, nlayer, nhead)
    B_mean, Mask = incidence_mats(vertex, edges, N, num_edges)

    ref = unignn_forward_ref(params, X, vertex, edges, num_edges)
    ref = np.asarray(jax.block_until_ready(ref))

    # 1) fused stack kernel, exact-semantics check: f32 MXU operands, tight tolerance.
    out_f32 = unignn_forward_pallas(params, X, B_mean, Mask, mxu_dtype=jnp.float32)
    out_f32 = np.asarray(jax.block_until_ready(out_f32))
    np.testing.assert_allclose(out_f32, ref, atol=2e-3, rtol=2e-3)

    # 2) fused stack kernel, performance config: bf16 MXU operands with f32 accumulation
    #    (looser tolerance only reflects the intentional low-precision matmul operands).
    out_bf16 = unignn_forward_pallas(params, X, B_mean, Mask, mxu_dtype=jnp.bfloat16)
    out_bf16 = np.asarray(jax.block_until_ready(out_bf16))
    assert np.all(np.isfinite(out_bf16))
    np.testing.assert_allclose(out_bf16, ref, atol=6e-2, rtol=6e-2)

    # 3) streamed fallback path (auto-selected for graphs whose incidence matrices do not
    #    fit in VMEM); exercised explicitly here for coverage.
    out_tiled = unignn_forward_pallas(params, X, B_mean, Mask, mxu_dtype=jnp.bfloat16,
                                      node_tile=128, edge_tile=32, force_tiled=True)
    out_tiled = np.asarray(jax.block_until_ready(out_tiled))
    assert np.all(np.isfinite(out_tiled))
    np.testing.assert_allclose(out_tiled, ref, atol=6e-2, rtol=6e-2)

    print("KERNEL_OK")
</pallas_src>

<mosaic_0001>
module attributes {stable_mosaic.version = 11 : i64} {
  func.func @_stack_kernel(%arg0: i32, %arg1: memref<256x64xf32, #tpu.memory_space<vmem>>, %arg2: memref<64x256xf32, #tpu.memory_space<vmem>>, %arg3: memref<256x64xf32, #tpu.memory_space<vmem>>, %arg4: memref<64x32xf32, #tpu.memory_space<vmem>>, %arg5: memref<1x32xf32, #tpu.memory_space<vmem>>, %arg6: memref<32x32xf32, #tpu.memory_space<vmem>>, %arg7: memref<1x32xf32, #tpu.memory_space<vmem>>, %arg8: memref<32x8xf32, #tpu.memory_space<vmem>>, %arg9: memref<1x8xf32, #tpu.memory_space<vmem>>, %arg10: memref<256x8xf32, #tpu.memory_space<vmem>>) attributes {dimension_semantics = [#tpu.dimension_semantics<arbitrary>], iteration_bounds = array<i64: 1>, scalar_prefetch = 0 : i64, scratch_operands = 0 : i64, tpu.core_type = #tpu.core_type<tc>, window_params = [{pipeline_mode = #tpu.pipeline_mode<synchronous>, transform_indices = @transform_0, window_bounds = array<i64: 256, 64>}, {pipeline_mode = #tpu.pipeline_mode<synchronous>, transform_indices = @transform_1, window_bounds = array<i64: 64, 256>}, {pipeline_mode = #tpu.pipeline_mode<synchronous>, transform_indices = @transform_2, window_bounds = array<i64: 256, 64>}, {pipeline_mode = #tpu.pipeline_mode<synchronous>, transform_indices = @transform_3, window_bounds = array<i64: 64, 32>}, {pipeline_mode = #tpu.pipeline_mode<synchronous>, transform_indices = @transform_4, window_bounds = array<i64: 1, 32>}, {pipeline_mode = #tpu.pipeline_mode<synchronous>, transform_indices = @transform_5, window_bounds = array<i64: 32, 32>}, {pipeline_mode = #tpu.pipeline_mode<synchronous>, transform_indices = @transform_6, window_bounds = array<i64: 1, 32>}, {pipeline_mode = #tpu.pipeline_mode<synchronous>, transform_indices = @transform_7, window_bounds = array<i64: 32, 8>}, {pipeline_mode = #tpu.pipeline_mode<synchronous>, transform_indices = @transform_8, window_bounds = array<i64: 1, 8>}, {pipeline_mode = #tpu.pipeline_mode<synchronous>, transform_indices = @transform_9, window_bounds = array<i64: 256, 8>}]} {
    %c0 = arith.constant 0 : index
    %c0_0 = arith.constant 0 : index
    %0 = vector.load %arg1[%c0, %c0_0] : memref<256x64xf32, #tpu.memory_space<vmem>>, vector<256x64xf32>
    %c0_1 = arith.constant 0 : index
    %c0_2 = arith.constant 0 : index
    %1 = vector.load %arg2[%c0_1, %c0_2] : memref<64x256xf32, #tpu.memory_space<vmem>>, vector<64x256xf32>
    %c0_3 = arith.constant 0 : index
    %c0_4 = arith.constant 0 : index
    %2 = vector.load %arg3[%c0_3, %c0_4] : memref<256x64xf32, #tpu.memory_space<vmem>>, vector<256x64xf32>
    %c0_5 = arith.constant 0 : index
    %c0_6 = arith.constant 0 : index
    %3 = vector.load %arg4[%c0_5, %c0_6] : memref<64x32xf32, #tpu.memory_space<vmem>>, vector<64x32xf32>
    %c0_7 = arith.constant 0 : index
    %c0_8 = arith.constant 0 : index
    %4 = vector.load %arg5[%c0_7, %c0_8] : memref<1x32xf32, #tpu.memory_space<vmem>>, vector<1x32xf32>
    %cst = arith.constant dense<0.000000e+00> : vector<256x32xf32>
    %5 = tpu.matmul %0, %3, %cst {dimension_numbers = #tpu.dot_dimension_numbers<[1], [0], [0], [1], [0, 0, 1, 1], [], []>} : vector<256x64xf32>, vector<64x32xf32>, vector<256x32xf32> -> vector<256x32xf32>
    %cst_9 = arith.constant dense<0.000000e+00> : vector<64x32xf32>
    %6 = tpu.matmul %1, %5, %cst_9 {dimension_numbers = #tpu.dot_dimension_numbers<[1], [0], [0], [1], [0, 0, 1, 1], [], []>} : vector<64x256xf32>, vector<256x32xf32>, vector<64x32xf32> -> vector<64x32xf32>
    %7 = vector.broadcast %4 : vector<1x32xf32> to vector<64x32xf32>
    %8 = arith.mulf %6, %7 : vector<64x32xf32>
    %9 = vector.extract_strided_slice %8 {offsets = [0, 0], sizes = [64, 16], strides = [1, 1]} : vector<64x32xf32> to vector<64x16xf32>
    %cst_10 = arith.constant dense<0.000000e+00> : vector<64xf32>
    %10 = vector.multi_reduction <add>, %9, %cst_10 [1] : vector<64x16xf32> to vector<64xf32>
    %11 = vector.shape_cast %10 : vector<64xf32> to vector<64x1xf32>
    %12 = vector.extract_strided_slice %8 {offsets = [0, 16], sizes = [64, 16], strides = [1, 1]} : vector<64x32xf32> to vector<64x16xf32>
    %cst_11 = arith.constant dense<0.000000e+00> : vector<64xf32>
    %13 = vector.multi_reduction <add>, %12, %cst_11 [1] : vector<64x16xf32> to vector<64xf32>
    %14 = vector.shape_cast %13 : vector<64xf32> to vector<64x1xf32>
    %15 = tpu.concatenate %11, %14 in 1 : vector<64x1xf32>, vector<64x1xf32> -> vector<64x2xf32>
    %cst_12 = arith.constant 0.000000e+00 : f32
    %16 = vector.broadcast %cst_12 : f32 to vector<64x2xf32>
    %17 = arith.cmpf oge, %15, %16 : vector<64x2xf32>
    %cst_13 = arith.constant 2.000000e-01 : f32
    %18 = vector.broadcast %cst_13 : f32 to vector<64x2xf32>
    %19 = arith.mulf %18, %15 : vector<64x2xf32>
    %20 = arith.select %17, %15, %19 : vector<64x2xi1>, vector<64x2xf32>
    %cst_14 = arith.constant dense<0xFF800000> : vector<2xf32>
    %21 = vector.multi_reduction <maximumf>, %20, %cst_14 [0] : vector<64x2xf32> to vector<2xf32>
    %22 = vector.shape_cast %21 : vector<2xf32> to vector<1x2xf32>
    %23 = vector.broadcast %22 : vector<1x2xf32> to vector<64x2xf32>
    %24 = arith.subf %20, %23 : vector<64x2xf32>
    %25 = math.exp %24 : vector<64x2xf32>
    %26 = vector.extract_strided_slice %25 {offsets = [0, 0], sizes = [64, 1], strides = [1, 1]} : vector<64x2xf32> to vector<64x1xf32>
    %27 = vector.shape_cast %26 : vector<64x1xf32> to vector<64x1xf32>
    %28 = vector.broadcast %27 : vector<64x1xf32> to vector<64x16xf32>
    %29 = vector.extract_strided_slice %25 {offsets = [0, 1], sizes = [64, 1], strides = [1, 1]} : vector<64x2xf32> to vector<64x1xf32>
    %30 = vector.shape_cast %29 : vector<64x1xf32> to vector<64x1xf32>
    %31 = vector.broadcast %30 : vector<64x1xf32> to vector<64x16xf32>
    %32 = tpu.concatenate %28, %31 in 1 : vector<64x16xf32>, vector<64x16xf32> -> vector<64x32xf32>
    %33 = arith.mulf %32, %6 : vector<64x32xf32>
    %cst_15 = arith.constant dense<0.000000e+00> : vector<256x32xf32>
    %34 = tpu.matmul %2, %33, %cst_15 {dimension_numbers = #tpu.dot_dimension_numbers<[1], [0], [0], [1], [0, 0, 1, 1], [], []>} : vector<256x64xf32>, vector<64x32xf32>, vector<256x32xf32> -> vector<256x32xf32>
    %cst_16 = arith.constant dense<0.000000e+00> : vector<256x2xf32>
    %35 = tpu.matmul %2, %25, %cst_16 {dimension_numbers = #tpu.dot_dimension_numbers<[1], [0], [0], [1], [0, 0, 1, 1], [], []>} : vector<256x64xf32>, vector<64x2xf32>, vector<256x2xf32> -> vector<256x2xf32>
    %cst_17 = arith.constant 1.000000e-16 : f32
    %36 = vector.broadcast %cst_17 : f32 to vector<256x2xf32>
    %37 = arith.addf %35, %36 : vector<256x2xf32>
    %cst_18 = arith.constant 1.000000e+00 : f32
    %38 = vector.broadcast %cst_18 : f32 to vector<256x2xf32>
    %39 = arith.divf %38, %37 : vector<256x2xf32>
    %40 = vector.extract_strided_slice %39 {offsets = [0, 0], sizes = [256, 1], strides = [1, 1]} : vector<256x2xf32> to vector<256x1xf32>
    %41 = vector.shape_cast %40 : vector<256x1xf32> to vector<256x1xf32>
    %42 = vector.broadcast %41 : vector<256x1xf32> to vector<256x16xf32>
    %43 = vector.extract_strided_slice %39 {offsets = [0, 1], sizes = [256, 1], strides = [1, 1]} : vector<256x2xf32> to vector<256x1xf32>
    %44 = vector.shape_cast %43 : vector<256x1xf32> to vector<256x1xf32>
    %45 = vector.broadcast %44 : vector<256x1xf32> to vector<256x16xf32>
    %46 = tpu.concatenate %42, %45 in 1 : vector<256x16xf32>, vector<256x16xf32> -> vector<256x32xf32>
    %47 = arith.mulf %46, %34 : vector<256x32xf32>
    %48 = arith.addf %47, %5 : vector<256x32xf32>
    %cst_19 = arith.constant 0.000000e+00 : f32
    %49 = vector.broadcast %cst_19 : f32 to vector<256x32xf32>
    %50 = arith.maximumf %48, %49 : vector<256x32xf32>
    %c0_20 = arith.constant 0 : index
    %c0_21 = arith.constant 0 : index
    %51 = vector.load %arg6[%c0_20, %c0_21] : memref<32x32xf32, #tpu.memory_space<vmem>>, vector<32x32xf32>
    %c0_22 = arith.constant 0 : index
    %c0_23 = arith.constant 0 : index
    %52 = vector.load %arg7[%c0_22, %c0_23] : memref<1x32xf32, #tpu.memory_space<vmem>>, vector<1x32xf32>
    %cst_24 = arith.constant dense<0.000000e+00> : vector<256x32xf32>
    %53 = tpu.matmul %50, %51, %cst_24 {dimension_numbers = #tpu.dot_dimension_numbers<[1], [0], [0], [1], [0, 0, 1, 1], [], []>} : vector<256x32xf32>, vector<32x32xf32>, vector<256x32xf32> -> vector<256x32xf32>
    %cst_25 = arith.constant dense<0.000000e+00> : vector<64x32xf32>
    %54 = tpu.matmul %1, %53, %cst_25 {dimension_numbers = #tpu.dot_dimension_numbers<[1], [0], [0], [1], [0, 0, 1, 1], [], []>} : vector<64x256xf32>, vector<256x32xf32>, vector<64x32xf32> -> vector<64x32xf32>
    %55 = vector.broadcast %52 : vector<1x32xf32> to vector<64x32xf32>
    %56 = arith.mulf %54, %55 : vector<64x32xf32>
    %57 = vector.extract_strided_slice %56 {offsets = [0, 0], sizes = [64, 16], strides = [1, 1]} : vector<64x32xf32> to vector<64x16xf32>
    %cst_26 = arith.constant dense<0.000000e+00> : vector<64xf32>
    %58 = vector.multi_reduction <add>, %57, %cst_26 [1] : vector<64x16xf32> to vector<64xf32>
    %59 = vector.shape_cast %58 : vector<64xf32> to vector<64x1xf32>
    %60 = vector.extract_strided_slice %56 {offsets = [0, 16], sizes = [64, 16], strides = [1, 1]} : vector<64x32xf32> to vector<64x16xf32>
    %cst_27 = arith.constant dense<0.000000e+00> : vector<64xf32>
    %61 = vector.multi_reduction <add>, %60, %cst_27 [1] : vector<64x16xf32> to vector<64xf32>
    %62 = vector.shape_cast %61 : vector<64xf32> to vector<64x1xf32>
    %63 = tpu.concatenate %59, %62 in 1 : vector<64x1xf32>, vector<64x1xf32> -> vector<64x2xf32>
    %cst_28 = arith.constant 0.000000e+00 : f32
    %64 = vector.broadcast %cst_28 : f32 to vector<64x2xf32>
    %65 = arith.cmpf oge, %63, %64 : vector<64x2xf32>
    %cst_29 = arith.constant 2.000000e-01 : f32
    %66 = vector.broadcast %cst_29 : f32 to vector<64x2xf32>
    %67 = arith.mulf %66, %63 : vector<64x2xf32>
    %68 = arith.select %65, %63, %67 : vector<64x2xi1>, vector<64x2xf32>
    %cst_30 = arith.constant dense<0xFF800000> : vector<2xf32>
    %69 = vector.multi_reduction <maximumf>, %68, %cst_30 [0] : vector<64x2xf32> to vector<2xf32>
    %70 = vector.shape_cast %69 : vector<2xf32> to vector<1x2xf32>
    %71 = vector.broadcast %70 : vector<1x2xf32> to vector<64x2xf32>
    %72 = arith.subf %68, %71 : vector<64x2xf32>
    %73 = math.exp %72 : vector<64x2xf32>
    %74 = vector.extract_strided_slice %73 {offsets = [0, 0], sizes = [64, 1], strides = [1, 1]} : vector<64x2xf32> to vector<64x1xf32>
    %75 = vector.shape_cast %74 : vector<64x1xf32> to vector<64x1xf32>
    %76 = vector.broadcast %75 : vector<64x1xf32> to vector<64x16xf32>
    %77 = vector.extract_strided_slice %73 {offsets = [0, 1], sizes = [64, 1], strides = [1, 1]} : vector<64x2xf32> to vector<64x1xf32>
    %78 = vector.shape_cast %77 : vector<64x1xf32> to vector<64x1xf32>
    %79 = vector.broadcast %78 : vector<64x1xf32> to vector<64x16xf32>
    %80 = tpu.concatenate %76, %79 in 1 : vector<64x16xf32>, vector<64x16xf32> -> vector<64x32xf32>
    %81 = arith.mulf %80, %54 : vector<64x32xf32>
    %cst_31 = arith.constant dense<0.000000e+00> : vector<256x32xf32>
    %82 = tpu.matmul %2, %81, %cst_31 {dimension_numbers = #tpu.dot_dimension_numbers<[1], [0], [0], [1], [0, 0, 1, 1], [], []>} : vector<256x64xf32>, vector<64x32xf32>, vector<256x32xf32> -> vector<256x32xf32>
    %cst_32 = arith.constant dense<0.000000e+00> : vector<256x2xf32>
    %83 = tpu.matmul %2, %73, %cst_32 {dimension_numbers = #tpu.dot_dimension_numbers<[1], [0], [0], [1], [0, 0, 1, 1], [], []>} : vector<256x64xf32>, vector<64x2xf32>, vector<256x2xf32> -> vector<256x2xf32>
    %cst_33 = arith.constant 1.000000e-16 : f32
    %84 = vector.broadcast %cst_33 : f32 to vector<256x2xf32>
    %85 = arith.addf %83, %84 : vector<256x2xf32>
    %cst_34 = arith.constant 1.000000e+00 : f32
    %86 = vector.broadcast %cst_34 : f32 to vector<256x2xf32>
    %87 = arith.divf %86, %85 : vector<256x2xf32>
    %88 = vector.extract_strided_slice %87 {offsets = [0, 0], sizes = [256, 1], strides = [1, 1]} : vector<256x2xf32> to vector<256x1xf32>
    %89 = vector.shape_cast %88 : vector<256x1xf32> to vector<256x1xf32>
    %90 = vector.broadcast %89 : vector<256x1xf32> to vector<256x16xf32>
    %91 = vector.extract_strided_slice %87 {offsets = [0, 1], sizes = [256, 1], strides = [1, 1]} : vector<256x2xf32> to vector<256x1xf32>
    %92 = vector.shape_cast %91 : vector<256x1xf32> to vector<256x1xf32>
    %93 = vector.broadcast %92 : vector<256x1xf32> to vector<256x16xf32>
    %94 = tpu.concatenate %90, %93 in 1 : vector<256x16xf32>, vector<256x16xf32> -> vector<256x32xf32>
    %95 = arith.mulf %94, %82 : vector<256x32xf32>
    %96 = arith.addf %95, %53 : vector<256x32xf32>
    %cst_35 = arith.constant 0.000000e+00 : f32
    %97 = vector.broadcast %cst_35 : f32 to vector<256x32xf32>
    %98 = arith.maximumf %96, %97 : vector<256x32xf32>
    %c0_36 = arith.constant 0 : index
    %c0_37 = arith.constant 0 : index
    %99 = vector.load %arg8[%c0_36, %c0_37] : memref<32x8xf32, #tpu.memory_space<vmem>>, vector<32x8xf32>
    %c0_38 = arith.constant 0 : index
    %c0_39 = arith.constant 0 : index
    %100 = vector.load %arg9[%c0_38, %c0_39] : memref<1x8xf32, #tpu.memory_space<vmem>>, vector<1x8xf32>
    %cst_40 = arith.constant dense<0.000000e+00> : vector<256x8xf32>
    %101 = tpu.matmul %98, %99, %cst_40 {dimension_numbers = #tpu.dot_dimension_numbers<[1], [0], [0], [1], [0, 0, 1, 1], [], []>} : vector<256x32xf32>, vector<32x8xf32>, vector<256x8xf32> -> vector<256x8xf32>
    %cst_41 = arith.constant dense<0.000000e+00> : vector<64x8xf32>
    %102 = tpu.matmul %1, %101, %cst_41 {dimension_numbers = #tpu.dot_dimension_numbers<[1], [0], [0], [1], [0, 0, 1, 1], [], []>} : vector<64x256xf32>, vector<256x8xf32>, vector<64x8xf32> -> vector<64x8xf32>
    %103 = vector.broadcast %100 : vector<1x8xf32> to vector<64x8xf32>
    %104 = arith.mulf %102, %103 : vector<64x8xf32>
    %cst_42 = arith.constant dense<0.000000e+00> : vector<64xf32>
    %105 = vector.multi_reduction <add>, %104, %cst_42 [1] : vector<64x8xf32> to vector<64xf32>
    %106 = vector.shape_cast %105 : vector<64xf32> to vector<64x1xf32>
    %cst_43 = arith.constant 0.000000e+00 : f32
    %107 = vector.broadcast %cst_43 : f32 to vector<64x1xf32>
    %108 = arith.cmpf oge, %106, %107 : vector<64x1xf32>
    %cst_44 = arith.constant 2.000000e-01 : f32
    %109 = vector.broadcast %cst_44 : f32 to vector<64x1xf32>
    %110 = arith.mulf %109, %106 : vector<64x1xf32>
    %111 = arith.select %108, %106, %110 : vector<64x1xi1>, vector<64x1xf32>
    %cst_45 = arith.constant dense<0xFF800000> : vector<1xf32>
    %112 = vector.multi_reduction <maximumf>, %111, %cst_45 [0] : vector<64x1xf32> to vector<1xf32>
    %113 = vector.shape_cast %112 : vector<1xf32> to vector<1x1xf32>
    %114 = vector.broadcast %113 : vector<1x1xf32> to vector<64x1xf32>
    %115 = arith.subf %111, %114 : vector<64x1xf32>
    %116 = math.exp %115 : vector<64x1xf32>
    %117 = vector.shape_cast %116 : vector<64x1xf32> to vector<64x1xf32>
    %118 = vector.broadcast %117 : vector<64x1xf32> to vector<64x8xf32>
    %119 = arith.mulf %118, %102 : vector<64x8xf32>
    %cst_46 = arith.constant dense<0.000000e+00> : vector<256x8xf32>
    %120 = tpu.matmul %2, %119, %cst_46 {dimension_numbers = #tpu.dot_dimension_numbers<[1], [0], [0], [1], [0, 0, 1, 1], [], []>} : vector<256x64xf32>, vector<64x8xf32>, vector<256x8xf32> -> vector<256x8xf32>
    %cst_47 = arith.constant dense<0.000000e+00> : vector<256x1xf32>
    %121 = tpu.matmul %2, %116, %cst_47 {dimension_numbers = #tpu.dot_dimension_numbers<[1], [0], [0], [1], [0, 0, 1, 1], [], []>} : vector<256x64xf32>, vector<64x1xf32>, vector<256x1xf32> -> vector<256x1xf32>
    %cst_48 = arith.constant 1.000000e-16 : f32
    %122 = vector.broadcast %cst_48 : f32 to vector<256x1xf32>
    %123 = arith.addf %121, %122 : vector<256x1xf32>
    %cst_49 = arith.constant 1.000000e+00 : f32
    %124 = vector.broadcast %cst_49 : f32 to vector<256x1xf32>
    %125 = arith.divf %124, %123 : vector<256x1xf32>
    %126 = vector.shape_cast %125 : vector<256x1xf32> to vector<256x1xf32>
    %127 = vector.broadcast %126 : vector<256x1xf32> to vector<256x8xf32>
    %128 = arith.mulf %127, %120 : vector<256x8xf32>
    %129 = arith.addf %128, %101 : vector<256x8xf32>
    %cst_50 = arith.constant dense<0xFF800000> : vector<256xf32>
    %130 = vector.multi_reduction <maximumf>, %129, %cst_50 [1] : vector<256x8xf32> to vector<256xf32>
    %131 = vector.shape_cast %130 : vector<256xf32> to vector<256x1xf32>
    %132 = vector.broadcast %131 : vector<256x1xf32> to vector<256x8xf32>
    %133 = arith.subf %129, %132 : vector<256x8xf32>
    %134 = math.exp %133 : vector<256x8xf32>
    %cst_51 = arith.constant dense<0.000000e+00> : vector<256xf32>
    %135 = vector.multi_reduction <add>, %134, %cst_51 [1] : vector<256x8xf32> to vector<256xf32>
    %136 = vector.shape_cast %135 : vector<256xf32> to vector<256x1xf32>
    %137 = math.log %136 : vector<256x1xf32>
    %138 = vector.broadcast %137 : vector<256x1xf32> to vector<256x8xf32>
    %139 = arith.subf %133, %138 : vector<256x8xf32>
    %c0_52 = arith.constant 0 : index
    %c0_53 = arith.constant 0 : index
    %140 = vector.load %arg10[%c0_52, %c0_53] : memref<256x8xf32, #tpu.memory_space<vmem>>, vector<256x8xf32>
    tpu.vector_store %arg10[%c0_52, %c0_53], %139 {strides = array<i32>} : memref<256x8xf32, #tpu.memory_space<vmem>>, vector<256x8xf32>,
    return
  }
  func.func @transform_0(%arg0: i32) -> (i32, i32) {
    %c0_i32 = arith.constant 0 : i32
    %c0_i32_0 = arith.constant 0 : i32
    %c0_i32_1 = arith.constant 0 : i32
    return %c0_i32, %c0_i32_0 : i32, i32
  }
  func.func @transform_1(%arg0: i32) -> (i32, i32) {
    %c0_i32 = arith.constant 0 : i32
    %c0_i32_0 = arith.constant 0 : i32
    %c0_i32_1 = arith.constant 0 : i32
    return %c0_i32, %c0_i32_0 : i32, i32
  }
  func.func @transform_2(%arg0: i32) -> (i32, i32) {
    %c0_i32 = arith.constant 0 : i32
    %c0_i32_0 = arith.constant 0 : i32
    %c0_i32_1 = arith.constant 0 : i32
    return %c0_i32, %c0_i32_0 : i32, i32
  }
  func.func @transform_3(%arg0: i32) -> (i32, i32) {
    %c0_i32 = arith.constant 0 : i32
    %c0_i32_0 = arith.constant 0 : i32
    %c0_i32_1 = arith.constant 0 : i32
    return %c0_i32, %c0_i32_0 : i32, i32
  }
  func.func @transform_4(%arg0: i32) -> (i32, i32) {
    %c0_i32 = arith.constant 0 : i32
    %c0_i32_0 = arith.constant 0 : i32
    %c0_i32_1 = arith.constant 0 : i32
    return %c0_i32, %c0_i32_0 : i32, i32
  }
  func.func @transform_5(%arg0: i32) -> (i32, i32) {
    %c0_i32 = arith.constant 0 : i32
    %c0_i32_0 = arith.constant 0 : i32
    %c0_i32_1 = arith.constant 0 : i32
    return %c0_i32, %c0_i32_0 : i32, i32
  }
  func.func @transform_6(%arg0: i32) -> (i32, i32) {
    %c0_i32 = arith.constant 0 : i32
    %c0_i32_0 = arith.constant 0 : i32
    %c0_i32_1 = arith.constant 0 : i32
    return %c0_i32, %c0_i32_0 : i32, i32
  }
  func.func @transform_7(%arg0: i32) -> (i32, i32) {
    %c0_i32 = arith.constant 0 : i32
    %c0_i32_0 = arith.constant 0 : i32
    %c0_i32_1 = arith.constant 0 : i32
    return %c0_i32, %c0_i32_0 : i32, i32
  }
  func.func @transform_8(%arg0: i32) -> (i32, i32) {
    %c0_i32 = arith.constant 0 : i32
    %c0_i32_0 = arith.constant 0 : i32
    %c0_i32_1 = arith.constant 0 : i32
    return %c0_i32, %c0_i32_0 : i32, i32
  }
  func.func @transform_9(%arg0: i32) -> (i32, i32) {
    %c0_i32 = arith.constant 0 : i32
    %c0_i32_0 = arith.constant 0 : i32
    %c0_i32_1 = arith.constant 0 : i32
    return %c0_i32, %c0_i32_0 : i32, i32
  }
}

</mosaic_0001>

<llo_original>
// kernel: tpu_custom_call.1
$region0: #{tpu_custom_call.1}
  #allocation0 [shape = 'u32[]', space=smem, size = 0x4, offset = 0x4, fixed_abs, tag = 'smem constant byte address 0x4 - core index']
  #allocation1 [shape = 'u32[72,128]{1,0:T(1,128)}', space=vmem, size = 0x9000, scoped, tag = 'internal scratch']
  %s0 = inlined_call_operand.vmem [shape: f32[256,64], index: 0, kind: input, shape index: {}]
  %s1 = inlined_call_operand.vmem [shape: f32[64,256], index: 1, kind: input, shape index: {}]
  %s2 = inlined_call_operand.vmem [shape: f32[256,64], index: 2, kind: input, shape index: {}]
  %s3 = inlined_call_operand.vmem [shape: f32[64,32], index: 3, kind: input, shape index: {}]
  %s4 = inlined_call_operand.vmem [shape: f32[1,32], index: 4, kind: input, shape index: {}]
  %s5 = inlined_call_operand.vmem [shape: f32[32,32], index: 5, kind: input, shape index: {}]
  %s6 = inlined_call_operand.vmem [shape: f32[1,32], index: 6, kind: input, shape index: {}]
  %s7 = inlined_call_operand.vmem [shape: f32[32,8], index: 7, kind: input, shape index: {}]
  %s8 = inlined_call_operand.vmem [shape: f32[1,8], index: 8, kind: input, shape index: {}]
  %s9 = inlined_call_operand.vmem [shape: f32[256,8], index: 9, kind: output, shape index: {}]
  %s10 = sld [smem:[#allocation0]]
  $region46: #{tpu_custom_call.1} parent=0
    _
  %s12 = ssub.s32 1, %s10
  %s13 = scalar_select 0, %s12, %s10
  // Predicated region
  $region2: #{tpu_custom_call.1} parent=0 // pred_check
    _
  $region3: #{tpu_custom_call.1} parent=0 // pred_check_branch
    %15 = sbr.rel (0) target = $region5
  $region4: #{tpu_custom_call.1} parent=0 // pred_region
    _
  $region5: #{tpu_custom_call.1} parent=0 // pred_fallthru
    _
  // Predicated region
  $region6: #{tpu_custom_call.1} parent=0 // pred_check
    _
  $region7: #{tpu_custom_call.1} parent=0 // pred_check_branch
    %17 = sbr.rel (0) target = $region9
  $region8: #{tpu_custom_call.1} parent=0 // pred_region
    _
  $region9: #{tpu_custom_call.1} parent=0 // pred_fallthru
    _
  // Predicated region
  $region10: #{tpu_custom_call.1} parent=0 // pred_check
    _
  $region11: #{tpu_custom_call.1} parent=0 // pred_check_branch
    %19 = sbr.rel (0) target = $region13
  $region12: #{tpu_custom_call.1} parent=0 // pred_region
    _
  $region13: #{tpu_custom_call.1} parent=0 // pred_fallthru
    _
  // Predicated region
  $region14: #{tpu_custom_call.1} parent=0 // pred_check
    _
  $region15: #{tpu_custom_call.1} parent=0 // pred_check_branch
    %21 = sbr.rel (0) target = $region17
  $region16: #{tpu_custom_call.1} parent=0 // pred_region
    _
  $region17: #{tpu_custom_call.1} parent=0 // pred_fallthru
    _
  // Predicated region
  $region18: #{tpu_custom_call.1} parent=0 // pred_check
    _
  $region19: #{tpu_custom_call.1} parent=0 // pred_check_branch
    %23 = sbr.rel (0) target = $region21
  $region20: #{tpu_custom_call.1} parent=0 // pred_region
    _
  $region21: #{tpu_custom_call.1} parent=0 // pred_fallthru
    _
  // Predicated region
  $region22: #{tpu_custom_call.1} parent=0 // pred_check
    _
  $region23: #{tpu_custom_call.1} parent=0 // pred_check_branch
    %25 = sbr.rel (0) target = $region25
  $region24: #{tpu_custom_call.1} parent=0 // pred_region
    _
  $region25: #{tpu_custom_call.1} parent=0 // pred_fallthru
    _
  // Predicated region
  $region26: #{tpu_custom_call.1} parent=0 // pred_check
    _
  $region27: #{tpu_custom_call.1} parent=0 // pred_check_branch
    %27 = sbr.rel (0) target = $region29
  $region28: #{tpu_custom_call.1} parent=0 // pred_region
    _
  $region29: #{tpu_custom_call.1} parent=0 // pred_fallthru
    _
  // Predicated region
  $region30: #{tpu_custom_call.1} parent=0 // pred_check
    _
  $region31: #{tpu_custom_call.1} parent=0 // pred_check_branch
    %29 = sbr.rel (0) target = $region33
  $region32: #{tpu_custom_call.1} parent=0 // pred_region
    _
  $region33: #{tpu_custom_call.1} parent=0 // pred_fallthru
    _
  // Predicated region
  $region34: #{tpu_custom_call.1} parent=0 // pred_check
    _
  $region35: #{tpu_custom_call.1} parent=0 // pred_check_branch
    %31 = sbr.rel (0) target = $region37
  $region36: #{tpu_custom_call.1} parent=0 // pred_region
    _
  $region37: #{tpu_custom_call.1} parent=0 // pred_fallthru
    _
  %v32 = vld [vmem:[%s0] sm:$0xff]
  %v33 = vld [vmem:[%s0 + $0x8] sm:$0xff]
  %v34 = vld [vmem:[%s0 + $0x10] sm:$0xff]
  %v35 = vld [vmem:[%s0 + $0x18] sm:$0xff]
  %v36 = vld [vmem:[%s0 + $0x20] sm:$0xff]
  %v37 = vld [vmem:[%s0 + $0x28] sm:$0xff]
  %v38 = vld [vmem:[%s0 + $0x30] sm:$0xff]
  %v39 = vld [vmem:[%s0 + $0x38] sm:$0xff]
  %v40 = vld [vmem:[%s0 + $0x40] sm:$0xff]
  %v41 = vld [vmem:[%s0 + $0x48] sm:$0xff]
  %v42 = vld [vmem:[%s0 + $0x50] sm:$0xff]
  %v43 = vld [vmem:[%s0 + $0x58] sm:$0xff]
  %v44 = vld [vmem:[%s0 + $0x60] sm:$0xff]
  %v45 = vld [vmem:[%s0 + $0x68] sm:$0xff]
  %v46 = vld [vmem:[%s0 + $0x70] sm:$0xff]
  %v47 = vld [vmem:[%s0 + $0x78] sm:$0xff]
  %v48 = vld [vmem:[%s0 + $0x80] sm:$0xff]
  %v49 = vld [vmem:[%s0 + $0x88] sm:$0xff]
  %v50 = vld [vmem:[%s0 + $0x90] sm:$0xff]
  %v51 = vld [vmem:[%s0 + $0x98] sm:$0xff]
  %v52 = vld [vmem:[%s0 + $0xa0] sm:$0xff]
  %v53 = vld [vmem:[%s0 + $0xa8] sm:$0xff]
  %v54 = vld [vmem:[%s0 + $0xb0] sm:$0xff]
  %v55 = vld [vmem:[%s0 + $0xb8] sm:$0xff]
  %v56 = vld [vmem:[%s0 + $0xc0] sm:$0xff]
  %v57 = vld [vmem:[%s0 + $0xc8] sm:$0xff]
  %v58 = vld [vmem:[%s0 + $0xd0] sm:$0xff]
  %v59 = vld [vmem:[%s0 + $0xd8] sm:$0xff]
  %v60 = vld [vmem:[%s0 + $0xe0] sm:$0xff]
  %v61 = vld [vmem:[%s0 + $0xe8] sm:$0xff]
  %v62 = vld [vmem:[%s0 + $0xf0] sm:$0xff]
  %v63 = vld [vmem:[%s0 + $0xf8] sm:$0xff]
  %v64 = vld [vmem:[%s1] sm:$0xff]
  %v65 = vld [vmem:[%s1 + $0x8] sm:$0xff]
  %v66 = vld [vmem:[%s1 + $0x10] sm:$0xff]
  %v67 = vld [vmem:[%s1 + $0x18] sm:$0xff]
  %v68 = vld [vmem:[%s1 + $0x20] sm:$0xff]
  %v69 = vld [vmem:[%s1 + $0x28] sm:$0xff]
  %v70 = vld [vmem:[%s1 + $0x30] sm:$0xff]
  %v71 = vld [vmem:[%s1 + $0x38] sm:$0xff]
  %v72 = vld [vmem:[%s1 + $0x40] sm:$0xff]
  %v73 = vld [vmem:[%s1 + $0x48] sm:$0xff]
  %v74 = vld [vmem:[%s1 + $0x50] sm:$0xff]
  %v75 = vld [vmem:[%s1 + $0x58] sm:$0xff]
  %v76 = vld [vmem:[%s1 + $0x60] sm:$0xff]
  %v77 = vld [vmem:[%s1 + $0x68] sm:$0xff]
  %v78 = vld [vmem:[%s1 + $0x70] sm:$0xff]
  %v79 = vld [vmem:[%s1 + $0x78] sm:$0xff]
  %v80 = vld [vmem:[%s2] sm:$0xff]
  %v81 = vld [vmem:[%s2 + $0x8] sm:$0xff]
  %v82 = vld [vmem:[%s2 + $0x10] sm:$0xff]
  %v83 = vld [vmem:[%s2 + $0x18] sm:$0xff]
  %v84 = vld [vmem:[%s2 + $0x20] sm:$0xff]
  %v85 = vld [vmem:[%s2 + $0x28] sm:$0xff]
  %v86 = vld [vmem:[%s2 + $0x30] sm:$0xff]
  %v87 = vld [vmem:[%s2 + $0x38] sm:$0xff]
  %v88 = vld [vmem:[%s2 + $0x40] sm:$0xff]
  %v89 = vld [vmem:[%s2 + $0x48] sm:$0xff]
  %v90 = vld [vmem:[%s2 + $0x50] sm:$0xff]
  %v91 = vld [vmem:[%s2 + $0x58] sm:$0xff]
  %v92 = vld [vmem:[%s2 + $0x60] sm:$0xff]
  %v93 = vld [vmem:[%s2 + $0x68] sm:$0xff]
  %v94 = vld [vmem:[%s2 + $0x70] sm:$0xff]
  %v95 = vld [vmem:[%s2 + $0x78] sm:$0xff]
  %v96 = vld [vmem:[%s2 + $0x80] sm:$0xff]
  %v97 = vld [vmem:[%s2 + $0x88] sm:$0xff]
  %v98 = vld [vmem:[%s2 + $0x90] sm:$0xff]
  %v99 = vld [vmem:[%s2 + $0x98] sm:$0xff]
  %v100 = vld [vmem:[%s2 + $0xa0] sm:$0xff]
  %v101 = vld [vmem:[%s2 + $0xa8] sm:$0xff]
  %v102 = vld [vmem:[%s2 + $0xb0] sm:$0xff]
  %v103 = vld [vmem:[%s2 + $0xb8] sm:$0xff]
  %v104 = vld [vmem:[%s2 + $0xc0] sm:$0xff]
  %v105 = vld [vmem:[%s2 + $0xc8] sm:$0xff]
  %v106 = vld [vmem:[%s2 + $0xd0] sm:$0xff]
  %v107 = vld [vmem:[%s2 + $0xd8] sm:$0xff]
  %v108 = vld [vmem:[%s2 + $0xe0] sm:$0xff]
  %v109 = vld [vmem:[%s2 + $0xe8] sm:$0xff]
  %v110 = vld [vmem:[%s2 + $0xf0] sm:$0xff]
  %v111 = vld [vmem:[%s2 + $0xf8] sm:$0xff]
  %v112 = vld [vmem:[%s3] sm:$0xff]
  %v113 = vld [vmem:[%s3 + $0x8] sm:$0xff]
  %v114 = vld [vmem:[%s3 + $0x10] sm:$0xff]
  %v115 = vld [vmem:[%s3 + $0x18] sm:$0xff]
  %v116 = vld [vmem:[%s3 + $0x20] sm:$0xff]
  %v117 = vld [vmem:[%s3 + $0x28] sm:$0xff]
  %v118 = vld [vmem:[%s3 + $0x30] sm:$0xff]
  %v119 = vld [vmem:[%s3 + $0x38] sm:$0xff]
  %v120 = vld [vmem:[%s4] sm:$0x1]
  %vm121 = vcmask 523264
  %v123 = vsel %vm121, %v32, 0
  %v126 = vsel %vm121, %v33, 0
  %v129 = vsel %vm121, %v34, 0
  %v132 = vsel %vm121, %v35, 0
  %v135 = vsel %vm121, %v36, 0
  %v138 = vsel %vm121, %v37, 0
  %v141 = vsel %vm121, %v38, 0
  %v144 = vsel %vm121, %v39, 0
  %v147 = vsel %vm121, %v40, 0
  %v150 = vsel %vm121, %v41, 0
  %v153 = vsel %vm121, %v42, 0
  %v156 = vsel %vm121, %v43, 0
  %v159 = vsel %vm121, %v44, 0
  %v162 = vsel %vm121, %v45, 0
  %v165 = vsel %vm121, %v46, 0
  %v168 = vsel %vm121, %v47, 0
  %v171 = vsel %vm121, %v48, 0
  %v174 = vsel %vm121, %v49, 0
  %v177 = vsel %vm121, %v50, 0
  %v180 = vsel %vm121, %v51, 0
  %v183 = vsel %vm121, %v52, 0
  %v186 = vsel %vm121, %v53, 0
  %v189 = vsel %vm121, %v54, 0
  %v192 = vsel %vm121, %v55, 0
  %v195 = vsel %vm121, %v56, 0
  %v198 = vsel %vm121, %v57, 0
  %v201 = vsel %vm121, %v58, 0
  %v204 = vsel %vm121, %v59, 0
  %v207 = vsel %vm121, %v60, 0
  %v210 = vsel %vm121, %v61, 0
  %v213 = vsel %vm121, %v62, 0
  %v216 = vsel %vm121, %v63, 0
  %218 = vmatpush.msra.mxu0 0.0
  %219 = vmatpush.msra.mxu0 0.0
  %220 = vmatpush.msra.mxu0 0.0
  %221 = vmatpush.msra.mxu0 0.0
  %222 = vmatpush.msra.mxu0 0.0
  %223 = vmatpush.msra.mxu0 0.0
  %224 = vmatpush.msra.mxu0 0.0
  %225 = vmatpush.msra.mxu0 0.0
  %226 = vmatpush.msra.mxu0 %v119
  %227 = vmatpush.msra.mxu0 %v118
  %228 = vmatpush.msra.mxu0 %v117
  %229 = vmatpush.msra.mxu0 %v116
  %230 = vmatpush.msra.mxu0 %v115
  %231 = vmatpush.msra.mxu0 %v114
  %232 = vmatpush.msra.mxu0 %v113
  %233 = vmatpush.msra.mxu0 %v112
  %234 = vmatmul.f32.gmra.mxu0 %v123
  %v235 = vpop.f32.mrf.mxu0
  %v236 = vadd.f32 0.0, %v235
  %237 = vmatmul.f32.gmra.mxu0 %v126
  %v238 = vpop.f32.mrf.mxu0
  %v239 = vadd.f32 0.0, %v238
  %240 = vmatmul.f32.gmra.mxu0 %v129
  %v241 = vpop.f32.mrf.mxu0
  %v242 = vadd.f32 0.0, %v241
  %243 = vmatmul.f32.gmra.mxu0 %v132
  %v244 = vpop.f32.mrf.mxu0
  %v245 = vadd.f32 0.0, %v244
  %246 = vmatmul.f32.gmra.mxu0 %v135
  %v247 = vpop.f32.mrf.mxu0
  %v248 = vadd.f32 0.0, %v247
  %249 = vmatmul.f32.gmra.mxu0 %v138
  %v250 = vpop.f32.mrf.mxu0
  %v251 = vadd.f32 0.0, %v250
  %252 = vmatmul.f32.gmra.mxu0 %v141
  %v253 = vpop.f32.mrf.mxu0
  %v254 = vadd.f32 0.0, %v253
  %255 = vmatmul.f32.gmra.mxu0 %v144
  %v256 = vpop.f32.mrf.mxu0
  %v257 = vadd.f32 0.0, %v256
  %258 = vmatmul.f32.gmra.mxu0 %v147
  %v259 = vpop.f32.mrf.mxu0
  %v260 = vadd.f32 0.0, %v259
  %261 = vmatmul.f32.gmra.mxu0 %v150
  %v262 = vpop.f32.mrf.mxu0
  %v263 = vadd.f32 0.0, %v262
  %264 = vmatmul.f32.gmra.mxu0 %v153
  %v265 = vpop.f32.mrf.mxu0
  %v266 = vadd.f32 0.0, %v265
  %267 = vmatmul.f32.gmra.mxu0 %v156
  %v268 = vpop.f32.mrf.mxu0
  %v269 = vadd.f32 0.0, %v268
  %270 = vmatmul.f32.gmra.mxu0 %v159
  %v271 = vpop.f32.mrf.mxu0
  %v272 = vadd.f32 0.0, %v271
  %273 = vmatmul.f32.gmra.mxu0 %v162
  %v274 = vpop.f32.mrf.mxu0
  %v275 = vadd.f32 0.0, %v274
  %276 = vmatmul.f32.gmra.mxu0 %v165
  %v277 = vpop.f32.mrf.mxu0
  %v278 = vadd.f32 0.0, %v277
  %279 = vmatmul.f32.gmra.mxu0 %v168
  %v280 = vpop.f32.mrf.mxu0
  %v281 = vadd.f32 0.0, %v280
  %282 = vmatmul.f32.gmra.mxu0 %v171
  %v283 = vpop.f32.mrf.mxu0
  %v284 = vadd.f32 0.0, %v283
  %285 = vmatmul.f32.gmra.mxu0 %v174
  %v286 = vpop.f32.mrf.mxu0
  %v287 = vadd.f32 0.0, %v286
  %288 = vmatmul.f32.gmra.mxu0 %v177
  %v289 = vpop.f32.mrf.mxu0
  %v290 = vadd.f32 0.0, %v289
  %291 = vmatmul.f32.gmra.mxu0 %v180
  %v292 = vpop.f32.mrf.mxu0
  %v293 = vadd.f32 0.0, %v292
  %294 = vmatmul.f32.gmra.mxu0 %v183
  %v295 = vpop.f32.mrf.mxu0
  %v296 = vadd.f32 0.0, %v295
  %297 = vmatmul.f32.gmra.mxu0 %v186
  %v298 = vpop.f32.mrf.mxu0
  %v299 = vadd.f32 0.0, %v298
  %300 = vmatmul.f32.gmra.mxu0 %v189
  %v301 = vpop.f32.mrf.mxu0
  %v302 = vadd.f32 0.0, %v301
  %303 = vmatmul.f32.gmra.mxu0 %v192
  %v304 = vpop.f32.mrf.mxu0
  %v305 = vadd.f32 0.0, %v304
  %306 = vmatmul.f32.gmra.mxu0 %v195
  %v307 = vpop.f32.mrf.mxu0
  %v308 = vadd.f32 0.0, %v307
  %309 = vmatmul.f32.gmra.mxu0 %v198
  %v310 = vpop.f32.mrf.mxu0
  %v311 = vadd.f32 0.0, %v310
  %312 = vmatmul.f32.gmra.mxu0 %v201
  %v313 = vpop.f32.mrf.mxu0
  %v314 = vadd.f32 0.0, %v313
  %315 = vmatmul.f32.gmra.mxu0 %v204
  %v316 = vpop.f32.mrf.mxu0
  %v317 = vadd.f32 0.0, %v316
  %318 = vmatmul.f32.gmra.mxu0 %v207
  %v319 = vpop.f32.mrf.mxu0
  %v320 = vadd.f32 0.0, %v319
  %321 = vmatmul.f32.gmra.mxu0 %v210
  %v322 = vpop.f32.mrf.mxu0
  %v323 = vadd.f32 0.0, %v322
  %324 = vmatmul.f32.gmra.mxu0 %v213
  %v325 = vpop.f32.mrf.mxu0
  %v326 = vadd.f32 0.0, %v325
  %327 = vmatmul.f32.gmra.mxu0 %v216
  %v328 = vpop.f32.mrf.mxu0
  %v329 = vadd.f32 0.0, %v328
  %330 = vdwg.mxu0
  %331 = vmatpush.msra.mxu0 %v281
  %332 = vmatpush.msra.mxu0 %v278
  %333 = vmatpush.msra.mxu0 %v275
  %334 = vmatpush.msra.mxu0 %v272
  %335 = vmatpush.msra.mxu0 %v269
  %336 = vmatpush.msra.mxu0 %v266
  %337 = vmatpush.msra.mxu0 %v263
  %338 = vmatpush.msra.mxu0 %v260
  %339 = vmatpush.msra.mxu0 %v257
  %340 = vmatpush.msra.mxu0 %v254
  %341 = vmatpush.msra.mxu0 %v251
  %342 = vmatpush.msra.mxu0 %v248
  %343 = vmatpush.msra.mxu0 %v245
  %344 = vmatpush.msra.mxu0 %v242
  %345 = vmatpush.msra.mxu0 %v239
  %346 = vmatpush.msra.mxu0 %v236
  %347 = vmatmul.f32.gmra.mxu0 %v64
  %v348 = vpop.f32.mrf.mxu0
  %v349 = vadd.f32 0.0, %v348
  %350 = vmatmul.f32.gmra.mxu0 %v66
  %v351 = vpop.f32.mrf.mxu0
  %v352 = vadd.f32 0.0, %v351
  %353 = vmatmul.f32.gmra.mxu0 %v68
  %v354 = vpop.f32.mrf.mxu0
  %v355 = vadd.f32 0.0, %v354
  %356 = vmatmul.f32.gmra.mxu0 %v70
  %v357 = vpop.f32.mrf.mxu0
  %v358 = vadd.f32 0.0, %v357
  %359 = vmatmul.f32.gmra.mxu0 %v72
  %v360 = vpop.f32.mrf.mxu0
  %v361 = vadd.f32 0.0, %v360
  %362 = vmatmul.f32.gmra.mxu0 %v74
  %v363 = vpop.f32.mrf.mxu0
  %v364 = vadd.f32 0.0, %v363
  %365 = vmatmul.f32.gmra.mxu0 %v76
  %v366 = vpop.f32.mrf.mxu0
  %v367 = vadd.f32 0.0, %v366
  %368 = vmatmul.f32.gmra.mxu0 %v78
  %v369 = vpop.f32.mrf.mxu0
  %v370 = vadd.f32 0.0, %v369
  %371 = vdwg.mxu0
  %372 = vmatpush.msra.mxu0 %v329
  %373 = vmatpush.msra.mxu0 %v326
  %374 = vmatpush.msra.mxu0 %v323
  %375 = vmatpush.msra.mxu0 %v320
  %376 = vmatpush.msra.mxu0 %v317
  %377 = vmatpush.msra.mxu0 %v314
  %378 = vmatpush.msra.mxu0 %v311
  %379 = vmatpush.msra.mxu0 %v308
  %380 = vmatpush.msra.mxu0 %v305
  %381 = vmatpush.msra.mxu0 %v302
  %382 = vmatpush.msra.mxu0 %v299
  %383 = vmatpush.msra.mxu0 %v296
  %384 = vmatpush.msra.mxu0 %v293
  %385 = vmatpush.msra.mxu0 %v290
  %386 = vmatpush.msra.mxu0 %v287
  %387 = vmatpush.msra.mxu0 %v284
  %388 = vmatmul.f32.gmra.mxu0 %v65
  %v389 = vpop.f32.mrf.mxu0
  %v390 = vadd.f32 %v349, %v389
  %391 = vmatmul.f32.gmra.mxu0 %v67
  %v392 = vpop.f32.mrf.mxu0
  %v393 = vadd.f32 %v352, %v392
  %394 = vmatmul.f32.gmra.mxu0 %v69
  %v395 = vpop.f32.mrf.mxu0
  %v396 = vadd.f32 %v355, %v395
  %397 = vmatmul.f32.gmra.mxu0 %v71
  %v398 = vpop.f32.mrf.mxu0
  %v399 = vadd.f32 %v358, %v398
  %400 = vmatmul.f32.gmra.mxu0 %v73
  %v401 = vpop.f32.mrf.mxu0
  %v402 = vadd.f32 %v361, %v401
  %403 = vmatmul.f32.gmra.mxu0 %v75
  %v404 = vpop.f32.mrf.mxu0
  %v405 = vadd.f32 %v364, %v404
  %406 = vmatmul.f32.gmra.mxu0 %v77
  %v407 = vpop.f32.mrf.mxu0
  %v408 = vadd.f32 %v367, %v407
  %409 = vmatmul.f32.gmra.mxu0 %v79
  %v410 = vpop.f32.mrf.mxu0
  %v411 = vadd.f32 %v370, %v410
  %412 = vdwg.mxu0
  %v414 = vperm.slane %v120, 0
  %v416 = vmul.f32 %v390, %v414
  %v417 = vmul.f32 %v393, %v414
  %v418 = vmul.f32 %v396, %v414
  %v419 = vmul.f32 %v399, %v414
  %v420 = vmul.f32 %v402, %v414
  %v421 = vmul.f32 %v405, %v414
  %v422 = vmul.f32 %v408, %v414
  %v423 = vmul.f32 %v411, %v414
  %vm424 = vcmask 130048
  %v425 = vsel %vm424, %v416, 0.0
  %426 = vadd.xlane.f32.xlu0 %v425
  %v427 = vpop.xlane.xlu0 %426
  %v428 = vsel %vm424, %v417, 0.0
  %429 = vadd.xlane.f32.xlu0 %v428
  %v430 = vpop.xlane.xlu0 %429
  %v431 = vsel %vm424, %v418, 0.0
  %432 = vadd.xlane.f32.xlu0 %v431
  %v433 = vpop.xlane.xlu0 %432
  %v434 = vsel %vm424, %v419, 0.0
  %435 = vadd.xlane.f32.xlu0 %v434
  %v436 = vpop.xlane.xlu0 %435
  %v437 = vsel %vm424, %v420, 0.0
  %438 = vadd.xlane.f32.xlu0 %v437
  %v439 = vpop.xlane.xlu0 %438
  %v440 = vsel %vm424, %v421, 0.0
  %441 = vadd.xlane.f32.xlu0 %v440
  %v442 = vpop.xlane.xlu0 %441
  %v443 = vsel %vm424, %v422, 0.0
  %444 = vadd.xlane.f32.xlu0 %v443
  %v445 = vpop.xlane.xlu0 %444
  %v446 = vsel %vm424, %v423, 0.0
  %447 = vadd.xlane.f32.xlu0 %v446
  %v448 = vpop.xlane.xlu0 %447
  %457 = vrot.lane.b32.xlu0 %v416, 112
  %v458 = vpop.permute.xlu0 %457
  %459 = vrot.lane.b32.xlu0 %v417, 112
  %v460 = vpop.permute.xlu0 %459
  %461 = vrot.lane.b32.xlu0 %v418, 112
  %v462 = vpop.permute.xlu0 %461
  %463 = vrot.lane.b32.xlu0 %v419, 112
  %v464 = vpop.permute.xlu0 %463
  %465 = vrot.lane.b32.xlu0 %v420, 112
  %v466 = vpop.permute.xlu0 %465
  %467 = vrot.lane.b32.xlu0 %v421, 112
  %v468 = vpop.permute.xlu0 %467
  %469 = vrot.lane.b32.xlu0 %v422, 112
  %v470 = vpop.permute.xlu0 %469
  %471 = vrot.lane.b32.xlu0 %v423, 112
  %v472 = vpop.permute.xlu0 %471
  %v481 = vsel %vm424, %v458, 0.0
  %482 = vadd.xlane.f32.xlu0 %v481
  %v483 = vpop.xlane.xlu0 %482
  %v484 = vsel %vm424, %v460, 0.0
  %485 = vadd.xlane.f32.xlu0 %v484
  %v486 = vpop.xlane.xlu0 %485
  %v487 = vsel %vm424, %v462, 0.0
  %488 = vadd.xlane.f32.xlu0 %v487
  %v489 = vpop.xlane.xlu0 %488
  %v490 = vsel %vm424, %v464, 0.0
  %491 = vadd.xlane.f32.xlu0 %v490
  %v492 = vpop.xlane.xlu0 %491
  %v493 = vsel %vm424, %v466, 0.0
  %494 = vadd.xlane.f32.xlu0 %v493
  %v495 = vpop.xlane.xlu0 %494
  %v496 = vsel %vm424, %v468, 0.0
  %497 = vadd.xlane.f32.xlu0 %v496
  %v498 = vpop.xlane.xlu0 %497
  %v499 = vsel %vm424, %v470, 0.0
  %500 = vadd.xlane.f32.xlu0 %v499
  %v501 = vpop.xlane.xlu0 %500
  %v502 = vsel %vm424, %v472, 0.0
  %503 = vadd.xlane.f32.xlu0 %v502
  %v504 = vpop.xlane.xlu0 %503
  %vm505 = vcmask 7168
  %v506 = vsel %vm505, %v427, %v483
  %v507 = vsel %vm505, %v430, %v486
  %v508 = vsel %vm505, %v433, %v489
  %v509 = vsel %vm505, %v436, %v492
  %v510 = vsel %vm505, %v439, %v495
  %v511 = vsel %vm505, %v442, %v498
  %v512 = vsel %vm505, %v445, %v501
  %v513 = vsel %vm505, %v448, %v504
  %vm514 = vcmp.ge.f32.partialorder %v506, 0.0
  %vm515 = vcmp.ge.f32.partialorder %v507, 0.0
  %vm516 = vcmp.ge.f32.partialorder %v508, 0.0
  %vm517 = vcmp.ge.f32.partialorder %v509, 0.0
  %vm518 = vcmp.ge.f32.partialorder %v510, 0.0
  %vm519 = vcmp.ge.f32.partialorder %v511, 0.0
  %vm520 = vcmp.ge.f32.partialorder %v512, 0.0
  %vm521 = vcmp.ge.f32.partialorder %v513, 0.0
  %v522 = vmul.f32 %v506, 0.2
  %v523 = vmul.f32 %v507, 0.2
  %v524 = vmul.f32 %v508, 0.2
  %v525 = vmul.f32 %v509, 0.2
  %v526 = vmul.f32 %v510, 0.2
  %v527 = vmul.f32 %v511, 0.2
  %v528 = vmul.f32 %v512, 0.2
  %v529 = vmul.f32 %v513, 0.2
  %v530 = vsel %vm514, %v506, %v522
  %v531 = vsel %vm515, %v507, %v523
  %v532 = vsel %vm516, %v508, %v524
  %v533 = vsel %vm517, %v509, %v525
  %v534 = vsel %vm518, %v510, %v526
  %v535 = vsel %vm519, %v511, %v527
  %v536 = vsel %vm520, %v512, %v528
  %v537 = vsel %vm521, %v513, %v529
  %vm538 = vcmask 15360
  %v539 = vsel %vm538, %v530, -inf
  %v540 = vsel %vm538, %v531, -inf
  %v541 = vsel %vm538, %v532, -inf
  %v542 = vsel %vm538, %v533, -inf
  %v543 = vsel %vm538, %v534, -inf
  %v544 = vmax.f32 %v539, %v543
  %v545 = vsel %vm538, %v535, -inf
  %v546 = vmax.f32 %v540, %v545
  %v547 = vsel %vm538, %v536, -inf
  %v548 = vmax.f32 %v541, %v547
  %v549 = vsel %vm538, %v537, -inf
  %v550 = vmax.f32 %v542, %v549
  %v551 = vmax.f32 %v544, %v546
  %v552 = vmax.f32 %v548, %v550
  %v553 = vmax.f32 %v551, %v552
  %v554 = vrot.slane %v553, 4
  %v555 = vmax.f32 %v553, %v554
  %v556 = vrot.slane %v555, 2
  %v557 = vmax.f32 %v555, %v556
  %v558 = vrot.slane %v557, 1
  %v559 = vmax.f32 %v557, %v558
  %v560 = vsub.f32 %v530, %v559
  %v561 = vsub.f32 %v531, %v559
  %v562 = vsub.f32 %v532, %v559
  %v563 = vsub.f32 %v533, %v559
  %v564 = vsub.f32 %v534, %v559
  %v565 = vsub.f32 %v535, %v559
  %v566 = vsub.f32 %v536, %v559
  %v567 = vsub.f32 %v537, %v559
  %v568 = vmul.f32 %v560, 1.442695
  %v569 = vpow.pop %v568
  %v570 = vmul.f32 %v561, 1.442695
  %v571 = vpow.pop %v570
  %v572 = vmul.f32 %v562, 1.442695
  %v573 = vpow.pop %v572
  %v574 = vmul.f32 %v563, 1.442695
  %v575 = vpow.pop %v574
  %v576 = vmul.f32 %v564, 1.442695
  %v577 = vpow.pop %v576
  %v578 = vmul.f32 %v565, 1.442695
  %v579 = vpow.pop %v578
  %v580 = vmul.f32 %v566, 1.442695
  %v581 = vpow.pop %v580
  %v582 = vmul.f32 %v567, 1.442695
  %v583 = vpow.pop %v582
  %585 = vset.pattern.permute.xlu0 0
  %586 = vperm.xlu0 %585, %v569
  %v587 = vpop.permute.xlu0 %586
  %590 = vset.pattern.permute.xlu0 0
  %591 = vperm.xlu0 %590, %v571
  %v592 = vpop.permute.xlu0 %591
  %595 = vset.pattern.permute.xlu0 0
  %596 = vperm.xlu0 %595, %v573
  %v597 = vpop.permute.xlu0 %596
  %600 = vset.pattern.permute.xlu0 0
  %601 = vperm.xlu0 %600, %v575
  %v602 = vpop.permute.xlu0 %601
  %605 = vset.pattern.permute.xlu0 0
  %606 = vperm.xlu0 %605, %v577
  %v607 = vpop.permute.xlu0 %606
  %610 = vset.pattern.permute.xlu0 0
  %611 = vperm.xlu0 %610, %v579
  %v612 = vpop.permute.xlu0 %611
  %615 = vset.pattern.permute.xlu0 0
  %616 = vperm.xlu0 %615, %v581
  %v617 = vpop.permute.xlu0 %616
  %620 = vset.pattern.permute.xlu0 0
  %621 = vperm.xlu0 %620, %v583
  %v622 = vpop.permute.xlu0 %621
  %624 = vset.pattern.permute.xlu0 1
  %625 = vperm.xlu0 %624, %v569
  %v626 = vpop.permute.xlu0 %625
  %628 = vset.pattern.permute.xlu0 1
  %629 = vperm.xlu0 %628, %v571
  %v630 = vpop.permute.xlu0 %629
  %632 = vset.pattern.permute.xlu0 1
  %633 = vperm.xlu0 %632, %v573
  %v634 = vpop.permute.xlu0 %633
  %636 = vset.pattern.permute.xlu0 1
  %637 = vperm.xlu0 %636, %v575
  %v638 = vpop.permute.xlu0 %637
  %640 = vset.pattern.permute.xlu0 1
  %641 = vperm.xlu0 %640, %v577
  %v642 = vpop.permute.xlu0 %641
  %644 = vset.pattern.permute.xlu0 1
  %645 = vperm.xlu0 %644, %v579
  %v646 = vpop.permute.xlu0 %645
  %648 = vset.pattern.permute.xlu0 1
  %649 = vperm.xlu0 %648, %v581
  %v650 = vpop.permute.xlu0 %649
  %652 = vset.pattern.permute.xlu0 1
  %653 = vperm.xlu0 %652, %v583
  %v654 = vpop.permute.xlu0 %653
  %v656 = vsel %vm424, %v587, %v626
  %v657 = vsel %vm424, %v592, %v630
  %v658 = vsel %vm424, %v597, %v634
  %v659 = vsel %vm424, %v602, %v638
  %v660 = vsel %vm424, %v607, %v642
  %v661 = vsel %vm424, %v612, %v646
  %v662 = vsel %vm424, %v617, %v650
  %v663 = vsel %vm424, %v622, %v654
  %v664 = vmul.f32 %v656, %v390
  %v665 = vmul.f32 %v657, %v393
  %v666 = vmul.f32 %v658, %v396
  %v667 = vmul.f32 %v659, %v399
  %v668 = vmul.f32 %v660, %v402
  %v669 = vmul.f32 %v661, %v405
  %v670 = vmul.f32 %v662, %v408
  %v671 = vmul.f32 %v663, %v411
  %v673 = vsel %vm121, %v80, 0
  %v676 = vsel %vm121, %v81, 0
  %v679 = vsel %vm121, %v82, 0
  %v682 = vsel %vm121, %v83, 0
  %v685 = vsel %vm121, %v84, 0
  %v688 = vsel %vm121, %v85, 0
  %v691 = vsel %vm121, %v86, 0
  %v694 = vsel %vm121, %v87, 0
  %v697 = vsel %vm121, %v88, 0
  %v700 = vsel %vm121, %v89, 0
  %v703 = vsel %vm121, %v90, 0
  %v706 = vsel %vm121, %v91, 0
  %v709 = vsel %vm121, %v92, 0
  %v712 = vsel %vm121, %v93, 0
  %v715 = vsel %vm121, %v94, 0
  %v718 = vsel %vm121, %v95, 0
  %v721 = vsel %vm121, %v96, 0
  %v724 = vsel %vm121, %v97, 0
  %v727 = vsel %vm121, %v98, 0
  %v730 = vsel %vm121, %v99, 0
  %v733 = vsel %vm121, %v100, 0
  %v736 = vsel %vm121, %v101, 0
  %v739 = vsel %vm121, %v102, 0
  %v742 = vsel %vm121, %v103, 0
  %v745 = vsel %vm121, %v104, 0
  %v748 = vsel %vm121, %v105, 0
  %v751 = vsel %vm121, %v106, 0
  %v754 = vsel %vm121, %v107, 0
  %v757 = vsel %vm121, %v108, 0
  %v760 = vsel %vm121, %v109, 0
  %v763 = vsel %vm121, %v110, 0
  %v766 = vsel %vm121, %v111, 0
  %768 = vmatpush.msra.mxu0 0.0
  %769 = vmatpush.msra.mxu0 0.0
  %770 = vmatpush.msra.mxu0 0.0
  %771 = vmatpush.msra.mxu0 0.0
  %772 = vmatpush.msra.mxu0 0.0
  %773 = vmatpush.msra.mxu0 0.0
  %774 = vmatpush.msra.mxu0 0.0
  %775 = vmatpush.msra.mxu0 0.0
  %776 = vmatpush.msra.mxu0 %v671
  %777 = vmatpush.msra.mxu0 %v670
  %778 = vmatpush.msra.mxu0 %v669
  %779 = vmatpush.msra.mxu0 %v668
  %780 = vmatpush.msra.mxu0 %v667
  %781 = vmatpush.msra.mxu0 %v666
  %782 = vmatpush.msra.mxu0 %v665
  %783 = vmatpush.msra.mxu0 %v664
  %784 = vmatmul.f32.gmra.mxu0 %v673
  %v785 = vpop.f32.mrf.mxu0
  %v786 = vadd.f32 0.0, %v785
  %787 = vmatmul.f32.gmra.mxu0 %v676
  %v788 = vpop.f32.mrf.mxu0
  %v789 = vadd.f32 0.0, %v788
  %790 = vmatmul.f32.gmra.mxu0 %v679
  %v791 = vpop.f32.mrf.mxu0
  %v792 = vadd.f32 0.0, %v791
  %793 = vmatmul.f32.gmra.mxu0 %v682
  %v794 = vpop.f32.mrf.mxu0
  %v795 = vadd.f32 0.0, %v794
  %796 = vmatmul.f32.gmra.mxu0 %v685
  %v797 = vpop.f32.mrf.mxu0
  %v798 = vadd.f32 0.0, %v797
  %799 = vmatmul.f32.gmra.mxu0 %v688
  %v800 = vpop.f32.mrf.mxu0
  %v801 = vadd.f32 0.0, %v800
  %802 = vmatmul.f32.gmra.mxu0 %v691
  %v803 = vpop.f32.mrf.mxu0
  %v804 = vadd.f32 0.0, %v803
  %805 = vmatmul.f32.gmra.mxu0 %v694
  %v806 = vpop.f32.mrf.mxu0
  %v807 = vadd.f32 0.0, %v806
  %808 = vmatmul.f32.gmra.mxu0 %v697
  %v809 = vpop.f32.mrf.mxu0
  %v810 = vadd.f32 0.0, %v809
  %811 = vmatmul.f32.gmra.mxu0 %v700
  %v812 = vpop.f32.mrf.mxu0
  %v813 = vadd.f32 0.0, %v812
  %814 = vmatmul.f32.gmra.mxu0 %v703
  %v815 = vpop.f32.mrf.mxu0
  %v816 = vadd.f32 0.0, %v815
  %817 = vmatmul.f32.gmra.mxu0 %v706
  %v818 = vpop.f32.mrf.mxu0
  %v819 = vadd.f32 0.0, %v818
  %820 = vmatmul.f32.gmra.mxu0 %v709
  %v821 = vpop.f32.mrf.mxu0
  %v822 = vadd.f32 0.0, %v821
  %823 = vmatmul.f32.gmra.mxu0 %v712
  %v824 = vpop.f32.mrf.mxu0
  %v825 = vadd.f32 0.0, %v824
  %826 = vmatmul.f32.gmra.mxu0 %v715
  %v827 = vpop.f32.mrf.mxu0
  %v828 = vadd.f32 0.0, %v827
  %829 = vmatmul.f32.gmra.mxu0 %v718
  %v830 = vpop.f32.mrf.mxu0
  %v831 = vadd.f32 0.0, %v830
  %832 = vmatmul.f32.gmra.mxu0 %v721
  %v833 = vpop.f32.mrf.mxu0
  %v834 = vadd.f32 0.0, %v833
  %835 = vmatmul.f32.gmra.mxu0 %v724
  %v836 = vpop.f32.mrf.mxu0
  %v837 = vadd.f32 0.0, %v836
  %838 = vmatmul.f32.gmra.mxu0 %v727
  %v839 = vpop.f32.mrf.mxu0
  %v840 = vadd.f32 0.0, %v839
  %841 = vmatmul.f32.gmra.mxu0 %v730
  %v842 = vpop.f32.mrf.mxu0
  %v843 = vadd.f32 0.0, %v842
  %844 = vmatmul.f32.gmra.mxu0 %v733
  %v845 = vpop.f32.mrf.mxu0
  %v846 = vadd.f32 0.0, %v845
  %847 = vmatmul.f32.gmra.mxu0 %v736
  %v848 = vpop.f32.mrf.mxu0
  %v849 = vadd.f32 0.0, %v848
  %850 = vmatmul.f32.gmra.mxu0 %v739
  %v851 = vpop.f32.mrf.mxu0
  %v852 = vadd.f32 0.0, %v851
  %853 = vmatmul.f32.gmra.mxu0 %v742
  %v854 = vpop.f32.mrf.mxu0
  %v855 = vadd.f32 0.0, %v854
  %856 = vmatmul.f32.gmra.mxu0 %v745
  %v857 = vpop.f32.mrf.mxu0
  %v858 = vadd.f32 0.0, %v857
  %859 = vmatmul.f32.gmra.mxu0 %v748
  %v860 = vpop.f32.mrf.mxu0
  %v861 = vadd.f32 0.0, %v860
  %862 = vmatmul.f32.gmra.mxu0 %v751
  %v863 = vpop.f32.mrf.mxu0
  %v864 = vadd.f32 0.0, %v863
  %865 = vmatmul.f32.gmra.mxu0 %v754
  %v866 = vpop.f32.mrf.mxu0
  %v867 = vadd.f32 0.0, %v866
  %868 = vmatmul.f32.gmra.mxu0 %v757
  %v869 = vpop.f32.mrf.mxu0
  %v870 = vadd.f32 0.0, %v869
  %871 = vmatmul.f32.gmra.mxu0 %v760
  %v872 = vpop.f32.mrf.mxu0
  %v873 = vadd.f32 0.0, %v872
  %874 = vmatmul.f32.gmra.mxu0 %v763
  %v875 = vpop.f32.mrf.mxu0
  %v876 = vadd.f32 0.0, %v875
  %877 = vmatmul.f32.gmra.mxu0 %v766
  %v878 = vpop.f32.mrf.mxu0
  %v879 = vadd.f32 0.0, %v878
  %880 = vdwg.mxu0
  %881 = vmatpush.msra.mxu0 0.0
  %882 = vmatpush.msra.mxu0 0.0
  %883 = vmatpush.msra.mxu0 0.0
  %884 = vmatpush.msra.mxu0 0.0
  %885 = vmatpush.msra.mxu0 0.0
  %886 = vmatpush.msra.mxu0 0.0
  %887 = vmatpush.msra.mxu0 0.0
  %888 = vmatpush.msra.mxu0 0.0
  %889 = vmatpush.msra.mxu0 %v583
  %890 = vmatpush.msra.mxu0 %v581
  %891 = vmatpush.msra.mxu0 %v579
  %892 = vmatpush.msra.mxu0 %v577
  %893 = vmatpush.msra.mxu0 %v575
  %894 = vmatpush.msra.mxu0 %v573
  %895 = vmatpush.msra.mxu0 %v571
  %896 = vmatpush.msra.mxu0 %v569
  %897 = vmatmul.f32.gmra.mxu0 %v673
  %v898 = vpop.f32.mrf.mxu0
  %v899 = vadd.f32 1e-16, %v898
  %900 = vmatmul.f32.gmra.mxu0 %v676
  %v901 = vpop.f32.mrf.mxu0
  %v902 = vadd.f32 1e-16, %v901
  %903 = vmatmul.f32.gmra.mxu0 %v679
  %v904 = vpop.f32.mrf.mxu0
  %v905 = vadd.f32 1e-16, %v904
  %906 = vmatmul.f32.gmra.mxu0 %v682
  %v907 = vpop.f32.mrf.mxu0
  %v908 = vadd.f32 1e-16, %v907
  %909 = vmatmul.f32.gmra.mxu0 %v685
  %v910 = vpop.f32.mrf.mxu0
  %v911 = vadd.f32 1e-16, %v910
  %912 = vmatmul.f32.gmra.mxu0 %v688
  %v913 = vpop.f32.mrf.mxu0
  %v914 = vadd.f32 1e-16, %v913
  %915 = vmatmul.f32.gmra.mxu0 %v691
  %v916 = vpop.f32.mrf.mxu0
  %v917 = vadd.f32 1e-16, %v916
  %918 = vmatmul.f32.gmra.mxu0 %v694
  %v919 = vpop.f32.mrf.mxu0
  %v920 = vadd.f32 1e-16, %v919
  %921 = vmatmul.f32.gmra.mxu0 %v697
  %v922 = vpop.f32.mrf.mxu0
  %v923 = vadd.f32 1e-16, %v922
  %924 = vmatmul.f32.gmra.mxu0 %v700
  %v925 = vpop.f32.mrf.mxu0
  %v926 = vadd.f32 1e-16, %v925
  %927 = vmatmul.f32.gmra.mxu0 %v703
  %v928 = vpop.f32.mrf.mxu0
  %v929 = vadd.f32 1e-16, %v928
  %930 = vmatmul.f32.gmra.mxu0 %v706
  %v931 = vpop.f32.mrf.mxu0
  %v932 = vadd.f32 1e-16, %v931
  %933 = vmatmul.f32.gmra.mxu0 %v709
  %v934 = vpop.f32.mrf.mxu0
  %v935 = vadd.f32 1e-16, %v934
  %936 = vmatmul.f32.gmra.mxu0 %v712
  %v937 = vpop.f32.mrf.mxu0
  %v938 = vadd.f32 1e-16, %v937
  %939 = vmatmul.f32.gmra.mxu0 %v715
  %v940 = vpop.f32.mrf.mxu0
  %v941 = vadd.f32 1e-16, %v940
  %942 = vmatmul.f32.gmra.mxu0 %v718
  %v943 = vpop.f32.mrf.mxu0
  %v944 = vadd.f32 1e-16, %v943
  %945 = vmatmul.f32.gmra.mxu0 %v721
  %v946 = vpop.f32.mrf.mxu0
  %v947 = vadd.f32 1e-16, %v946
  %948 = vmatmul.f32.gmra.mxu0 %v724
  %v949 = vpop.f32.mrf.mxu0
  %v950 = vadd.f32 1e-16, %v949
  %951 = vmatmul.f32.gmra.mxu0 %v727
  %v952 = vpop.f32.mrf.mxu0
  %v953 = vadd.f32 1e-16, %v952
  %954 = vmatmul.f32.gmra.mxu0 %v730
  %v955 = vpop.f32.mrf.mxu0
  %v956 = vadd.f32 1e-16, %v955
  %957 = vmatmul.f32.gmra.mxu0 %v733
  %v958 = vpop.f32.mrf.mxu0
  %v959 = vadd.f32 1e-16, %v958
  %960 = vmatmul.f32.gmra.mxu0 %v736
  %v961 = vpop.f32.mrf.mxu0
  %v962 = vadd.f32 1e-16, %v961
  %963 = vmatmul.f32.gmra.mxu0 %v739
  %v964 = vpop.f32.mrf.mxu0
  %v965 = vadd.f32 1e-16, %v964
  %966 = vmatmul.f32.gmra.mxu0 %v742
  %v967 = vpop.f32.mrf.mxu0
  %v968 = vadd.f32 1e-16, %v967
  %969 = vmatmul.f32.gmra.mxu0 %v745
  %v970 = vpop.f32.mrf.mxu0
  %v971 = vadd.f32 1e-16, %v970
  %972 = vmatmul.f32.gmra.mxu0 %v748
  %v973 = vpop.f32.mrf.mxu0
  %v974 = vadd.f32 1e-16, %v973
  %975 = vmatmul.f32.gmra.mxu0 %v751
  %v976 = vpop.f32.mrf.mxu0
  %v977 = vadd.f32 1e-16, %v976
  %978 = vmatmul.f32.gmra.mxu0 %v754
  %v979 = vpop.f32.mrf.mxu0
  %v980 = vadd.f32 1e-16, %v979
  %981 = vmatmul.f32.gmra.mxu0 %v757
  %v982 = vpop.f32.mrf.mxu0
  %v983 = vadd.f32 1e-16, %v982
  %984 = vmatmul.f32.gmra.mxu0 %v760
  %v985 = vpop.f32.mrf.mxu0
  %v986 = vadd.f32 1e-16, %v985
  %987 = vmatmul.f32.gmra.mxu0 %v763
  %v988 = vpop.f32.mrf.mxu0
  %v989 = vadd.f32 1e-16, %v988
  %990 = vmatmul.f32.gmra.mxu0 %v766
  %v991 = vpop.f32.mrf.mxu0
  %v992 = vadd.f32 1e-16, %v991
  %993 = vdwg.mxu0
  %v994 = vrcp.pop %v899
  %v995 = vmul.f32 %v899, %v994
  %v996 = vsub.f32 1.0, %v995
  %v997 = vmul.f32 %v994, %v996
  %v998 = vadd.f32 %v994, %v997
  %vm999 = vweird.f32 %v899
  %vm1000 = vweird.f32 %v994
  %vm1001 = vmor %vm999, %vm1000
  %v1002 = vsel %vm1001, %v994, %v998
  %v1003 = vand.u32 2147483647, %v899
  %vm1004 = vcmp.eq.f32.partialorder %v1003, 8.507059e+37
  %v1005 = vand.u32 %v899, 2147483648
  %v1006 = vor.u32 1.1754944e-38, %v1005
  %v1007 = vsel %vm1004, %v1006, %v1002
  %v1008 = vmul.f32 1.0, %v1007
  %v1009 = vrcp.pop %v902
  %v1010 = vmul.f32 %v902, %v1009
  %v1011 = vsub.f32 1.0, %v1010
  %v1012 = vmul.f32 %v1009, %v1011
  %v1013 = vadd.f32 %v1009, %v1012
  %vm1014 = vweird.f32 %v902
  %vm1015 = vweird.f32 %v1009
  %vm1016 = vmor %vm1014, %vm1015
  %v1017 = vsel %vm1016, %v1009, %v1013
  %v1018 = vand.u32 2147483647, %v902
  %vm1019 = vcmp.eq.f32.partialorder %v1018, 8.507059e+37
  %v1020 = vand.u32 %v902, 2147483648
  %v1021 = vor.u32 1.1754944e-38, %v1020
  %v1022 = vsel %vm1019, %v1021, %v1017
  %v1023 = vmul.f32 1.0, %v1022
  %v1024 = vrcp.pop %v905
  %v1025 = vmul.f32 %v905, %v1024
  %v1026 = vsub.f32 1.0, %v1025
  %v1027 = vmul.f32 %v1024, %v1026
  %v1028 = vadd.f32 %v1024, %v1027
  %vm1029 = vweird.f32 %v905
  %vm1030 = vweird.f32 %v1024
  %vm1031 = vmor %vm1029, %vm1030
  %v1032 = vsel %vm1031, %v1024, %v1028
  %v1033 = vand.u32 2147483647, %v905
  %vm1034 = vcmp.eq.f32.partialorder %v1033, 8.507059e+37
  %v1035 = vand.u32 %v905, 2147483648
  %v1036 = vor.u32 1.1754944e-38, %v1035
  %v1037 = vsel %vm1034, %v1036, %v1032
  %v1038 = vmul.f32 1.0, %v1037
  %v1039 = vrcp.pop %v908
  %v1040 = vmul.f32 %v908, %v1039
  %v1041 = vsub.f32 1.0, %v1040
  %v1042 = vmul.f32 %v1039, %v1041
  %v1043 = vadd.f32 %v1039, %v1042
  %vm1044 = vweird.f32 %v908
  %vm1045 = vweird.f32 %v1039
  %vm1046 = vmor %vm1044, %vm1045
  %v1047 = vsel %vm1046, %v1039, %v1043
  %v1048 = vand.u32 2147483647, %v908
  %vm1049 = vcmp.eq.f32.partialorder %v1048, 8.507059e+37
  %v1050 = vand.u32 %v908, 2147483648
  %v1051 = vor.u32 1.1754944e-38, %v1050
  %v1052 = vsel %vm1049, %v1051, %v1047
  %v1053 = vmul.f32 1.0, %v1052
  %v1054 = vrcp.pop %v911
  %v1055 = vmul.f32 %v911, %v1054
  %v1056 = vsub.f32 1.0, %v1055
  %v1057 = vmul.f32 %v1054, %v1056
  %v1058 = vadd.f32 %v1054, %v1057
  %vm1059 = vweird.f32 %v911
  %vm1060 = vweird.f32 %v1054
  %vm1061 = vmor %vm1059, %vm1060
  %v1062 = vsel %vm1061, %v1054, %v1058
  %v1063 = vand.u32 2147483647, %v911
  %vm1064 = vcmp.eq.f32.partialorder %v1063, 8.507059e+37
  %v1065 = vand.u32 %v911, 2147483648
  %v1066 = vor.u32 1.1754944e-38, %v1065
  %v1067 = vsel %vm1064, %v1066, %v1062
  %v1068 = vmul.f32 1.0, %v1067
  %v1069 = vrcp.pop %v914
  %v1070 = vmul.f32 %v914, %v1069
  %v1071 = vsub.f32 1.0, %v1070
  %v1072 = vmul.f32 %v1069, %v1071
  %v1073 = vadd.f32 %v1069, %v1072
  %vm1074 = vweird.f32 %v914
  %vm1075 = vweird.f32 %v1069
  %vm1076 = vmor %vm1074, %vm1075
  %v1077 = vsel %vm1076, %v1069, %v1073
  %v1078 = vand.u32 2147483647, %v914
  %vm1079 = vcmp.eq.f32.partialorder %v1078, 8.507059e+37
  %v1080 = vand.u32 %v914, 2147483648
  %v1081 = vor.u32 1.1754944e-38, %v1080
  %v1082 = vsel %vm1079, %v1081, %v1077
  %v1083 = vmul.f32 1.0, %v1082
  %v1084 = vrcp.pop %v917
  %v1085 = vmul.f32 %v917, %v1084
  %v1086 = vsub.f32 1.0, %v1085
  %v1087 = vmul.f32 %v1084, %v1086
  %v1088 = vadd.f32 %v1084, %v1087
  %vm1089 = vweird.f32 %v917
  %vm1090 = vweird.f32 %v1084
  %vm1091 = vmor %vm1089, %vm1090
  %v1092 = vsel %vm1091, %v1084, %v1088
  %v1093 = vand.u32 2147483647, %v917
  %vm1094 = vcmp.eq.f32.partialorder %v1093, 8.507059e+37
  %v1095 = vand.u32 %v917, 2147483648
  %v1096 = vor.u32 1.1754944e-38, %v1095
  %v1097 = vsel %vm1094, %v1096, %v1092
  %v1098 = vmul.f32 1.0, %v1097
  %v1099 = vrcp.pop %v920
  %v1100 = vmul.f32 %v920, %v1099
  %v1101 = vsub.f32 1.0, %v1100
  %v1102 = vmul.f32 %v1099, %v1101
  %v1103 = vadd.f32 %v1099, %v1102
  %vm1104 = vweird.f32 %v920
  %vm1105 = vweird.f32 %v1099
  %vm1106 = vmor %vm1104, %vm1105
  %v1107 = vsel %vm1106, %v1099, %v1103
  %v1108 = vand.u32 2147483647, %v920
  %vm1109 = vcmp.eq.f32.partialorder %v1108, 8.507059e+37
  %v1110 = vand.u32 %v920, 2147483648
  %v1111 = vor.u32 1.1754944e-38, %v1110
  %v1112 = vsel %vm1109, %v1111, %v1107
  %v1113 = vmul.f32 1.0, %v1112
  %v1114 = vrcp.pop %v923
  %v1115 = vmul.f32 %v923, %v1114
  %v1116 = vsub.f32 1.0, %v1115
  %v1117 = vmul.f32 %v1114, %v1116
  %v1118 = vadd.f32 %v1114, %v1117
  %vm1119 = vweird.f32 %v923
  %vm1120 = vweird.f32 %v1114
  %vm1121 = vmor %vm1119, %vm1120
  %v1122 = vsel %vm1121, %v1114, %v1118
  %v1123 = vand.u32 2147483647, %v923
  %vm1124 = vcmp.eq.f32.partialorder %v1123, 8.507059e+37
  %v1125 = vand.u32 %v923, 2147483648
  %v1126 = vor.u32 1.1754944e-38, %v1125
  %v1127 = vsel %vm1124, %v1126, %v1122
  %v1128 = vmul.f32 1.0, %v1127
  %v1129 = vrcp.pop %v926
  %v1130 = vmul.f32 %v926, %v1129
  %v1131 = vsub.f32 1.0, %v1130
  %v1132 = vmul.f32 %v1129, %v1131
  %v1133 = vadd.f32 %v1129, %v1132
  %vm1134 = vweird.f32 %v926
  %vm1135 = vweird.f32 %v1129
  %vm1136 = vmor %vm1134, %vm1135
  %v1137 = vsel %vm1136, %v1129, %v1133
  %v1138 = vand.u32 2147483647, %v926
  %vm1139 = vcmp.eq.f32.partialorder %v1138, 8.507059e+37
  %v1140 = vand.u32 %v926, 2147483648
  %v1141 = vor.u32 1.1754944e-38, %v1140
  %v1142 = vsel %vm1139, %v1141, %v1137
  %v1143 = vmul.f32 1.0, %v1142
  %v1144 = vrcp.pop %v929
  %v1145 = vmul.f32 %v929, %v1144
  %v1146 = vsub.f32 1.0, %v1145
  %v1147 = vmul.f32 %v1144, %v1146
  %v1148 = vadd.f32 %v1144, %v1147
  %vm1149 = vweird.f32 %v929
  %vm1150 = vweird.f32 %v1144
  %vm1151 = vmor %vm1149, %vm1150
  %v1152 = vsel %vm1151, %v1144, %v1148
  %v1153 = vand.u32 2147483647, %v929
  %vm1154 = vcmp.eq.f32.partialorder %v1153, 8.507059e+37
  %v1155 = vand.u32 %v929, 2147483648
  %v1156 = vor.u32 1.1754944e-38, %v1155
  %v1157 = vsel %vm1154, %v1156, %v1152
  %v1158 = vmul.f32 1.0, %v1157
  %v1159 = vrcp.pop %v932
  %v1160 = vmul.f32 %v932, %v1159
  %v1161 = vsub.f32 1.0, %v1160
  %v1162 = vmul.f32 %v1159, %v1161
  %v1163 = vadd.f32 %v1159, %v1162
  %vm1164 = vweird.f32 %v932
  %vm1165 = vweird.f32 %v1159
  %vm1166 = vmor %vm1164, %vm1165
  %v1167 = vsel %vm1166, %v1159, %v1163
  %v1168 = vand.u32 2147483647, %v932
  %vm1169 = vcmp.eq.f32.partialorder %v1168, 8.507059e+37
  %v1170 = vand.u32 %v932, 2147483648
  %v1171 = vor.u32 1.1754944e-38, %v1170
  %v1172 = vsel %vm1169, %v1171, %v1167
  %v1173 = vmul.f32 1.0, %v1172
  %v1174 = vrcp.pop %v935
  %v1175 = vmul.f32 %v935, %v1174
  %v1176 = vsub.f32 1.0, %v1175
  %v1177 = vmul.f32 %v1174, %v1176
  %v1178 = vadd.f32 %v1174, %v1177
  %vm1179 = vweird.f32 %v935
  %vm1180 = vweird.f32 %v1174
  %vm1181 = vmor %vm1179, %vm1180
  %v1182 = vsel %vm1181, %v1174, %v1178
  %v1183 = vand.u32 2147483647, %v935
  %vm1184 = vcmp.eq.f32.partialorder %v1183, 8.507059e+37
  %v1185 = vand.u32 %v935, 2147483648
  %v1186 = vor.u32 1.1754944e-38, %v1185
  %v1187 = vsel %vm1184, %v1186, %v1182
  %v1188 = vmul.f32 1.0, %v1187
  %v1189 = vrcp.pop %v938
  %v1190 = vmul.f32 %v938, %v1189
  %v1191 = vsub.f32 1.0, %v1190
  %v1192 = vmul.f32 %v1189, %v1191
  %v1193 = vadd.f32 %v1189, %v1192
  %vm1194 = vweird.f32 %v938
  %vm1195 = vweird.f32 %v1189
  %vm1196 = vmor %vm1194, %vm1195
  %v1197 = vsel %vm1196, %v1189, %v1193
  %v1198 = vand.u32 2147483647, %v938
  %vm1199 = vcmp.eq.f32.partialorder %v1198, 8.507059e+37
  %v1200 = vand.u32 %v938, 2147483648
  %v1201 = vor.u32 1.1754944e-38, %v1200
  %v1202 = vsel %vm1199, %v1201, %v1197
  %v1203 = vmul.f32 1.0, %v1202
  %v1204 = vrcp.pop %v941
  %v1205 = vmul.f32 %v941, %v1204
  %v1206 = vsub.f32 1.0, %v1205
  %v1207 = vmul.f32 %v1204, %v1206
  %v1208 = vadd.f32 %v1204, %v1207
  %vm1209 = vweird.f32 %v941
  %vm1210 = vweird.f32 %v1204
  %vm1211 = vmor %vm1209, %vm1210
  %v1212 = vsel %vm1211, %v1204, %v1208
  %v1213 = vand.u32 2147483647, %v941
  %vm1214 = vcmp.eq.f32.partialorder %v1213, 8.507059e+37
  %v1215 = vand.u32 %v941, 2147483648
  %v1216 = vor.u32 1.1754944e-38, %v1215
  %v1217 = vsel %vm1214, %v1216, %v1212
  %v1218 = vmul.f32 1.0, %v1217
  %v1219 = vrcp.pop %v944
  %v1220 = vmul.f32 %v944, %v1219
  %v1221 = vsub.f32 1.0, %v1220
  %v1222 = vmul.f32 %v1219, %v1221
  %v1223 = vadd.f32 %v1219, %v1222
  %vm1224 = vweird.f32 %v944
  %vm1225 = vweird.f32 %v1219
  %vm1226 = vmor %vm1224, %vm1225
  %v1227 = vsel %vm1226, %v1219, %v1223
  %v1228 = vand.u32 2147483647, %v944
  %vm1229 = vcmp.eq.f32.partialorder %v1228, 8.507059e+37
  %v1230 = vand.u32 %v944, 2147483648
  %v1231 = vor.u32 1.1754944e-38, %v1230
  %v1232 = vsel %vm1229, %v1231, %v1227
  %v1233 = vmul.f32 1.0, %v1232
  %v1234 = vrcp.pop %v947
  %v1235 = vmul.f32 %v947, %v1234
  %v1236 = vsub.f32 1.0, %v1235
  %v1237 = vmul.f32 %v1234, %v1236
  %v1238 = vadd.f32 %v1234, %v1237
  %vm1239 = vweird.f32 %v947
  %vm1240 = vweird.f32 %v1234
  %vm1241 = vmor %vm1239, %vm1240
  %v1242 = vsel %vm1241, %v1234, %v1238
  %v1243 = vand.u32 2147483647, %v947
  %vm1244 = vcmp.eq.f32.partialorder %v1243, 8.507059e+37
  %v1245 = vand.u32 %v947, 2147483648
  %v1246 = vor.u32 1.1754944e-38, %v1245
  %v1247 = vsel %vm1244, %v1246, %v1242
  %v1248 = vmul.f32 1.0, %v1247
  %v1249 = vrcp.pop %v950
  %v1250 = vmul.f32 %v950, %v1249
  %v1251 = vsub.f32 1.0, %v1250
  %v1252 = vmul.f32 %v1249, %v1251
  %v1253 = vadd.f32 %v1249, %v1252
  %vm1254 = vweird.f32 %v950
  %vm1255 = vweird.f32 %v1249
  %vm1256 = vmor %vm1254, %vm1255
  %v1257 = vsel %vm1256, %v1249, %v1253
  %v1258 = vand.u32 2147483647, %v950
  %vm1259 = vcmp.eq.f32.partialorder %v1258, 8.507059e+37
  %v1260 = vand.u32 %v950, 2147483648
  %v1261 = vor.u32 1.1754944e-38, %v1260
  %v1262 = vsel %vm1259, %v1261, %v1257
  %v1263 = vmul.f32 1.0, %v1262
  %v1264 = vrcp.pop %v953
  %v1265 = vmul.f32 %v953, %v1264
  %v1266 = vsub.f32 1.0, %v1265
  %v1267 = vmul.f32 %v1264, %v1266
  %v1268 = vadd.f32 %v1264, %v1267
  %vm1269 = vweird.f32 %v953
  %vm1270 = vweird.f32 %v1264
  %vm1271 = vmor %vm1269, %vm1270
  %v1272 = vsel %vm1271, %v1264, %v1268
  %v1273 = vand.u32 2147483647, %v953
  %vm1274 = vcmp.eq.f32.partialorder %v1273, 8.507059e+37
  %v1275 = vand.u32 %v953, 2147483648
  %v1276 = vor.u32 1.1754944e-38, %v1275
  %v1277 = vsel %vm1274, %v1276, %v1272
  %v1278 = vmul.f32 1.0, %v1277
  %v1279 = vrcp.pop %v956
  %v1280 = vmul.f32 %v956, %v1279
  %v1281 = vsub.f32 1.0, %v1280
  %v1282 = vmul.f32 %v1279, %v1281
  %v1283 = vadd.f32 %v1279, %v1282
  %vm1284 = vweird.f32 %v956
  %vm1285 = vweird.f32 %v1279
  %vm1286 = vmor %vm1284, %vm1285
  %v1287 = vsel %vm1286, %v1279, %v1283
  %v1288 = vand.u32 2147483647, %v956
  %vm1289 = vcmp.eq.f32.partialorder %v1288, 8.507059e+37
  %v1290 = vand.u32 %v956, 2147483648
  %v1291 = vor.u32 1.1754944e-38, %v1290
  %v1292 = vsel %vm1289, %v1291, %v1287
  %v1293 = vmul.f32 1.0, %v1292
  %v1294 = vrcp.pop %v959
  %v1295 = vmul.f32 %v959, %v1294
  %v1296 = vsub.f32 1.0, %v1295
  %v1297 = vmul.f32 %v1294, %v1296
  %v1298 = vadd.f32 %v1294, %v1297
  %vm1299 = vweird.f32 %v959
  %vm1300 = vweird.f32 %v1294
  %vm1301 = vmor %vm1299, %vm1300
  %v1302 = vsel %vm1301, %v1294, %v1298
  %v1303 = vand.u32 2147483647, %v959
  %vm1304 = vcmp.eq.f32.partialorder %v1303, 8.507059e+37
  %v1305 = vand.u32 %v959, 2147483648
  %v1306 = vor.u32 1.1754944e-38, %v1305
  %v1307 = vsel %vm1304, %v1306, %v1302
  %v1308 = vmul.f32 1.0, %v1307
  %v1309 = vrcp.pop %v962
  %v1310 = vmul.f32 %v962, %v1309
  %v1311 = vsub.f32 1.0, %v1310
  %v1312 = vmul.f32 %v1309, %v1311
  %v1313 = vadd.f32 %v1309, %v1312
  %vm1314 = vweird.f32 %v962
  %vm1315 = vweird.f32 %v1309
  %vm1316 = vmor %vm1314, %vm1315
  %v1317 = vsel %vm1316, %v1309, %v1313
  %v1318 = vand.u32 2147483647, %v962
  %vm1319 = vcmp.eq.f32.partialorder %v1318, 8.507059e+37
  %v1320 = vand.u32 %v962, 2147483648
  %v1321 = vor.u32 1.1754944e-38, %v1320
  %v1322 = vsel %vm1319, %v1321, %v1317
  %v1323 = vmul.f32 1.0, %v1322
  %v1324 = vrcp.pop %v965
  %v1325 = vmul.f32 %v965, %v1324
  %v1326 = vsub.f32 1.0, %v1325
  %v1327 = vmul.f32 %v1324, %v1326
  %v1328 = vadd.f32 %v1324, %v1327
  %vm1329 = vweird.f32 %v965
  %vm1330 = vweird.f32 %v1324
  %vm1331 = vmor %vm1329, %vm1330
  %v1332 = vsel %vm1331, %v1324, %v1328
  %v1333 = vand.u32 2147483647, %v965
  %vm1334 = vcmp.eq.f32.partialorder %v1333, 8.507059e+37
  %v1335 = vand.u32 %v965, 2147483648
  %v1336 = vor.u32 1.1754944e-38, %v1335
  %v1337 = vsel %vm1334, %v1336, %v1332
  %v1338 = vmul.f32 1.0, %v1337
  %v1339 = vrcp.pop %v968
  %v1340 = vmul.f32 %v968, %v1339
  %v1341 = vsub.f32 1.0, %v1340
  %v1342 = vmul.f32 %v1339, %v1341
  %v1343 = vadd.f32 %v1339, %v1342
  %vm1344 = vweird.f32 %v968
  %vm1345 = vweird.f32 %v1339
  %vm1346 = vmor %vm1344, %vm1345
  %v1347 = vsel %vm1346, %v1339, %v1343
  %v1348 = vand.u32 2147483647, %v968
  %vm1349 = vcmp.eq.f32.partialorder %v1348, 8.507059e+37
  %v1350 = vand.u32 %v968, 2147483648
  %v1351 = vor.u32 1.1754944e-38, %v1350
  %v1352 = vsel %vm1349, %v1351, %v1347
  %v1353 = vmul.f32 1.0, %v1352
  %v1354 = vrcp.pop %v971
  %v1355 = vmul.f32 %v971, %v1354
  %v1356 = vsub.f32 1.0, %v1355
  %v1357 = vmul.f32 %v1354, %v1356
  %v1358 = vadd.f32 %v1354, %v1357
  %vm1359 = vweird.f32 %v971
  %vm1360 = vweird.f32 %v1354
  %vm1361 = vmor %vm1359, %vm1360
  %v1362 = vsel %vm1361, %v1354, %v1358
  %v1363 = vand.u32 2147483647, %v971
  %vm1364 = vcmp.eq.f32.partialorder %v1363, 8.507059e+37
  %v1365 = vand.u32 %v971, 2147483648
  %v1366 = vor.u32 1.1754944e-38, %v1365
  %v1367 = vsel %vm1364, %v1366, %v1362
  %v1368 = vmul.f32 1.0, %v1367
  %v1369 = vrcp.pop %v974
  %v1370 = vmul.f32 %v974, %v1369
  %v1371 = vsub.f32 1.0, %v1370
  %v1372 = vmul.f32 %v1369, %v1371
  %v1373 = vadd.f32 %v1369, %v1372
  %vm1374 = vweird.f32 %v974
  %vm1375 = vweird.f32 %v1369
  %vm1376 = vmor %vm1374, %vm1375
  %v1377 = vsel %vm1376, %v1369, %v1373
  %v1378 = vand.u32 2147483647, %v974
  %vm1379 = vcmp.eq.f32.partialorder %v1378, 8.507059e+37
  %v1380 = vand.u32 %v974, 2147483648
  %v1381 = vor.u32 1.1754944e-38, %v1380
  %v1382 = vsel %vm1379, %v1381, %v1377
  %v1383 = vmul.f32 1.0, %v1382
  %v1384 = vrcp.pop %v977
  %v1385 = vmul.f32 %v977, %v1384
  %v1386 = vsub.f32 1.0, %v1385
  %v1387 = vmul.f32 %v1384, %v1386
  %v1388 = vadd.f32 %v1384, %v1387
  %vm1389 = vweird.f32 %v977
  %vm1390 = vweird.f32 %v1384
  %vm1391 = vmor %vm1389, %vm1390
  %v1392 = vsel %vm1391, %v1384, %v1388
  %v1393 = vand.u32 2147483647, %v977
  %vm1394 = vcmp.eq.f32.partialorder %v1393, 8.507059e+37
  %v1395 = vand.u32 %v977, 2147483648
  %v1396 = vor.u32 1.1754944e-38, %v1395
  %v1397 = vsel %vm1394, %v1396, %v1392
  %v1398 = vmul.f32 1.0, %v1397
  %v1399 = vrcp.pop %v980
  %v1400 = vmul.f32 %v980, %v1399
  %v1401 = vsub.f32 1.0, %v1400
  %v1402 = vmul.f32 %v1399, %v1401
  %v1403 = vadd.f32 %v1399, %v1402
  %vm1404 = vweird.f32 %v980
  %vm1405 = vweird.f32 %v1399
  %vm1406 = vmor %vm1404, %vm1405
  %v1407 = vsel %vm1406, %v1399, %v1403
  %v1408 = vand.u32 2147483647, %v980
  %vm1409 = vcmp.eq.f32.partialorder %v1408, 8.507059e+37
  %v1410 = vand.u32 %v980, 2147483648
  %v1411 = vor.u32 1.1754944e-38, %v1410
  %v1412 = vsel %vm1409, %v1411, %v1407
  %v1413 = vmul.f32 1.0, %v1412
  %v1414 = vrcp.pop %v983
  %v1415 = vmul.f32 %v983, %v1414
  %v1416 = vsub.f32 1.0, %v1415
  %v1417 = vmul.f32 %v1414, %v1416
  %v1418 = vadd.f32 %v1414, %v1417
  %vm1419 = vweird.f32 %v983
  %vm1420 = vweird.f32 %v1414
  %vm1421 = vmor %vm1419, %vm1420
  %v1422 = vsel %vm1421, %v1414, %v1418
  %v1423 = vand.u32 2147483647, %v983
  %vm1424 = vcmp.eq.f32.partialorder %v1423, 8.507059e+37
  %v1425 = vand.u32 %v983, 2147483648
  %v1426 = vor.u32 1.1754944e-38, %v1425
  %v1427 = vsel %vm1424, %v1426, %v1422
  %v1428 = vmul.f32 1.0, %v1427
  %v1429 = vrcp.pop %v986
  %v1430 = vmul.f32 %v986, %v1429
  %v1431 = vsub.f32 1.0, %v1430
  %v1432 = vmul.f32 %v1429, %v1431
  %v1433 = vadd.f32 %v1429, %v1432
  %vm1434 = vweird.f32 %v986
  %vm1435 = vweird.f32 %v1429
  %vm1436 = vmor %vm1434, %vm1435
  %v1437 = vsel %vm1436, %v1429, %v1433
  %v1438 = vand.u32 2147483647, %v986
  %vm1439 = vcmp.eq.f32.partialorder %v1438, 8.507059e+37
  %v1440 = vand.u32 %v986, 2147483648
  %v1441 = vor.u32 1.1754944e-38, %v1440
  %v1442 = vsel %vm1439, %v1441, %v1437
  %v1443 = vmul.f32 1.0, %v1442
  %v1444 = vrcp.pop %v989
  %v1445 = vmul.f32 %v989, %v1444
  %v1446 = vsub.f32 1.0, %v1445
  %v1447 = vmul.f32 %v1444, %v1446
  %v1448 = vadd.f32 %v1444, %v1447
  %vm1449 = vweird.f32 %v989
  %vm1450 = vweird.f32 %v1444
  %vm1451 = vmor %vm1449, %vm1450
  %v1452 = vsel %vm1451, %v1444, %v1448
  %v1453 = vand.u32 2147483647, %v989
  %vm1454 = vcmp.eq.f32.partialorder %v1453, 8.507059e+37
  %v1455 = vand.u32 %v989, 2147483648
  %v1456 = vor.u32 1.1754944e-38, %v1455
  %v1457 = vsel %vm1454, %v1456, %v1452
  %v1458 = vmul.f32 1.0, %v1457
  %v1459 = vrcp.pop %v992
  %v1460 = vmul.f32 %v992, %v1459
  %v1461 = vsub.f32 1.0, %v1460
  %v1462 = vmul.f32 %v1459, %v1461
  %v1463 = vadd.f32 %v1459, %v1462
  %vm1464 = vweird.f32 %v992
  %vm1465 = vweird.f32 %v1459
  %vm1466 = vmor %vm1464, %vm1465
  %v1467 = vsel %vm1466, %v1459, %v1463
  %v1468 = vand.u32 2147483647, %v992
  %vm1469 = vcmp.eq.f32.partialorder %v1468, 8.507059e+37
  %v1470 = vand.u32 %v992, 2147483648
  %v1471 = vor.u32 1.1754944e-38, %v1470
  %v1472 = vsel %vm1469, %v1471, %v1467
  %v1473 = vmul.f32 1.0, %v1472
  %1475 = vset.pattern.permute.xlu0 0
  %1476 = vperm.xlu0 %1475, %v1008
  %v1477 = vpop.permute.xlu0 %1476
  %1480 = vset.pattern.permute.xlu0 0
  %1481 = vperm.xlu0 %1480, %v1023
  %v1482 = vpop.permute.xlu0 %1481
  %1485 = vset.pattern.permute.xlu0 0
  %1486 = vperm.xlu0 %1485, %v1038
  %v1487 = vpop.permute.xlu0 %1486
  %1490 = vset.pattern.permute.xlu0 0
  %1491 = vperm.xlu0 %1490, %v1053
  %v1492 = vpop.permute.xlu0 %1491
  %1495 = vset.pattern.permute.xlu0 0
  %1496 = vperm.xlu0 %1495, %v1068
  %v1497 = vpop.permute.xlu0 %1496
  %1500 = vset.pattern.permute.xlu0 0
  %1501 = vperm.xlu0 %1500, %v1083
  %v1502 = vpop.permute.xlu0 %1501
  %1505 = vset.pattern.permute.xlu0 0
  %1506 = vperm.xlu0 %1505, %v1098
  %v1507 = vpop.permute.xlu0 %1506
  %1510 = vset.pattern.permute.xlu0 0
  %1511 = vperm.xlu0 %1510, %v1113
  %v1512 = vpop.permute.xlu0 %1511
  %1515 = vset.pattern.permute.xlu0 0
  %1516 = vperm.xlu0 %1515, %v1128
  %v1517 = vpop.permute.xlu0 %1516
  %1520 = vset.pattern.permute.xlu0 0
  %1521 = vperm.xlu0 %1520, %v1143
  %v1522 = vpop.permute.xlu0 %1521
  %1525 = vset.pattern.permute.xlu0 0
  %1526 = vperm.xlu0 %1525, %v1158
  %v1527 = vpop.permute.xlu0 %1526
  %1530 = vset.pattern.permute.xlu0 0
  %1531 = vperm.xlu0 %1530, %v1173
  %v1532 = vpop.permute.xlu0 %1531
  %1535 = vset.pattern.permute.xlu0 0
  %1536 = vperm.xlu0 %1535, %v1188
  %v1537 = vpop.permute.xlu0 %1536
  %1540 = vset.pattern.permute.xlu0 0
  %1541 = vperm.xlu0 %1540, %v1203
  %v1542 = vpop.permute.xlu0 %1541
  %1545 = vset.pattern.permute.xlu0 0
  %1546 = vperm.xlu0 %1545, %v1218
  %v1547 = vpop.permute.xlu0 %1546
  %1550 = vset.pattern.permute.xlu0 0
  %1551 = vperm.xlu0 %1550, %v1233
  %v1552 = vpop.permute.xlu0 %1551
  %1555 = vset.pattern.permute.xlu0 0
  %1556 = vperm.xlu0 %1555, %v1248
  %v1557 = vpop.permute.xlu0 %1556
  %1560 = vset.pattern.permute.xlu0 0
  %1561 = vperm.xlu0 %1560, %v1263
  %v1562 = vpop.permute.xlu0 %1561
  %1565 = vset.pattern.permute.xlu0 0
  %1566 = vperm.xlu0 %1565, %v1278
  %v1567 = vpop.permute.xlu0 %1566
  %1570 = vset.pattern.permute.xlu0 0
  %1571 = vperm.xlu0 %1570, %v1293
  %v1572 = vpop.permute.xlu0 %1571
  %1575 = vset.pattern.permute.xlu0 0
  %1576 = vperm.xlu0 %1575, %v1308
  %v1577 = vpop.permute.xlu0 %1576
  %1580 = vset.pattern.permute.xlu0 0
  %1581 = vperm.xlu0 %1580, %v1323
  %v1582 = vpop.permute.xlu0 %1581
  %1585 = vset.pattern.permute.xlu0 0
  %1586 = vperm.xlu0 %1585, %v1338
  %v1587 = vpop.permute.xlu0 %1586
  %1590 = vset.pattern.permute.xlu0 0
  %1591 = vperm.xlu0 %1590, %v1353
  %v1592 = vpop.permute.xlu0 %1591
  %1595 = vset.pattern.permute.xlu0 0
  %1596 = vperm.xlu0 %1595, %v1368
  %v1597 = vpop.permute.xlu0 %1596
  %1600 = vset.pattern.permute.xlu0 0
  %1601 = vperm.xlu0 %1600, %v1383
  %v1602 = vpop.permute.xlu0 %1601
  %1605 = vset.pattern.permute.xlu0 0
  %1606 = vperm.xlu0 %1605, %v1398
  %v1607 = vpop.permute.xlu0 %1606
  %1610 = vset.pattern.permute.xlu0 0
  %1611 = vperm.xlu0 %1610, %v1413
  %v1612 = vpop.permute.xlu0 %1611
  %1615 = vset.pattern.permute.xlu0 0
  %1616 = vperm.xlu0 %1615, %v1428
  %v1617 = vpop.permute.xlu0 %1616
  %1620 = vset.pattern.permute.xlu0 0
  %1621 = vperm.xlu0 %1620, %v1443
  %v1622 = vpop.permute.xlu0 %1621
  %1625 = vset.pattern.permute.xlu0 0
  %1626 = vperm.xlu0 %1625, %v1458
  %v1627 = vpop.permute.xlu0 %1626
  %1630 = vset.pattern.permute.xlu0 0
  %1631 = vperm.xlu0 %1630, %v1473
  %v1632 = vpop.permute.xlu0 %1631
  %1634 = vset.pattern.permute.xlu0 1
  %1635 = vperm.xlu0 %1634, %v1008
  %v1636 = vpop.permute.xlu0 %1635
  %1638 = vset.pattern.permute.xlu0 1
  %1639 = vperm.xlu0 %1638, %v1023
  %v1640 = vpop.permute.xlu0 %1639
  %1642 = vset.pattern.permute.xlu0 1
  %1643 = vperm.xlu0 %1642, %v1038
  %v1644 = vpop.permute.xlu0 %1643
  %1646 = vset.pattern.permute.xlu0 1
  %1647 = vperm.xlu0 %1646, %v1053
  %v1648 = vpop.permute.xlu0 %1647
  %1650 = vset.pattern.permute.xlu0 1
  %1651 = vperm.xlu0 %1650, %v1068
  %v1652 = vpop.permute.xlu0 %1651
  %1654 = vset.pattern.permute.xlu0 1
  %1655 = vperm.xlu0 %1654, %v1083
  %v1656 = vpop.permute.xlu0 %1655
  %1658 = vset.pattern.permute.xlu0 1
  %1659 = vperm.xlu0 %1658, %v1098
  %v1660 = vpop.permute.xlu0 %1659
  %1662 = vset.pattern.permute.xlu0 1
  %1663 = vperm.xlu0 %1662, %v1113
  %v1664 = vpop.permute.xlu0 %1663
  %1666 = vset.pattern.permute.xlu0 1
  %1667 = vperm.xlu0 %1666, %v1128
  %v1668 = vpop.permute.xlu0 %1667
  %1670 = vset.pattern.permute.xlu0 1
  %1671 = vperm.xlu0 %1670, %v1143
  %v1672 = vpop.permute.xlu0 %1671
  %1674 = vset.pattern.permute.xlu0 1
  %1675 = vperm.xlu0 %1674, %v1158
  %v1676 = vpop.permute.xlu0 %1675
  %1678 = vset.pattern.permute.xlu0 1
  %1679 = vperm.xlu0 %1678, %v1173
  %v1680 = vpop.permute.xlu0 %1679
  %1682 = vset.pattern.permute.xlu0 1
  %1683 = vperm.xlu0 %1682, %v1188
  %v1684 = vpop.permute.xlu0 %1683
  %1686 = vset.pattern.permute.xlu0 1
  %1687 = vperm.xlu0 %1686, %v1203
  %v1688 = vpop.permute.xlu0 %1687
  %1690 = vset.pattern.permute.xlu0 1
  %1691 = vperm.xlu0 %1690, %v1218
  %v1692 = vpop.permute.xlu0 %1691
  %1694 = vset.pattern.permute.xlu0 1
  %1695 = vperm.xlu0 %1694, %v1233
  %v1696 = vpop.permute.xlu0 %1695
  %1698 = vset.pattern.permute.xlu0 1
  %1699 = vperm.xlu0 %1698, %v1248
  %v1700 = vpop.permute.xlu0 %1699
  %1702 = vset.pattern.permute.xlu0 1
  %1703 = vperm.xlu0 %1702, %v1263
  %v1704 = vpop.permute.xlu0 %1703
  %1706 = vset.pattern.permute.xlu0 1
  %1707 = vperm.xlu0 %1706, %v1278
  %v1708 = vpop.permute.xlu0 %1707
  %1710 = vset.pattern.permute.xlu0 1
  %1711 = vperm.xlu0 %1710, %v1293
  %v1712 = vpop.permute.xlu0 %1711
  %1714 = vset.pattern.permute.xlu0 1
  %1715 = vperm.xlu0 %1714, %v1308
  %v1716 = vpop.permute.xlu0 %1715
  %1718 = vset.pattern.permute.xlu0 1
  %1719 = vperm.xlu0 %1718, %v1323
  %v1720 = vpop.permute.xlu0 %1719
  %1722 = vset.pattern.permute.xlu0 1
  %1723 = vperm.xlu0 %1722, %v1338
  %v1724 = vpop.permute.xlu0 %1723
  %1726 = vset.pattern.permute.xlu0 1
  %1727 = vperm.xlu0 %1726, %v1353
  %v1728 = vpop.permute.xlu0 %1727
  %1730 = vset.pattern.permute.xlu0 1
  %1731 = vperm.xlu0 %1730, %v1368
  %v1732 = vpop.permute.xlu0 %1731
  %1734 = vset.pattern.permute.xlu0 1
  %1735 = vperm.xlu0 %1734, %v1383
  %v1736 = vpop.permute.xlu0 %1735
  %1738 = vset.pattern.permute.xlu0 1
  %1739 = vperm.xlu0 %1738, %v1398
  %v1740 = vpop.permute.xlu0 %1739
  %1742 = vset.pattern.permute.xlu0 1
  %1743 = vperm.xlu0 %1742, %v1413
  %v1744 = vpop.permute.xlu0 %1743
  %1746 = vset.pattern.permute.xlu0 1
  %1747 = vperm.xlu0 %1746, %v1428
  %v1748 = vpop.permute.xlu0 %1747
  %1750 = vset.pattern.permute.xlu0 1
  %1751 = vperm.xlu0 %1750, %v1443
  %v1752 = vpop.permute.xlu0 %1751
  %1754 = vset.pattern.permute.xlu0 1
  %1755 = vperm.xlu0 %1754, %v1458
  %v1756 = vpop.permute.xlu0 %1755
  %1758 = vset.pattern.permute.xlu0 1
  %1759 = vperm.xlu0 %1758, %v1473
  %v1760 = vpop.permute.xlu0 %1759
  %v1762 = vsel %vm424, %v1477, %v1636
  %v1763 = vsel %vm424, %v1482, %v1640
  %v1764 = vsel %vm424, %v1487, %v1644
  %v1765 = vsel %vm424, %v1492, %v1648
  %v1766 = vsel %vm424, %v1497, %v1652
  %v1767 = vsel %vm424, %v1502, %v1656
  %v1768 = vsel %vm424, %v1507, %v1660
  %v1769 = vsel %vm424, %v1512, %v1664
  %v1770 = vsel %vm424, %v1517, %v1668
  %v1771 = vsel %vm424, %v1522, %v1672
  %v1772 = vsel %vm424, %v1527, %v1676
  %v1773 = vsel %vm424, %v1532, %v1680
  %v1774 = vsel %vm424, %v1537, %v1684
  %v1775 = vsel %vm424, %v1542, %v1688
  %v1776 = vsel %vm424, %v1547, %v1692
  %v1777 = vsel %vm424, %v1552, %v1696
  %v1778 = vsel %vm424, %v1557, %v1700
  %v1779 = vsel %vm424, %v1562, %v1704
  %v1780 = vsel %vm424, %v1567, %v1708
  %v1781 = vsel %vm424, %v1572, %v1712
  %v1782 = vsel %vm424, %v1577, %v1716
  %v1783 = vsel %vm424, %v1582, %v1720
  %v1784 = vsel %vm424, %v1587, %v1724
  %v1785 = vsel %vm424, %v1592, %v1728
  %v1786 = vsel %vm424, %v1597, %v1732
  %v1787 = vsel %vm424, %v1602, %v1736
  %v1788 = vsel %vm424, %v1607, %v1740
  %v1789 = vsel %vm424, %v1612, %v1744
  %v1790 = vsel %vm424, %v1617, %v1748
  %v1791 = vsel %vm424, %v1622, %v1752
  %v1792 = vsel %vm424, %v1627, %v1756
  %v1793 = vsel %vm424, %v1632, %v1760
  %v1794 = vmul.f32 %v1762, %v786
  %v1795 = vmul.f32 %v1763, %v789
  %v1796 = vmul.f32 %v1764, %v792
  %v1797 = vmul.f32 %v1765, %v795
  %v1798 = vmul.f32 %v1766, %v798
  %v1799 = vmul.f32 %v1767, %v801
  %v1800 = vmul.f32 %v1768, %v804
  %v1801 = vmul.f32 %v1769, %v807
  %v1802 = vmul.f32 %v1770, %v810
  %v1803 = vmul.f32 %v1771, %v813
  %v1804 = vmul.f32 %v1772, %v816
  %v1805 = vmul.f32 %v1773, %v819
  %v1806 = vmul.f32 %v1774, %v822
  %v1807 = vmul.f32 %v1775, %v825
  %v1808 = vmul.f32 %v1776, %v828
  %v1809 = vmul.f32 %v1777, %v831
  %v1810 = vmul.f32 %v1778, %v834
  %v1811 = vmul.f32 %v1779, %v837
  %v1812 = vmul.f32 %v1780, %v840
  %v1813 = vmul.f32 %v1781, %v843
  %v1814 = vmul.f32 %v1782, %v846
  %v1815 = vmul.f32 %v1783, %v849
  %v1816 = vmul.f32 %v1784, %v852
  %v1817 = vmul.f32 %v1785, %v855
  %v1818 = vmul.f32 %v1786, %v858
  %v1819 = vmul.f32 %v1787, %v861
  %v1820 = vmul.f32 %v1788, %v864
  %v1821 = vmul.f32 %v1789, %v867
  %v1822 = vmul.f32 %v1790, %v870
  %v1823 = vmul.f32 %v1791, %v873
  %v1824 = vmul.f32 %v1792, %v876
  %v1825 = vmul.f32 %v1793, %v879
  %v1826 = vadd.f32 %v1794, %v236
  %v1827 = vadd.f32 %v1795, %v239
  %v1828 = vadd.f32 %v1796, %v242
  %v1829 = vadd.f32 %v1797, %v245
  %v1830 = vadd.f32 %v1798, %v248
  %v1831 = vadd.f32 %v1799, %v251
  %v1832 = vadd.f32 %v1800, %v254
  %v1833 = vadd.f32 %v1801, %v257
  %v1834 = vadd.f32 %v1802, %v260
  %v1835 = vadd.f32 %v1803, %v263
  %v1836 = vadd.f32 %v1804, %v266
  %v1837 = vadd.f32 %v1805, %v269
  %v1838 = vadd.f32 %v1806, %v272
  %v1839 = vadd.f32 %v1807, %v275
  %v1840 = vadd.f32 %v1808, %v278
  %v1841 = vadd.f32 %v1809, %v281
  %v1842 = vadd.f32 %v1810, %v284
  %v1843 = vadd.f32 %v1811, %v287
  %v1844 = vadd.f32 %v1812, %v290
  %v1845 = vadd.f32 %v1813, %v293
  %v1846 = vadd.f32 %v1814, %v296
  %v1847 = vadd.f32 %v1815, %v299
  %v1848 = vadd.f32 %v1816, %v302
  %v1849 = vadd.f32 %v1817, %v305
  %v1850 = vadd.f32 %v1818, %v308
  %v1851 = vadd.f32 %v1819, %v311
  %v1852 = vadd.f32 %v1820, %v314
  %v1853 = vadd.f32 %v1821, %v317
  %v1854 = vadd.f32 %v1822, %v320
  %v1855 = vadd.f32 %v1823, %v323
  %v1856 = vadd.f32 %v1824, %v326
  %v1857 = vadd.f32 %v1825, %v329
  %v1858 = vmax.f32 %v1826, 0.0
  %v1859 = vmax.f32 %v1827, 0.0
  %v1860 = vmax.f32 %v1828, 0.0
  %v1861 = vmax.f32 %v1829, 0.0
  %v1862 = vmax.f32 %v1830, 0.0
  %v1863 = vmax.f32 %v1831, 0.0
  %v1864 = vmax.f32 %v1832, 0.0
  %v1865 = vmax.f32 %v1833, 0.0
  %v1866 = vmax.f32 %v1834, 0.0
  %v1867 = vmax.f32 %v1835, 0.0
  %v1868 = vmax.f32 %v1836, 0.0
  %v1869 = vmax.f32 %v1837, 0.0
  %v1870 = vmax.f32 %v1838, 0.0
  %v1871 = vmax.f32 %v1839, 0.0
  %v1872 = vmax.f32 %v1840, 0.0
  %v1873 = vmax.f32 %v1841, 0.0
  %v1874 = vmax.f32 %v1842, 0.0
  %v1875 = vmax.f32 %v1843, 0.0
  %v1876 = vmax.f32 %v1844, 0.0
  %v1877 = vmax.f32 %v1845, 0.0
  %v1878 = vmax.f32 %v1846, 0.0
  %v1879 = vmax.f32 %v1847, 0.0
  %v1880 = vmax.f32 %v1848, 0.0
  %v1881 = vmax.f32 %v1849, 0.0
  %v1882 = vmax.f32 %v1850, 0.0
  %v1883 = vmax.f32 %v1851, 0.0
  %v1884 = vmax.f32 %v1852, 0.0
  %v1885 = vmax.f32 %v1853, 0.0
  %v1886 = vmax.f32 %v1854, 0.0
  %v1887 = vmax.f32 %v1855, 0.0
  %v1888 = vmax.f32 %v1856, 0.0
  %v1889 = vmax.f32 %v1857, 0.0
  %v1890 = vld [vmem:[%s5] sm:$0xff]
  %v1891 = vld [vmem:[%s5 + $0x8] sm:$0xff]
  %v1892 = vld [vmem:[%s5 + $0x10] sm:$0xff]
  %v1893 = vld [vmem:[%s5 + $0x18] sm:$0xff]
  %v1894 = vld [vmem:[%s6] sm:$0x1]
  %vm1895 = vcmask 261120
  %v1897 = vsel %vm1895, %v1858, 0
  %v1900 = vsel %vm1895, %v1859, 0
  %v1903 = vsel %vm1895, %v1860, 0
  %v1906 = vsel %vm1895, %v1861, 0
  %v1909 = vsel %vm1895, %v1862, 0
  %v1912 = vsel %vm1895, %v1863, 0
  %v1915 = vsel %vm1895, %v1864, 0
  %v1918 = vsel %vm1895, %v1865, 0
  %v1921 = vsel %vm1895, %v1866, 0
  %v1924 = vsel %vm1895, %v1867, 0
  %v1927 = vsel %vm1895, %v1868, 0
  %v1930 = vsel %vm1895, %v1869, 0
  %v1933 = vsel %vm1895, %v1870, 0
  %v1936 = vsel %vm1895, %v1871, 0
  %v1939 = vsel %vm1895, %v1872, 0
  %v1942 = vsel %vm1895, %v1873, 0
  %v1945 = vsel %vm1895, %v1874, 0
  %v1948 = vsel %vm1895, %v1875, 0
  %v1951 = vsel %vm1895, %v1876, 0
  %v1954 = vsel %vm1895, %v1877, 0
  %v1957 = vsel %vm1895, %v1878, 0
  %v1960 = vsel %vm1895, %v1879, 0
  %v1963 = vsel %vm1895, %v1880, 0
  %v1966 = vsel %vm1895, %v1881, 0
  %v1969 = vsel %vm1895, %v1882, 0
  %v1972 = vsel %vm1895, %v1883, 0
  %v1975 = vsel %vm1895, %v1884, 0
  %v1978 = vsel %vm1895, %v1885, 0
  %v1981 = vsel %vm1895, %v1886, 0
  %v1984 = vsel %vm1895, %v1887, 0
  %v1987 = vsel %vm1895, %v1888, 0
  %v1990 = vsel %vm1895, %v1889, 0
  %1992 = vmatpush.msra.mxu0 0.0
  %1993 = vmatpush.msra.mxu0 0.0
  %1994 = vmatpush.msra.mxu0 0.0
  %1995 = vmatpush.msra.mxu0 0.0
  %1996 = vmatpush.msra.mxu0 0.0
  %1997 = vmatpush.msra.mxu0 0.0
  %1998 = vmatpush.msra.mxu0 0.0
  %1999 = vmatpush.msra.mxu0 0.0
  %2000 = vmatpush.msra.mxu0 0.0
  %2001 = vmatpush.msra.mxu0 0.0
  %2002 = vmatpush.msra.mxu0 0.0
  %2003 = vmatpush.msra.mxu0 0.0
  %2004 = vmatpush.msra.mxu0 %v1893
  %2005 = vmatpush.msra.mxu0 %v1892
  %2006 = vmatpush.msra.mxu0 %v1891
  %2007 = vmatpush.msra.mxu0 %v1890
  %2008 = vmatmul.f32.gmra.mxu0 %v1897
  %v2009 = vpop.f32.mrf.mxu0
  %v2010 = vadd.f32 0.0, %v2009
  %2011 = vmatmul.f32.gmra.mxu0 %v1900
  %v2012 = vpop.f32.mrf.mxu0
  %v2013 = vadd.f32 0.0, %v2012
  %2014 = vmatmul.f32.gmra.mxu0 %v1903
  %v2015 = vpop.f32.mrf.mxu0
  %v2016 = vadd.f32 0.0, %v2015
  %2017 = vmatmul.f32.gmra.mxu0 %v1906
  %v2018 = vpop.f32.mrf.mxu0
  %v2019 = vadd.f32 0.0, %v2018
  %2020 = vmatmul.f32.gmra.mxu0 %v1909
  %v2021 = vpop.f32.mrf.mxu0
  %v2022 = vadd.f32 0.0, %v2021
  %2023 = vmatmul.f32.gmra.mxu0 %v1912
  %v2024 = vpop.f32.mrf.mxu0
  %v2025 = vadd.f32 0.0, %v2024
  %2026 = vmatmul.f32.gmra.mxu0 %v1915
  %v2027 = vpop.f32.mrf.mxu0
  %v2028 = vadd.f32 0.0, %v2027
  %2029 = vmatmul.f32.gmra.mxu0 %v1918
  %v2030 = vpop.f32.mrf.mxu0
  %v2031 = vadd.f32 0.0, %v2030
  %2032 = vmatmul.f32.gmra.mxu0 %v1921
  %v2033 = vpop.f32.mrf.mxu0
  %v2034 = vadd.f32 0.0, %v2033
  %2035 = vmatmul.f32.gmra.mxu0 %v1924
  %v2036 = vpop.f32.mrf.mxu0
  %v2037 = vadd.f32 0.0, %v2036
  %2038 = vmatmul.f32.gmra.mxu0 %v1927
  %v2039 = vpop.f32.mrf.mxu0
  %v2040 = vadd.f32 0.0, %v2039
  %2041 = vmatmul.f32.gmra.mxu0 %v1930
  %v2042 = vpop.f32.mrf.mxu0
  %v2043 = vadd.f32 0.0, %v2042
  %2044 = vmatmul.f32.gmra.mxu0 %v1933
  %v2045 = vpop.f32.mrf.mxu0
  %v2046 = vadd.f32 0.0, %v2045
  %2047 = vmatmul.f32.gmra.mxu0 %v1936
  %v2048 = vpop.f32.mrf.mxu0
  %v2049 = vadd.f32 0.0, %v2048
  %2050 = vmatmul.f32.gmra.mxu0 %v1939
  %v2051 = vpop.f32.mrf.mxu0
  %v2052 = vadd.f32 0.0, %v2051
  %2053 = vmatmul.f32.gmra.mxu0 %v1942
  %v2054 = vpop.f32.mrf.mxu0
  %v2055 = vadd.f32 0.0, %v2054
  %2056 = vmatmul.f32.gmra.mxu0 %v1945
  %v2057 = vpop.f32.mrf.mxu0
  %v2058 = vadd.f32 0.0, %v2057
  %2059 = vmatmul.f32.gmra.mxu0 %v1948
  %v2060 = vpop.f32.mrf.mxu0
  %v2061 = vadd.f32 0.0, %v2060
  %2062 = vmatmul.f32.gmra.mxu0 %v1951
  %v2063 = vpop.f32.mrf.mxu0
  %v2064 = vadd.f32 0.0, %v2063
  %2065 = vmatmul.f32.gmra.mxu0 %v1954
  %v2066 = vpop.f32.mrf.mxu0
  %v2067 = vadd.f32 0.0, %v2066
  %2068 = vmatmul.f32.gmra.mxu0 %v1957
  %v2069 = vpop.f32.mrf.mxu0
  %v2070 = vadd.f32 0.0, %v2069
  %2071 = vmatmul.f32.gmra.mxu0 %v1960
  %v2072 = vpop.f32.mrf.mxu0
  %v2073 = vadd.f32 0.0, %v2072
  %2074 = vmatmul.f32.gmra.mxu0 %v1963
  %v2075 = vpop.f32.mrf.mxu0
  %v2076 = vadd.f32 0.0, %v2075
  %2077 = vmatmul.f32.gmra.mxu0 %v1966
  %v2078 = vpop.f32.mrf.mxu0
  %v2079 = vadd.f32 0.0, %v2078
  %2080 = vmatmul.f32.gmra.mxu0 %v1969
  %v2081 = vpop.f32.mrf.mxu0
  %v2082 = vadd.f32 0.0, %v2081
  %2083 = vmatmul.f32.gmra.mxu0 %v1972
  %v2084 = vpop.f32.mrf.mxu0
  %v2085 = vadd.f32 0.0, %v2084
  %2086 = vmatmul.f32.gmra.mxu0 %v1975
  %v2087 = vpop.f32.mrf.mxu0
  %v2088 = vadd.f32 0.0, %v2087
  %2089 = vmatmul.f32.gmra.mxu0 %v1978
  %v2090 = vpop.f32.mrf.mxu0
  %v2091 = vadd.f32 0.0, %v2090
  %2092 = vmatmul.f32.gmra.mxu0 %v1981
  %v2093 = vpop.f32.mrf.mxu0
  %v2094 = vadd.f32 0.0, %v2093
  %2095 = vmatmul.f32.gmra.mxu0 %v1984
  %v2096 = vpop.f32.mrf.mxu0
  %v2097 = vadd.f32 0.0, %v2096
  %2098 = vmatmul.f32.gmra.mxu0 %v1987
  %v2099 = vpop.f32.mrf.mxu0
  %v2100 = vadd.f32 0.0, %v2099
  %2101 = vmatmul.f32.gmra.mxu0 %v1990
  %v2102 = vpop.f32.mrf.mxu0
  %v2103 = vadd.f32 0.0, %v2102
  %2104 = vdwg.mxu0
  %2105 = vmatpush.msra.mxu0 %v2055
  %2106 = vmatpush.msra.mxu0 %v2052
  %2107 = vmatpush.msra.mxu0 %v2049
  %2108 = vmatpush.msra.mxu0 %v2046
  %2109 = vmatpush.msra.mxu0 %v2043
  %2110 = vmatpush.msra.mxu0 %v2040
  %2111 = vmatpush.msra.mxu0 %v2037
  %2112 = vmatpush.msra.mxu0 %v2034
  %2113 = vmatpush.msra.mxu0 %v2031
  %2114 = vmatpush.msra.mxu0 %v2028
  %2115 = vmatpush.msra.mxu0 %v2025
  %2116 = vmatpush.msra.mxu0 %v2022
  %2117 = vmatpush.msra.mxu0 %v2019
  %2118 = vmatpush.msra.mxu0 %v2016
  %2119 = vmatpush.msra.mxu0 %v2013
  %2120 = vmatpush.msra.mxu0 %v2010
  %2121 = vmatmul.f32.gmra.mxu0 %v64
  %v2122 = vpop.f32.mrf.mxu0
  %v2123 = vadd.f32 0.0, %v2122
  %2124 = vmatmul.f32.gmra.mxu0 %v66
  %v2125 = vpop.f32.mrf.mxu0
  %v2126 = vadd.f32 0.0, %v2125
  %2127 = vmatmul.f32.gmra.mxu0 %v68
  %v2128 = vpop.f32.mrf.mxu0
  %v2129 = vadd.f32 0.0, %v2128
  %2130 = vmatmul.f32.gmra.mxu0 %v70
  %v2131 = vpop.f32.mrf.mxu0
  %v2132 = vadd.f32 0.0, %v2131
  %2133 = vmatmul.f32.gmra.mxu0 %v72
  %v2134 = vpop.f32.mrf.mxu0
  %v2135 = vadd.f32 0.0, %v2134
  %2136 = vmatmul.f32.gmra.mxu0 %v74
  %v2137 = vpop.f32.mrf.mxu0
  %v2138 = vadd.f32 0.0, %v2137
  %2139 = vmatmul.f32.gmra.mxu0 %v76
  %v2140 = vpop.f32.mrf.mxu0
  %v2141 = vadd.f32 0.0, %v2140
  %2142 = vmatmul.f32.gmra.mxu0 %v78
  %v2143 = vpop.f32.mrf.mxu0
  %v2144 = vadd.f32 0.0, %v2143
  %2145 = vdwg.mxu0
  %2146 = vmatpush.msra.mxu0 %v2103
  %2147 = vmatpush.msra.mxu0 %v2100
  %2148 = vmatpush.msra.mxu0 %v2097
  %2149 = vmatpush.msra.mxu0 %v2094
  %2150 = vmatpush.msra.mxu0 %v2091
  %2151 = vmatpush.msra.mxu0 %v2088
  %2152 = vmatpush.msra.mxu0 %v2085
  %2153 = vmatpush.msra.mxu0 %v2082
  %2154 = vmatpush.msra.mxu0 %v2079
  %2155 = vmatpush.msra.mxu0 %v2076
  %2156 = vmatpush.msra.mxu0 %v2073
  %2157 = vmatpush.msra.mxu0 %v2070
  %2158 = vmatpush.msra.mxu0 %v2067
  %2159 = vmatpush.msra.mxu0 %v2064
  %2160 = vmatpush.msra.mxu0 %v2061
  %2161 = vmatpush.msra.mxu0 %v2058
  %2162 = vmatmul.f32.gmra.mxu0 %v65
  %v2163 = vpop.f32.mrf.mxu0
  %v2164 = vadd.f32 %v2123, %v2163
  %2165 = vmatmul.f32.gmra.mxu0 %v67
  %v2166 = vpop.f32.mrf.mxu0
  %v2167 = vadd.f32 %v2126, %v2166
  %2168 = vmatmul.f32.gmra.mxu0 %v69
  %v2169 = vpop.f32.mrf.mxu0
  %v2170 = vadd.f32 %v2129, %v2169
  %2171 = vmatmul.f32.gmra.mxu0 %v71
  %v2172 = vpop.f32.mrf.mxu0
  %v2173 = vadd.f32 %v2132, %v2172
  %2174 = vmatmul.f32.gmra.mxu0 %v73
  %v2175 = vpop.f32.mrf.mxu0
  %v2176 = vadd.f32 %v2135, %v2175
  %2177 = vmatmul.f32.gmra.mxu0 %v75
  %v2178 = vpop.f32.mrf.mxu0
  %v2179 = vadd.f32 %v2138, %v2178
  %2180 = vmatmul.f32.gmra.mxu0 %v77
  %v2181 = vpop.f32.mrf.mxu0
  %v2182 = vadd.f32 %v2141, %v2181
  %2183 = vmatmul.f32.gmra.mxu0 %v79
  %v2184 = vpop.f32.mrf.mxu0
  %v2185 = vadd.f32 %v2144, %v2184
  %2186 = vdwg.mxu0
  %v2188 = vperm.slane %v1894, 0
  %v2190 = vmul.f32 %v2164, %v2188
  %v2191 = vmul.f32 %v2167, %v2188
  %v2192 = vmul.f32 %v2170, %v2188
  %v2193 = vmul.f32 %v2173, %v2188
  %v2194 = vmul.f32 %v2176, %v2188
  %v2195 = vmul.f32 %v2179, %v2188
  %v2196 = vmul.f32 %v2182, %v2188
  %v2197 = vmul.f32 %v2185, %v2188
  %v2198 = vsel %vm424, %v2190, 0.0
  %2199 = vadd.xlane.f32.xlu0 %v2198
  %v2200 = vpop.xlane.xlu0 %2199
  %v2201 = vsel %vm424, %v2191, 0.0
  %2202 = vadd.xlane.f32.xlu0 %v2201
  %v2203 = vpop.xlane.xlu0 %2202
  %v2204 = vsel %vm424, %v2192, 0.0
  %2205 = vadd.xlane.f32.xlu0 %v2204
  %v2206 = vpop.xlane.xlu0 %2205
  %v2207 = vsel %vm424, %v2193, 0.0
  %2208 = vadd.xlane.f32.xlu0 %v2207
  %v2209 = vpop.xlane.xlu0 %2208
  %v2210 = vsel %vm424, %v2194, 0.0
  %2211 = vadd.xlane.f32.xlu0 %v2210
  %v2212 = vpop.xlane.xlu0 %2211
  %v2213 = vsel %vm424, %v2195, 0.0
  %2214 = vadd.xlane.f32.xlu0 %v2213
  %v2215 = vpop.xlane.xlu0 %2214
  %v2216 = vsel %vm424, %v2196, 0.0
  %2217 = vadd.xlane.f32.xlu0 %v2216
  %v2218 = vpop.xlane.xlu0 %2217
  %v2219 = vsel %vm424, %v2197, 0.0
  %2220 = vadd.xlane.f32.xlu0 %v2219
  %v2221 = vpop.xlane.xlu0 %2220
  %2230 = vrot.lane.b32.xlu0 %v2190, 112
  %v2231 = vpop.permute.xlu0 %2230
  %2232 = vrot.lane.b32.xlu0 %v2191, 112
  %v2233 = vpop.permute.xlu0 %2232
  %2234 = vrot.lane.b32.xlu0 %v2192, 112
  %v2235 = vpop.permute.xlu0 %2234
  %2236 = vrot.lane.b32.xlu0 %v2193, 112
  %v2237 = vpop.permute.xlu0 %2236
  %2238 = vrot.lane.b32.xlu0 %v2194, 112
  %v2239 = vpop.permute.xlu0 %2238
  %2240 = vrot.lane.b32.xlu0 %v2195, 112
  %v2241 = vpop.permute.xlu0 %2240
  %2242 = vrot.lane.b32.xlu0 %v2196, 112
  %v2243 = vpop.permute.xlu0 %2242
  %2244 = vrot.lane.b32.xlu0 %v2197, 112
  %v2245 = vpop.permute.xlu0 %2244
  %v2254 = vsel %vm424, %v2231, 0.0
  %2255 = vadd.xlane.f32.xlu0 %v2254
  %v2256 = vpop.xlane.xlu0 %2255
  %v2257 = vsel %vm424, %v2233, 0.0
  %2258 = vadd.xlane.f32.xlu0 %v2257
  %v2259 = vpop.xlane.xlu0 %2258
  %v2260 = vsel %vm424, %v2235, 0.0
  %2261 = vadd.xlane.f32.xlu0 %v2260
  %v2262 = vpop.xlane.xlu0 %2261
  %v2263 = vsel %vm424, %v2237, 0.0
  %2264 = vadd.xlane.f32.xlu0 %v2263
  %v2265 = vpop.xlane.xlu0 %2264
  %v2266 = vsel %vm424, %v2239, 0.0
  %2267 = vadd.xlane.f32.xlu0 %v2266
  %v2268 = vpop.xlane.xlu0 %2267
  %v2269 = vsel %vm424, %v2241, 0.0
  %2270 = vadd.xlane.f32.xlu0 %v2269
  %v2271 = vpop.xlane.xlu0 %2270
  %v2272 = vsel %vm424, %v2243, 0.0
  %2273 = vadd.xlane.f32.xlu0 %v2272
  %v2274 = vpop.xlane.xlu0 %2273
  %v2275 = vsel %vm424, %v2245, 0.0
  %2276 = vadd.xlane.f32.xlu0 %v2275
  %v2277 = vpop.xlane.xlu0 %2276
  %v2278 = vsel %vm505, %v2200, %v2256
  %v2279 = vsel %vm505, %v2203, %v2259
  %v2280 = vsel %vm505, %v2206, %v2262
  %v2281 = vsel %vm505, %v2209, %v2265
  %v2282 = vsel %vm505, %v2212, %v2268
  %v2283 = vsel %vm505, %v2215, %v2271
  %v2284 = vsel %vm505, %v2218, %v2274
  %v2285 = vsel %vm505, %v2221, %v2277
  %vm2286 = vcmp.ge.f32.partialorder %v2278, 0.0
  %vm2287 = vcmp.ge.f32.partialorder %v2279, 0.0
  %vm2288 = vcmp.ge.f32.partialorder %v2280, 0.0
  %vm2289 = vcmp.ge.f32.partialorder %v2281, 0.0
  %vm2290 = vcmp.ge.f32.partialorder %v2282, 0.0
  %vm2291 = vcmp.ge.f32.partialorder %v2283, 0.0
  %vm2292 = vcmp.ge.f32.partialorder %v2284, 0.0
  %vm2293 = vcmp.ge.f32.partialorder %v2285, 0.0
  %v2294 = vmul.f32 %v2278, 0.2
  %v2295 = vmul.f32 %v2279, 0.2
  %v2296 = vmul.f32 %v2280, 0.2
  %v2297 = vmul.f32 %v2281, 0.2
  %v2298 = vmul.f32 %v2282, 0.2
  %v2299 = vmul.f32 %v2283, 0.2
  %v2300 = vmul.f32 %v2284, 0.2
  %v2301 = vmul.f32 %v2285, 0.2
  %v2302 = vsel %vm2286, %v2278, %v2294
  %v2303 = vsel %vm2287, %v2279, %v2295
  %v2304 = vsel %vm2288, %v2280, %v2296
  %v2305 = vsel %vm2289, %v2281, %v2297
  %v2306 = vsel %vm2290, %v2282, %v2298
  %v2307 = vsel %vm2291, %v2283, %v2299
  %v2308 = vsel %vm2292, %v2284, %v2300
  %v2309 = vsel %vm2293, %v2285, %v2301
  %v2310 = vsel %vm538, %v2302, -inf
  %v2311 = vsel %vm538, %v2303, -inf
  %v2312 = vsel %vm538, %v2304, -inf
  %v2313 = vsel %vm538, %v2305, -inf
  %v2314 = vsel %vm538, %v2306, -inf
  %v2315 = vmax.f32 %v2310, %v2314
  %v2316 = vsel %vm538, %v2307, -inf
  %v2317 = vmax.f32 %v2311, %v2316
  %v2318 = vsel %vm538, %v2308, -inf
  %v2319 = vmax.f32 %v2312, %v2318
  %v2320 = vsel %vm538, %v2309, -inf
  %v2321 = vmax.f32 %v2313, %v2320
  %v2322 = vmax.f32 %v2315, %v2317
  %v2323 = vmax.f32 %v2319, %v2321
  %v2324 = vmax.f32 %v2322, %v2323
  %v2325 = vrot.slane %v2324, 4
  %v2326 = vmax.f32 %v2324, %v2325
  %v2327 = vrot.slane %v2326, 2
  %v2328 = vmax.f32 %v2326, %v2327
  %v2329 = vrot.slane %v2328, 1
  %v2330 = vmax.f32 %v2328, %v2329
  %v2331 = vsub.f32 %v2302, %v2330
  %v2332 = vsub.f32 %v2303, %v2330
  %v2333 = vsub.f32 %v2304, %v2330
  %v2334 = vsub.f32 %v2305, %v2330
  %v2335 = vsub.f32 %v2306, %v2330
  %v2336 = vsub.f32 %v2307, %v2330
  %v2337 = vsub.f32 %v2308, %v2330
  %v2338 = vsub.f32 %v2309, %v2330
  %v2339 = vmul.f32 %v2331, 1.442695
  %v2340 = vpow.pop %v2339
  %v2341 = vmul.f32 %v2332, 1.442695
  %v2342 = vpow.pop %v2341
  %v2343 = vmul.f32 %v2333, 1.442695
  %v2344 = vpow.pop %v2343
  %v2345 = vmul.f32 %v2334, 1.442695
  %v2346 = vpow.pop %v2345
  %v2347 = vmul.f32 %v2335, 1.442695
  %v2348 = vpow.pop %v2347
  %v2349 = vmul.f32 %v2336, 1.442695
  %v2350 = vpow.pop %v2349
  %v2351 = vmul.f32 %v2337, 1.442695
  %v2352 = vpow.pop %v2351
  %v2353 = vmul.f32 %v2338, 1.442695
  %v2354 = vpow.pop %v2353
  %2356 = vset.pattern.permute.xlu0 0
  %2357 = vperm.xlu0 %2356, %v2340
  %v2358 = vpop.permute.xlu0 %2357
  %2361 = vset.pattern.permute.xlu0 0
  %2362 = vperm.xlu0 %2361, %v2342
  %v2363 = vpop.permute.xlu0 %2362
  %2366 = vset.pattern.permute.xlu0 0
  %2367 = vperm.xlu0 %2366, %v2344
  %v2368 = vpop.permute.xlu0 %2367
  %2371 = vset.pattern.permute.xlu0 0
  %2372 = vperm.xlu0 %2371, %v2346
  %v2373 = vpop.permute.xlu0 %2372
  %2376 = vset.pattern.permute.xlu0 0
  %2377 = vperm.xlu0 %2376, %v2348
  %v2378 = vpop.permute.xlu0 %2377
  %2381 = vset.pattern.permute.xlu0 0
  %2382 = vperm.xlu0 %2381, %v2350
  %v2383 = vpop.permute.xlu0 %2382
  %2386 = vset.pattern.permute.xlu0 0
  %2387 = vperm.xlu0 %2386, %v2352
  %v2388 = vpop.permute.xlu0 %2387
  %2391 = vset.pattern.permute.xlu0 0
  %2392 = vperm.xlu0 %2391, %v2354
  %v2393 = vpop.permute.xlu0 %2392
  %2395 = vset.pattern.permute.xlu0 1
  %2396 = vperm.xlu0 %2395, %v2340
  %v2397 = vpop.permute.xlu0 %2396
  %2399 = vset.pattern.permute.xlu0 1
  %2400 = vperm.xlu0 %2399, %v2342
  %v2401 = vpop.permute.xlu0 %2400
  %2403 = vset.pattern.permute.xlu0 1
  %2404 = vperm.xlu0 %2403, %v2344
  %v2405 = vpop.permute.xlu0 %2404
  %2407 = vset.pattern.permute.xlu0 1
  %2408 = vperm.xlu0 %2407, %v2346
  %v2409 = vpop.permute.xlu0 %2408
  %2411 = vset.pattern.permute.xlu0 1
  %2412 = vperm.xlu0 %2411, %v2348
  %v2413 = vpop.permute.xlu0 %2412
  %2415 = vset.pattern.permute.xlu0 1
  %2416 = vperm.xlu0 %2415, %v2350
  %v2417 = vpop.permute.xlu0 %2416
  %2419 = vset.pattern.permute.xlu0 1
  %2420 = vperm.xlu0 %2419, %v2352
  %v2421 = vpop.permute.xlu0 %2420
  %2423 = vset.pattern.permute.xlu0 1
  %2424 = vperm.xlu0 %2423, %v2354
  %v2425 = vpop.permute.xlu0 %2424
  %v2427 = vsel %vm424, %v2358, %v2397
  %v2428 = vsel %vm424, %v2363, %v2401
  %v2429 = vsel %vm424, %v2368, %v2405
  %v2430 = vsel %vm424, %v2373, %v2409
  %v2431 = vsel %vm424, %v2378, %v2413
  %v2432 = vsel %vm424, %v2383, %v2417
  %v2433 = vsel %vm424, %v2388, %v2421
  %v2434 = vsel %vm424, %v2393, %v2425
  %v2435 = vmul.f32 %v2427, %v2164
  %v2436 = vmul.f32 %v2428, %v2167
  %v2437 = vmul.f32 %v2429, %v2170
  %v2438 = vmul.f32 %v2430, %v2173
  %v2439 = vmul.f32 %v2431, %v2176
  %v2440 = vmul.f32 %v2432, %v2179
  %v2441 = vmul.f32 %v2433, %v2182
  %v2442 = vmul.f32 %v2434, %v2185
  %2443 = vmatpush.msra.mxu0 0.0
  %2444 = vmatpush.msra.mxu0 0.0
  %2445 = vmatpush.msra.mxu0 0.0
  %2446 = vmatpush.msra.mxu0 0.0
  %2447 = vmatpush.msra.mxu0 0.0
  %2448 = vmatpush.msra.mxu0 0.0
  %2449 = vmatpush.msra.mxu0 0.0
  %2450 = vmatpush.msra.mxu0 0.0
  %2451 = vmatpush.msra.mxu0 %v2442
  %2452 = vmatpush.msra.mxu0 %v2441
  %2453 = vmatpush.msra.mxu0 %v2440
  %2454 = vmatpush.msra.mxu0 %v2439
  %2455 = vmatpush.msra.mxu0 %v2438
  %2456 = vmatpush.msra.mxu0 %v2437
  %2457 = vmatpush.msra.mxu0 %v2436
  %2458 = vmatpush.msra.mxu0 %v2435
  %2459 = vmatmul.f32.gmra.mxu0 %v673
  %v2460 = vpop.f32.mrf.mxu0
  %v2461 = vadd.f32 0.0, %v2460
  %2462 = vmatmul.f32.gmra.mxu0 %v676
  %v2463 = vpop.f32.mrf.mxu0
  %v2464 = vadd.f32 0.0, %v2463
  %2465 = vmatmul.f32.gmra.mxu0 %v679
  %v2466 = vpop.f32.mrf.mxu0
  %v2467 = vadd.f32 0.0, %v2466
  %2468 = vmatmul.f32.gmra.mxu0 %v682
  %v2469 = vpop.f32.mrf.mxu0
  %v2470 = vadd.f32 0.0, %v2469
  %2471 = vmatmul.f32.gmra.mxu0 %v685
  %v2472 = vpop.f32.mrf.mxu0
  %v2473 = vadd.f32 0.0, %v2472
  %2474 = vmatmul.f32.gmra.mxu0 %v688
  %v2475 = vpop.f32.mrf.mxu0
  %v2476 = vadd.f32 0.0, %v2475
  %2477 = vmatmul.f32.gmra.mxu0 %v691
  %v2478 = vpop.f32.mrf.mxu0
  %v2479 = vadd.f32 0.0, %v2478
  %2480 = vmatmul.f32.gmra.mxu0 %v694
  %v2481 = vpop.f32.mrf.mxu0
  %v2482 = vadd.f32 0.0, %v2481
  %2483 = vmatmul.f32.gmra.mxu0 %v697
  %v2484 = vpop.f32.mrf.mxu0
  %v2485 = vadd.f32 0.0, %v2484
  %2486 = vmatmul.f32.gmra.mxu0 %v700
  %v2487 = vpop.f32.mrf.mxu0
  %v2488 = vadd.f32 0.0, %v2487
  %2489 = vmatmul.f32.gmra.mxu0 %v703
  %v2490 = vpop.f32.mrf.mxu0
  %v2491 = vadd.f32 0.0, %v2490
  %2492 = vmatmul.f32.gmra.mxu0 %v706
  %v2493 = vpop.f32.mrf.mxu0
  %v2494 = vadd.f32 0.0, %v2493
  %2495 = vmatmul.f32.gmra.mxu0 %v709
  %v2496 = vpop.f32.mrf.mxu0
  %v2497 = vadd.f32 0.0, %v2496
  %2498 = vmatmul.f32.gmra.mxu0 %v712
  %v2499 = vpop.f32.mrf.mxu0
  %v2500 = vadd.f32 0.0, %v2499
  %2501 = vmatmul.f32.gmra.mxu0 %v715
  %v2502 = vpop.f32.mrf.mxu0
  %v2503 = vadd.f32 0.0, %v2502
  %2504 = vmatmul.f32.gmra.mxu0 %v718
  %v2505 = vpop.f32.mrf.mxu0
  %v2506 = vadd.f32 0.0, %v2505
  %2507 = vmatmul.f32.gmra.mxu0 %v721
  %v2508 = vpop.f32.mrf.mxu0
  %v2509 = vadd.f32 0.0, %v2508
  %2510 = vmatmul.f32.gmra.mxu0 %v724
  %v2511 = vpop.f32.mrf.mxu0
  %v2512 = vadd.f32 0.0, %v2511
  %2513 = vmatmul.f32.gmra.mxu0 %v727
  %v2514 = vpop.f32.mrf.mxu0
  %v2515 = vadd.f32 0.0, %v2514
  %2516 = vmatmul.f32.gmra.mxu0 %v730
  %v2517 = vpop.f32.mrf.mxu0
  %v2518 = vadd.f32 0.0, %v2517
  %2519 = vmatmul.f32.gmra.mxu0 %v733
  %v2520 = vpop.f32.mrf.mxu0
  %v2521 = vadd.f32 0.0, %v2520
  %2522 = vmatmul.f32.gmra.mxu0 %v736
  %v2523 = vpop.f32.mrf.mxu0
  %v2524 = vadd.f32 0.0, %v2523
  %2525 = vmatmul.f32.gmra.mxu0 %v739
  %v2526 = vpop.f32.mrf.mxu0
  %v2527 = vadd.f32 0.0, %v2526
  %2528 = vmatmul.f32.gmra.mxu0 %v742
  %v2529 = vpop.f32.mrf.mxu0
  %v2530 = vadd.f32 0.0, %v2529
  %2531 = vmatmul.f32.gmra.mxu0 %v745
  %v2532 = vpop.f32.mrf.mxu0
  %v2533 = vadd.f32 0.0, %v2532
  %2534 = vmatmul.f32.gmra.mxu0 %v748
  %v2535 = vpop.f32.mrf.mxu0
  %v2536 = vadd.f32 0.0, %v2535
  %2537 = vmatmul.f32.gmra.mxu0 %v751
  %v2538 = vpop.f32.mrf.mxu0
  %v2539 = vadd.f32 0.0, %v2538
  %2540 = vmatmul.f32.gmra.mxu0 %v754
  %v2541 = vpop.f32.mrf.mxu0
  %v2542 = vadd.f32 0.0, %v2541
  %2543 = vmatmul.f32.gmra.mxu0 %v757
  %v2544 = vpop.f32.mrf.mxu0
  %v2545 = vadd.f32 0.0, %v2544
  %2546 = vmatmul.f32.gmra.mxu0 %v760
  %v2547 = vpop.f32.mrf.mxu0
  %v2548 = vadd.f32 0.0, %v2547
  %2549 = vmatmul.f32.gmra.mxu0 %v763
  %v2550 = vpop.f32.mrf.mxu0
  %v2551 = vadd.f32 0.0, %v2550
  %2552 = vmatmul.f32.gmra.mxu0 %v766
  %v2553 = vpop.f32.mrf.mxu0
  %v2554 = vadd.f32 0.0, %v2553
  %2555 = vdwg.mxu0
  %2556 = vmatpush.msra.mxu0 0.0
  %2557 = vmatpush.msra.mxu0 0.0
  %2558 = vmatpush.msra.mxu0 0.0
  %2559 = vmatpush.msra.mxu0 0.0
  %2560 = vmatpush.msra.mxu0 0.0
  %2561 = vmatpush.msra.mxu0 0.0
  %2562 = vmatpush.msra.mxu0 0.0
  %2563 = vmatpush.msra.mxu0 0.0
  %2564 = vmatpush.msra.mxu0 %v2354
  %2565 = vmatpush.msra.mxu0 %v2352
  %2566 = vmatpush.msra.mxu0 %v2350
  %2567 = vmatpush.msra.mxu0 %v2348
  %2568 = vmatpush.msra.mxu0 %v2346
  %2569 = vmatpush.msra.mxu0 %v2344
  %2570 = vmatpush.msra.mxu0 %v2342
  %2571 = vmatpush.msra.mxu0 %v2340
  %2572 = vmatmul.f32.gmra.mxu0 %v673
  %v2573 = vpop.f32.mrf.mxu0
  %v2574 = vadd.f32 1e-16, %v2573
  %2575 = vmatmul.f32.gmra.mxu0 %v676
  %v2576 = vpop.f32.mrf.mxu0
  %v2577 = vadd.f32 1e-16, %v2576
  %2578 = vmatmul.f32.gmra.mxu0 %v679
  %v2579 = vpop.f32.mrf.mxu0
  %v2580 = vadd.f32 1e-16, %v2579
  %2581 = vmatmul.f32.gmra.mxu0 %v682
  %v2582 = vpop.f32.mrf.mxu0
  %v2583 = vadd.f32 1e-16, %v2582
  %2584 = vmatmul.f32.gmra.mxu0 %v685
  %v2585 = vpop.f32.mrf.mxu0
  %v2586 = vadd.f32 1e-16, %v2585
  %2587 = vmatmul.f32.gmra.mxu0 %v688
  %v2588 = vpop.f32.mrf.mxu0
  %v2589 = vadd.f32 1e-16, %v2588
  %2590 = vmatmul.f32.gmra.mxu0 %v691
  %v2591 = vpop.f32.mrf.mxu0
  %v2592 = vadd.f32 1e-16, %v2591
  %2593 = vmatmul.f32.gmra.mxu0 %v694
  %v2594 = vpop.f32.mrf.mxu0
  %v2595 = vadd.f32 1e-16, %v2594
  %2596 = vmatmul.f32.gmra.mxu0 %v697
  %v2597 = vpop.f32.mrf.mxu0
  %v2598 = vadd.f32 1e-16, %v2597
  %2599 = vmatmul.f32.gmra.mxu0 %v700
  %v2600 = vpop.f32.mrf.mxu0
  %v2601 = vadd.f32 1e-16, %v2600
  %2602 = vmatmul.f32.gmra.mxu0 %v703
  %v2603 = vpop.f32.mrf.mxu0
  %v2604 = vadd.f32 1e-16, %v2603
  %2605 = vmatmul.f32.gmra.mxu0 %v706
  %v2606 = vpop.f32.mrf.mxu0
  %v2607 = vadd.f32 1e-16, %v2606
  %2608 = vmatmul.f32.gmra.mxu0 %v709
  %v2609 = vpop.f32.mrf.mxu0
  %v2610 = vadd.f32 1e-16, %v2609
  %2611 = vmatmul.f32.gmra.mxu0 %v712
  %v2612 = vpop.f32.mrf.mxu0
  %v2613 = vadd.f32 1e-16, %v2612
  %2614 = vmatmul.f32.gmra.mxu0 %v715
  %v2615 = vpop.f32.mrf.mxu0
  %v2616 = vadd.f32 1e-16, %v2615
  %2617 = vmatmul.f32.gmra.mxu0 %v718
  %v2618 = vpop.f32.mrf.mxu0
  %v2619 = vadd.f32 1e-16, %v2618
  %2620 = vmatmul.f32.gmra.mxu0 %v721
  %v2621 = vpop.f32.mrf.mxu0
  %v2622 = vadd.f32 1e-16, %v2621
  %2623 = vmatmul.f32.gmra.mxu0 %v724
  %v2624 = vpop.f32.mrf.mxu0
  %v2625 = vadd.f32 1e-16, %v2624
  %2626 = vmatmul.f32.gmra.mxu0 %v727
  %v2627 = vpop.f32.mrf.mxu0
  %v2628 = vadd.f32 1e-16, %v2627
  %2629 = vmatmul.f32.gmra.mxu0 %v730
  %v2630 = vpop.f32.mrf.mxu0
  %v2631 = vadd.f32 1e-16, %v2630
  %2632 = vmatmul.f32.gmra.mxu0 %v733
  %v2633 = vpop.f32.mrf.mxu0
  %v2634 = vadd.f32 1e-16, %v2633
  %2635 = vmatmul.f32.gmra.mxu0 %v736
  %v2636 = vpop.f32.mrf.mxu0
  %v2637 = vadd.f32 1e-16, %v2636
  %2638 = vmatmul.f32.gmra.mxu0 %v739
  %v2639 = vpop.f32.mrf.mxu0
  %v2640 = vadd.f32 1e-16, %v2639
  %2641 = vmatmul.f32.gmra.mxu0 %v742
  %v2642 = vpop.f32.mrf.mxu0
  %v2643 = vadd.f32 1e-16, %v2642
  %2644 = vmatmul.f32.gmra.mxu0 %v745
  %v2645 = vpop.f32.mrf.mxu0
  %v2646 = vadd.f32 1e-16, %v2645
  %2647 = vmatmul.f32.gmra.mxu0 %v748
  %v2648 = vpop.f32.mrf.mxu0
  %v2649 = vadd.f32 1e-16, %v2648
  %2650 = vmatmul.f32.gmra.mxu0 %v751
  %v2651 = vpop.f32.mrf.mxu0
  %v2652 = vadd.f32 1e-16, %v2651
  %2653 = vmatmul.f32.gmra.mxu0 %v754
  %v2654 = vpop.f32.mrf.mxu0
  %v2655 = vadd.f32 1e-16, %v2654
  %2656 = vmatmul.f32.gmra.mxu0 %v757
  %v2657 = vpop.f32.mrf.mxu0
  %v2658 = vadd.f32 1e-16, %v2657
  %2659 = vmatmul.f32.gmra.mxu0 %v760
  %v2660 = vpop.f32.mrf.mxu0
  %v2661 = vadd.f32 1e-16, %v2660
  %2662 = vmatmul.f32.gmra.mxu0 %v763
  %v2663 = vpop.f32.mrf.mxu0
  %v2664 = vadd.f32 1e-16, %v2663
  %2665 = vmatmul.f32.gmra.mxu0 %v766
  %v2666 = vpop.f32.mrf.mxu0
  %v2667 = vadd.f32 1e-16, %v2666
  %2668 = vdwg.mxu0
  %v2669 = vrcp.pop %v2574
  %v2670 = vmul.f32 %v2574, %v2669
  %v2671 = vsub.f32 1.0, %v2670
  %v2672 = vmul.f32 %v2669, %v2671
  %v2673 = vadd.f32 %v2669, %v2672
  %vm2674 = vweird.f32 %v2574
  %vm2675 = vweird.f32 %v2669
  %vm2676 = vmor %vm2674, %vm2675
  %v2677 = vsel %vm2676, %v2669, %v2673
  %v2678 = vand.u32 2147483647, %v2574
  %vm2679 = vcmp.eq.f32.partialorder %v2678, 8.507059e+37
  %v2680 = vand.u32 %v2574, 2147483648
  %v2681 = vor.u32 1.1754944e-38, %v2680
  %v2682 = vsel %vm2679, %v2681, %v2677
  %v2683 = vmul.f32 1.0, %v2682
  %v2684 = vrcp.pop %v2577
  %v2685 = vmul.f32 %v2577, %v2684
  %v2686 = vsub.f32 1.0, %v2685
  %v2687 = vmul.f32 %v2684, %v2686
  %v2688 = vadd.f32 %v2684, %v2687
  %vm2689 = vweird.f32 %v2577
  %vm2690 = vweird.f32 %v2684
  %vm2691 = vmor %vm2689, %vm2690
  %v2692 = vsel %vm2691, %v2684, %v2688
  %v2693 = vand.u32 2147483647, %v2577
  %vm2694 = vcmp.eq.f32.partialorder %v2693, 8.507059e+37
  %v2695 = vand.u32 %v2577, 2147483648
  %v2696 = vor.u32 1.1754944e-38, %v2695
  %v2697 = vsel %vm2694, %v2696, %v2692
  %v2698 = vmul.f32 1.0, %v2697
  %v2699 = vrcp.pop %v2580
  %v2700 = vmul.f32 %v2580, %v2699
  %v2701 = vsub.f32 1.0, %v2700
  %v2702 = vmul.f32 %v2699, %v2701
  %v2703 = vadd.f32 %v2699, %v2702
  %vm2704 = vweird.f32 %v2580
  %vm2705 = vweird.f32 %v2699
  %vm2706 = vmor %vm2704, %vm2705
  %v2707 = vsel %vm2706, %v2699, %v2703
  %v2708 = vand.u32 2147483647, %v2580
  %vm2709 = vcmp.eq.f32.partialorder %v2708, 8.507059e+37
  %v2710 = vand.u32 %v2580, 2147483648
  %v2711 = vor.u32 1.1754944e-38, %v2710
  %v2712 = vsel %vm2709, %v2711, %v2707
  %v2713 = vmul.f32 1.0, %v2712
  %v2714 = vrcp.pop %v2583
  %v2715 = vmul.f32 %v2583, %v2714
  %v2716 = vsub.f32 1.0, %v2715
  %v2717 = vmul.f32 %v2714, %v2716
  %v2718 = vadd.f32 %v2714, %v2717
  %vm2719 = vweird.f32 %v2583
  %vm2720 = vweird.f32 %v2714
  %vm2721 = vmor %vm2719, %vm2720
  %v2722 = vsel %vm2721, %v2714, %v2718
  %v2723 = vand.u32 2147483647, %v2583
  %vm2724 = vcmp.eq.f32.partialorder %v2723, 8.507059e+37
  %v2725 = vand.u32 %v2583, 2147483648
  %v2726 = vor.u32 1.1754944e-38, %v2725
  %v2727 = vsel %vm2724, %v2726, %v2722
  %v2728 = vmul.f32 1.0, %v2727
  %v2729 = vrcp.pop %v2586
  %v2730 = vmul.f32 %v2586, %v2729
  %v2731 = vsub.f32 1.0, %v2730
  %v2732 = vmul.f32 %v2729, %v2731
  %v2733 = vadd.f32 %v2729, %v2732
  %vm2734 = vweird.f32 %v2586
  %vm2735 = vweird.f32 %v2729
  %vm2736 = vmor %vm2734, %vm2735
  %v2737 = vsel %vm2736, %v2729, %v2733
  %v2738 = vand.u32 2147483647, %v2586
  %vm2739 = vcmp.eq.f32.partialorder %v2738, 8.507059e+37
  %v2740 = vand.u32 %v2586, 2147483648
  %v2741 = vor.u32 1.1754944e-38, %v2740
  %v2742 = vsel %vm2739, %v2741, %v2737
  %v2743 = vmul.f32 1.0, %v2742
  %v2744 = vrcp.pop %v2589
  %v2745 = vmul.f32 %v2589, %v2744
  %v2746 = vsub.f32 1.0, %v2745
  %v2747 = vmul.f32 %v2744, %v2746
  %v2748 = vadd.f32 %v2744, %v2747
  %vm2749 = vweird.f32 %v2589
  %vm2750 = vweird.f32 %v2744
  %vm2751 = vmor %vm2749, %vm2750
  %v2752 = vsel %vm2751, %v2744, %v2748
  %v2753 = vand.u32 2147483647, %v2589
  %vm2754 = vcmp.eq.f32.partialorder %v2753, 8.507059e+37
  %v2755 = vand.u32 %v2589, 2147483648
  %v2756 = vor.u32 1.1754944e-38, %v2755
  %v2757 = vsel %vm2754, %v2756, %v2752
  %v2758 = vmul.f32 1.0, %v2757
  %v2759 = vrcp.pop %v2592
  %v2760 = vmul.f32 %v2592, %v2759
  %v2761 = vsub.f32 1.0, %v2760
  %v2762 = vmul.f32 %v2759, %v2761
  %v2763 = vadd.f32 %v2759, %v2762
  %vm2764 = vweird.f32 %v2592
  %vm2765 = vweird.f32 %v2759
  %vm2766 = vmor %vm2764, %vm2765
  %v2767 = vsel %vm2766, %v2759, %v2763
  %v2768 = vand.u32 2147483647, %v2592
  %vm2769 = vcmp.eq.f32.partialorder %v2768, 8.507059e+37
  %v2770 = vand.u32 %v2592, 2147483648
  %v2771 = vor.u32 1.1754944e-38, %v2770
  %v2772 = vsel %vm2769, %v2771, %v2767
  %v2773 = vmul.f32 1.0, %v2772
  %v2774 = vrcp.pop %v2595
  %v2775 = vmul.f32 %v2595, %v2774
  %v2776 = vsub.f32 1.0, %v2775
  %v2777 = vmul.f32 %v2774, %v2776
  %v2778 = vadd.f32 %v2774, %v2777
  %vm2779 = vweird.f32 %v2595
  %vm2780 = vweird.f32 %v2774
  %vm2781 = vmor %vm2779, %vm2780
  %v2782 = vsel %vm2781, %v2774, %v2778
  %v2783 = vand.u32 2147483647, %v2595
  %vm2784 = vcmp.eq.f32.partialorder %v2783, 8.507059e+37
  %v2785 = vand.u32 %v2595, 2147483648
  %v2786 = vor.u32 1.1754944e-38, %v2785
  %v2787 = vsel %vm2784, %v2786, %v2782
  %v2788 = vmul.f32 1.0, %v2787
  %v2789 = vrcp.pop %v2598
  %v2790 = vmul.f32 %v2598, %v2789
  %v2791 = vsub.f32 1.0, %v2790
  %v2792 = vmul.f32 %v2789, %v2791
  %v2793 = vadd.f32 %v2789, %v2792
  %vm2794 = vweird.f32 %v2598
  %vm2795 = vweird.f32 %v2789
  %vm2796 = vmor %vm2794, %vm2795
  %v2797 = vsel %vm2796, %v2789, %v2793
  %v2798 = vand.u32 2147483647, %v2598
  %vm2799 = vcmp.eq.f32.partialorder %v2798, 8.507059e+37
  %v2800 = vand.u32 %v2598, 2147483648
  %v2801 = vor.u32 1.1754944e-38, %v2800
  %v2802 = vsel %vm2799, %v2801, %v2797
  %v2803 = vmul.f32 1.0, %v2802
  %v2804 = vrcp.pop %v2601
  %v2805 = vmul.f32 %v2601, %v2804
  %v2806 = vsub.f32 1.0, %v2805
  %v2807 = vmul.f32 %v2804, %v2806
  %v2808 = vadd.f32 %v2804, %v2807
  %vm2809 = vweird.f32 %v2601
  %vm2810 = vweird.f32 %v2804
  %vm2811 = vmor %vm2809, %vm2810
  %v2812 = vsel %vm2811, %v2804, %v2808
  %v2813 = vand.u32 2147483647, %v2601
  %vm2814 = vcmp.eq.f32.partialorder %v2813, 8.507059e+37
  %v2815 = vand.u32 %v2601, 2147483648
  %v2816 = vor.u32 1.1754944e-38, %v2815
  %v2817 = vsel %vm2814, %v2816, %v2812
  %v2818 = vmul.f32 1.0, %v2817
  %v2819 = vrcp.pop %v2604
  %v2820 = vmul.f32 %v2604, %v2819
  %v2821 = vsub.f32 1.0, %v2820
  %v2822 = vmul.f32 %v2819, %v2821
  %v2823 = vadd.f32 %v2819, %v2822
  %vm2824 = vweird.f32 %v2604
  %vm2825 = vweird.f32 %v2819
  %vm2826 = vmor %vm2824, %vm2825
  %v2827 = vsel %vm2826, %v2819, %v2823
  %v2828 = vand.u32 2147483647, %v2604
  %vm2829 = vcmp.eq.f32.partialorder %v2828, 8.507059e+37
  %v2830 = vand.u32 %v2604, 2147483648
  %v2831 = vor.u32 1.1754944e-38, %v2830
  %v2832 = vsel %vm2829, %v2831, %v2827
  %v2833 = vmul.f32 1.0, %v2832
  %v2834 = vrcp.pop %v2607
  %v2835 = vmul.f32 %v2607, %v2834
  %v2836 = vsub.f32 1.0, %v2835
  %v2837 = vmul.f32 %v2834, %v2836
  %v2838 = vadd.f32 %v2834, %v2837
  %vm2839 = vweird.f32 %v2607
  %vm2840 = vweird.f32 %v2834
  %vm2841 = vmor %vm2839, %vm2840
  %v2842 = vsel %vm2841, %v2834, %v2838
  %v2843 = vand.u32 2147483647, %v2607
  %vm2844 = vcmp.eq.f32.partialorder %v2843, 8.507059e+37
  %v2845 = vand.u32 %v2607, 2147483648
  %v2846 = vor.u32 1.1754944e-38, %v2845
  %v2847 = vsel %vm2844, %v2846, %v2842
  %v2848 = vmul.f32 1.0, %v2847
  %v2849 = vrcp.pop %v2610
  %v2850 = vmul.f32 %v2610, %v2849
  %v2851 = vsub.f32 1.0, %v2850
  %v2852 = vmul.f32 %v2849, %v2851
  %v2853 = vadd.f32 %v2849, %v2852
  %vm2854 = vweird.f32 %v2610
  %vm2855 = vweird.f32 %v2849
  %vm2856 = vmor %vm2854, %vm2855
  %v2857 = vsel %vm2856, %v2849, %v2853
  %v2858 = vand.u32 2147483647, %v2610
  %vm2859 = vcmp.eq.f32.partialorder %v2858, 8.507059e+37
  %v2860 = vand.u32 %v2610, 2147483648
  %v2861 = vor.u32 1.1754944e-38, %v2860
  %v2862 = vsel %vm2859, %v2861, %v2857
  %v2863 = vmul.f32 1.0, %v2862
  %v2864 = vrcp.pop %v2613
  %v2865 = vmul.f32 %v2613, %v2864
  %v2866 = vsub.f32 1.0, %v2865
  %v2867 = vmul.f32 %v2864, %v2866
  %v2868 = vadd.f32 %v2864, %v2867
  %vm2869 = vweird.f32 %v2613
  %vm2870 = vweird.f32 %v2864
  %vm2871 = vmor %vm2869, %vm2870
  %v2872 = vsel %vm2871, %v2864, %v2868
  %v2873 = vand.u32 2147483647, %v2613
  %vm2874 = vcmp.eq.f32.partialorder %v2873, 8.507059e+37
  %v2875 = vand.u32 %v2613, 2147483648
  %v2876 = vor.u32 1.1754944e-38, %v2875
  %v2877 = vsel %vm2874, %v2876, %v2872
  %v2878 = vmul.f32 1.0, %v2877
  %v2879 = vrcp.pop %v2616
  %v2880 = vmul.f32 %v2616, %v2879
  %v2881 = vsub.f32 1.0, %v2880
  %v2882 = vmul.f32 %v2879, %v2881
  %v2883 = vadd.f32 %v2879, %v2882
  %vm2884 = vweird.f32 %v2616
  %vm2885 = vweird.f32 %v2879
  %vm2886 = vmor %vm2884, %vm2885
  %v2887 = vsel %vm2886, %v2879, %v2883
  %v2888 = vand.u32 2147483647, %v2616
  %vm2889 = vcmp.eq.f32.partialorder %v2888, 8.507059e+37
  %v2890 = vand.u32 %v2616, 2147483648
  %v2891 = vor.u32 1.1754944e-38, %v2890
  %v2892 = vsel %vm2889, %v2891, %v2887
  %v2893 = vmul.f32 1.0, %v2892
  %v2894 = vrcp.pop %v2619
  %v2895 = vmul.f32 %v2619, %v2894
  %v2896 = vsub.f32 1.0, %v2895
  %v2897 = vmul.f32 %v2894, %v2896
  %v2898 = vadd.f32 %v2894, %v2897
  %vm2899 = vweird.f32 %v2619
  %vm2900 = vweird.f32 %v2894
  %vm2901 = vmor %vm2899, %vm2900
  %v2902 = vsel %vm2901, %v2894, %v2898
  %v2903 = vand.u32 2147483647, %v2619
  %vm2904 = vcmp.eq.f32.partialorder %v2903, 8.507059e+37
  %v2905 = vand.u32 %v2619, 2147483648
  %v2906 = vor.u32 1.1754944e-38, %v2905
  %v2907 = vsel %vm2904, %v2906, %v2902
  %v2908 = vmul.f32 1.0, %v2907
  %v2909 = vrcp.pop %v2622
  %v2910 = vmul.f32 %v2622, %v2909
  %v2911 = vsub.f32 1.0, %v2910
  %v2912 = vmul.f32 %v2909, %v2911
  %v2913 = vadd.f32 %v2909, %v2912
  %vm2914 = vweird.f32 %v2622
  %vm2915 = vweird.f32 %v2909
  %vm2916 = vmor %vm2914, %vm2915
  %v2917 = vsel %vm2916, %v2909, %v2913
  %v2918 = vand.u32 2147483647, %v2622
  %vm2919 = vcmp.eq.f32.partialorder %v2918, 8.507059e+37
  %v2920 = vand.u32 %v2622, 2147483648
  %v2921 = vor.u32 1.1754944e-38, %v2920
  %v2922 = vsel %vm2919, %v2921, %v2917
  %v2923 = vmul.f32 1.0, %v2922
  %v2924 = vrcp.pop %v2625
  %v2925 = vmul.f32 %v2625, %v2924
  %v2926 = vsub.f32 1.0, %v2925
  %v2927 = vmul.f32 %v2924, %v2926
  %v2928 = vadd.f32 %v2924, %v2927
  %vm2929 = vweird.f32 %v2625
  %vm2930 = vweird.f32 %v2924
  %vm2931 = vmor %vm2929, %vm2930
  %v2932 = vsel %vm2931, %v2924, %v2928
  %v2933 = vand.u32 2147483647, %v2625
  %vm2934 = vcmp.eq.f32.partialorder %v2933, 8.507059e+37
  %v2935 = vand.u32 %v2625, 2147483648
  %v2936 = vor.u32 1.1754944e-38, %v2935
  %v2937 = vsel %vm2934, %v2936, %v2932
  %v2938 = vmul.f32 1.0, %v2937
  %v2939 = vrcp.pop %v2628
  %v2940 = vmul.f32 %v2628, %v2939
  %v2941 = vsub.f32 1.0, %v2940
  %v2942 = vmul.f32 %v2939, %v2941
  %v2943 = vadd.f32 %v2939, %v2942
  %vm2944 = vweird.f32 %v2628
  %vm2945 = vweird.f32 %v2939
  %vm2946 = vmor %vm2944, %vm2945
  %v2947 = vsel %vm2946, %v2939, %v2943
  %v2948 = vand.u32 2147483647, %v2628
  %vm2949 = vcmp.eq.f32.partialorder %v2948, 8.507059e+37
  %v2950 = vand.u32 %v2628, 2147483648
  %v2951 = vor.u32 1.1754944e-38, %v2950
  %v2952 = vsel %vm2949, %v2951, %v2947
  %v2953 = vmul.f32 1.0, %v2952
  %v2954 = vrcp.pop %v2631
  %v2955 = vmul.f32 %v2631, %v2954
  %v2956 = vsub.f32 1.0, %v2955
  %v2957 = vmul.f32 %v2954, %v2956
  %v2958 = vadd.f32 %v2954, %v2957
  %vm2959 = vweird.f32 %v2631
  %vm2960 = vweird.f32 %v2954
  %vm2961 = vmor %vm2959, %vm2960
  %v2962 = vsel %vm2961, %v2954, %v2958
  %v2963 = vand.u32 2147483647, %v2631
  %vm2964 = vcmp.eq.f32.partialorder %v2963, 8.507059e+37
  %v2965 = vand.u32 %v2631, 2147483648
  %v2966 = vor.u32 1.1754944e-38, %v2965
  %v2967 = vsel %vm2964, %v2966, %v2962
  %v2968 = vmul.f32 1.0, %v2967
  %v2969 = vrcp.pop %v2634
  %v2970 = vmul.f32 %v2634, %v2969
  %v2971 = vsub.f32 1.0, %v2970
  %v2972 = vmul.f32 %v2969, %v2971
  %v2973 = vadd.f32 %v2969, %v2972
  %vm2974 = vweird.f32 %v2634
  %vm2975 = vweird.f32 %v2969
  %vm2976 = vmor %vm2974, %vm2975
  %v2977 = vsel %vm2976, %v2969, %v2973
  %v2978 = vand.u32 2147483647, %v2634
  %vm2979 = vcmp.eq.f32.partialorder %v2978, 8.507059e+37
  %v2980 = vand.u32 %v2634, 2147483648
  %v2981 = vor.u32 1.1754944e-38, %v2980
  %v2982 = vsel %vm2979, %v2981, %v2977
  %v2983 = vmul.f32 1.0, %v2982
  %v2984 = vrcp.pop %v2637
  %v2985 = vmul.f32 %v2637, %v2984
  %v2986 = vsub.f32 1.0, %v2985
  %v2987 = vmul.f32 %v2984, %v2986
  %v2988 = vadd.f32 %v2984, %v2987
  %vm2989 = vweird.f32 %v2637
  %vm2990 = vweird.f32 %v2984
  %vm2991 = vmor %vm2989, %vm2990
  %v2992 = vsel %vm2991, %v2984, %v2988
  %v2993 = vand.u32 2147483647, %v2637
  %vm2994 = vcmp.eq.f32.partialorder %v2993, 8.507059e+37
  %v2995 = vand.u32 %v2637, 2147483648
  %v2996 = vor.u32 1.1754944e-38, %v2995
  %v2997 = vsel %vm2994, %v2996, %v2992
  %v2998 = vmul.f32 1.0, %v2997
  %v2999 = vrcp.pop %v2640
  %v3000 = vmul.f32 %v2640, %v2999
  %v3001 = vsub.f32 1.0, %v3000
  %v3002 = vmul.f32 %v2999, %v3001
  %v3003 = vadd.f32 %v2999, %v3002
  %vm3004 = vweird.f32 %v2640
  %vm3005 = vweird.f32 %v2999
  %vm3006 = vmor %vm3004, %vm3005
  %v3007 = vsel %vm3006, %v2999, %v3003
  %v3008 = vand.u32 2147483647, %v2640
  %vm3009 = vcmp.eq.f32.partialorder %v3008, 8.507059e+37
  %v3010 = vand.u32 %v2640, 2147483648
  %v3011 = vor.u32 1.1754944e-38, %v3010
  %v3012 = vsel %vm3009, %v3011, %v3007
  %v3013 = vmul.f32 1.0, %v3012
  %v3014 = vrcp.pop %v2643
  %v3015 = vmul.f32 %v2643, %v3014
  %v3016 = vsub.f32 1.0, %v3015
  %v3017 = vmul.f32 %v3014, %v3016
  %v3018 = vadd.f32 %v3014, %v3017
  %vm3019 = vweird.f32 %v2643
  %vm3020 = vweird.f32 %v3014
  %vm3021 = vmor %vm3019, %vm3020
  %v3022 = vsel %vm3021, %v3014, %v3018
  %v3023 = vand.u32 2147483647, %v2643
  %vm3024 = vcmp.eq.f32.partialorder %v3023, 8.507059e+37
  %v3025 = vand.u32 %v2643, 2147483648
  %v3026 = vor.u32 1.1754944e-38, %v3025
  %v3027 = vsel %vm3024, %v3026, %v3022
  %v3028 = vmul.f32 1.0, %v3027
  %v3029 = vrcp.pop %v2646
  %v3030 = vmul.f32 %v2646, %v3029
  %v3031 = vsub.f32 1.0, %v3030
  %v3032 = vmul.f32 %v3029, %v3031
  %v3033 = vadd.f32 %v3029, %v3032
  %vm3034 = vweird.f32 %v2646
  %vm3035 = vweird.f32 %v3029
  %vm3036 = vmor %vm3034, %vm3035
  %v3037 = vsel %vm3036, %v3029, %v3033
  %v3038 = vand.u32 2147483647, %v2646
  %vm3039 = vcmp.eq.f32.partialorder %v3038, 8.507059e+37
  %v3040 = vand.u32 %v2646, 2147483648
  %v3041 = vor.u32 1.1754944e-38, %v3040
  %v3042 = vsel %vm3039, %v3041, %v3037
  %v3043 = vmul.f32 1.0, %v3042
  %v3044 = vrcp.pop %v2649
  %v3045 = vmul.f32 %v2649, %v3044
  %v3046 = vsub.f32 1.0, %v3045
  %v3047 = vmul.f32 %v3044, %v3046
  %v3048 = vadd.f32 %v3044, %v3047
  %vm3049 = vweird.f32 %v2649
  %vm3050 = vweird.f32 %v3044
  %vm3051 = vmor %vm3049, %vm3050
  %v3052 = vsel %vm3051, %v3044, %v3048
  %v3053 = vand.u32 2147483647, %v2649
  %vm3054 = vcmp.eq.f32.partialorder %v3053, 8.507059e+37
  %v3055 = vand.u32 %v2649, 2147483648
  %v3056 = vor.u32 1.1754944e-38, %v3055
  %v3057 = vsel %vm3054, %v3056, %v3052
  %v3058 = vmul.f32 1.0, %v3057
  %v3059 = vrcp.pop %v2652
  %v3060 = vmul.f32 %v2652, %v3059
  %v3061 = vsub.f32 1.0, %v3060
  %v3062 = vmul.f32 %v3059, %v3061
  %v3063 = vadd.f32 %v3059, %v3062
  %vm3064 = vweird.f32 %v2652
  %vm3065 = vweird.f32 %v3059
  %vm3066 = vmor %vm3064, %vm3065
  %v3067 = vsel %vm3066, %v3059, %v3063
  %v3068 = vand.u32 2147483647, %v2652
  %vm3069 = vcmp.eq.f32.partialorder %v3068, 8.507059e+37
  %v3070 = vand.u32 %v2652, 2147483648
  %v3071 = vor.u32 1.1754944e-38, %v3070
  %v3072 = vsel %vm3069, %v3071, %v3067
  %v3073 = vmul.f32 1.0, %v3072
  %v3074 = vrcp.pop %v2655
  %v3075 = vmul.f32 %v2655, %v3074
  %v3076 = vsub.f32 1.0, %v3075
  %v3077 = vmul.f32 %v3074, %v3076
  %v3078 = vadd.f32 %v3074, %v3077
  %vm3079 = vweird.f32 %v2655
  %vm3080 = vweird.f32 %v3074
  %vm3081 = vmor %vm3079, %vm3080
  %v3082 = vsel %vm3081, %v3074, %v3078
  %v3083 = vand.u32 2147483647, %v2655
  %vm3084 = vcmp.eq.f32.partialorder %v3083, 8.507059e+37
  %v3085 = vand.u32 %v2655, 2147483648
  %v3086 = vor.u32 1.1754944e-38, %v3085
  %v3087 = vsel %vm3084, %v3086, %v3082
  %v3088 = vmul.f32 1.0, %v3087
  %v3089 = vrcp.pop %v2658
  %v3090 = vmul.f32 %v2658, %v3089
  %v3091 = vsub.f32 1.0, %v3090
  %v3092 = vmul.f32 %v3089, %v3091
  %v3093 = vadd.f32 %v3089, %v3092
  %vm3094 = vweird.f32 %v2658
  %vm3095 = vweird.f32 %v3089
  %vm3096 = vmor %vm3094, %vm3095
  %v3097 = vsel %vm3096, %v3089, %v3093
  %v3098 = vand.u32 2147483647, %v2658
  %vm3099 = vcmp.eq.f32.partialorder %v3098, 8.507059e+37
  %v3100 = vand.u32 %v2658, 2147483648
  %v3101 = vor.u32 1.1754944e-38, %v3100
  %v3102 = vsel %vm3099, %v3101, %v3097
  %v3103 = vmul.f32 1.0, %v3102
  %v3104 = vrcp.pop %v2661
  %v3105 = vmul.f32 %v2661, %v3104
  %v3106 = vsub.f32 1.0, %v3105
  %v3107 = vmul.f32 %v3104, %v3106
  %v3108 = vadd.f32 %v3104, %v3107
  %vm3109 = vweird.f32 %v2661
  %vm3110 = vweird.f32 %v3104
  %vm3111 = vmor %vm3109, %vm3110
  %v3112 = vsel %vm3111, %v3104, %v3108
  %v3113 = vand.u32 2147483647, %v2661
  %vm3114 = vcmp.eq.f32.partialorder %v3113, 8.507059e+37
  %v3115 = vand.u32 %v2661, 2147483648
  %v3116 = vor.u32 1.1754944e-38, %v3115
  %v3117 = vsel %vm3114, %v3116, %v3112
  %v3118 = vmul.f32 1.0, %v3117
  %v3119 = vrcp.pop %v2664
  %v3120 = vmul.f32 %v2664, %v3119
  %v3121 = vsub.f32 1.0, %v3120
  %v3122 = vmul.f32 %v3119, %v3121
  %v3123 = vadd.f32 %v3119, %v3122
  %vm3124 = vweird.f32 %v2664
  %vm3125 = vweird.f32 %v3119
  %vm3126 = vmor %vm3124, %vm3125
  %v3127 = vsel %vm3126, %v3119, %v3123
  %v3128 = vand.u32 2147483647, %v2664
  %vm3129 = vcmp.eq.f32.partialorder %v3128, 8.507059e+37
  %v3130 = vand.u32 %v2664, 2147483648
  %v3131 = vor.u32 1.1754944e-38, %v3130
  %v3132 = vsel %vm3129, %v3131, %v3127
  %v3133 = vmul.f32 1.0, %v3132
  %v3134 = vrcp.pop %v2667
  %v3135 = vmul.f32 %v2667, %v3134
  %v3136 = vsub.f32 1.0, %v3135
  %v3137 = vmul.f32 %v3134, %v3136
  %v3138 = vadd.f32 %v3134, %v3137
  %vm3139 = vweird.f32 %v2667
  %vm3140 = vweird.f32 %v3134
  %vm3141 = vmor %vm3139, %vm3140
  %v3142 = vsel %vm3141, %v3134, %v3138
  %v3143 = vand.u32 2147483647, %v2667
  %vm3144 = vcmp.eq.f32.partialorder %v3143, 8.507059e+37
  %v3145 = vand.u32 %v2667, 2147483648
  %v3146 = vor.u32 1.1754944e-38, %v3145
  %v3147 = vsel %vm3144, %v3146, %v3142
  %v3148 = vmul.f32 1.0, %v3147
  %3150 = vset.pattern.permute.xlu0 0
  %3151 = vperm.xlu0 %3150, %v2683
  %v3152 = vpop.permute.xlu0 %3151
  %3155 = vset.pattern.permute.xlu0 0
  %3156 = vperm.xlu0 %3155, %v2698
  %v3157 = vpop.permute.xlu0 %3156
  %3160 = vset.pattern.permute.xlu0 0
  %3161 = vperm.xlu0 %3160, %v2713
  %v3162 = vpop.permute.xlu0 %3161
  %3165 = vset.pattern.permute.xlu0 0
  %3166 = vperm.xlu0 %3165, %v2728
  %v3167 = vpop.permute.xlu0 %3166
  %3170 = vset.pattern.permute.xlu0 0
  %3171 = vperm.xlu0 %3170, %v2743
  %v3172 = vpop.permute.xlu0 %3171
  %3175 = vset.pattern.permute.xlu0 0
  %3176 = vperm.xlu0 %3175, %v2758
  %v3177 = vpop.permute.xlu0 %3176
  %3180 = vset.pattern.permute.xlu0 0
  %3181 = vperm.xlu0 %3180, %v2773
  %v3182 = vpop.permute.xlu0 %3181
  %3185 = vset.pattern.permute.xlu0 0
  %3186 = vperm.xlu0 %3185, %v2788
  %v3187 = vpop.permute.xlu0 %3186
  %3190 = vset.pattern.permute.xlu0 0
  %3191 = vperm.xlu0 %3190, %v2803
  %v3192 = vpop.permute.xlu0 %3191
  %3195 = vset.pattern.permute.xlu0 0
  %3196 = vperm.xlu0 %3195, %v2818
  %v3197 = vpop.permute.xlu0 %3196
  %3200 = vset.pattern.permute.xlu0 0
  %3201 = vperm.xlu0 %3200, %v2833
  %v3202 = vpop.permute.xlu0 %3201
  %3205 = vset.pattern.permute.xlu0 0
  %3206 = vperm.xlu0 %3205, %v2848
  %v3207 = vpop.permute.xlu0 %3206
  %3210 = vset.pattern.permute.xlu0 0
  %3211 = vperm.xlu0 %3210, %v2863
  %v3212 = vpop.permute.xlu0 %3211
  %3215 = vset.pattern.permute.xlu0 0
  %3216 = vperm.xlu0 %3215, %v2878
  %v3217 = vpop.permute.xlu0 %3216
  %3220 = vset.pattern.permute.xlu0 0
  %3221 = vperm.xlu0 %3220, %v2893
  %v3222 = vpop.permute.xlu0 %3221
  %3225 = vset.pattern.permute.xlu0 0
  %3226 = vperm.xlu0 %3225, %v2908
  %v3227 = vpop.permute.xlu0 %3226
  %3230 = vset.pattern.permute.xlu0 0
  %3231 = vperm.xlu0 %3230, %v2923
  %v3232 = vpop.permute.xlu0 %3231
  %3235 = vset.pattern.permute.xlu0 0
  %3236 = vperm.xlu0 %3235, %v2938
  %v3237 = vpop.permute.xlu0 %3236
  %3240 = vset.pattern.permute.xlu0 0
  %3241 = vperm.xlu0 %3240, %v2953
  %v3242 = vpop.permute.xlu0 %3241
  %3245 = vset.pattern.permute.xlu0 0
  %3246 = vperm.xlu0 %3245, %v2968
  %v3247 = vpop.permute.xlu0 %3246
  %3250 = vset.pattern.permute.xlu0 0
  %3251 = vperm.xlu0 %3250, %v2983
  %v3252 = vpop.permute.xlu0 %3251
  %3255 = vset.pattern.permute.xlu0 0
  %3256 = vperm.xlu0 %3255, %v2998
  %v3257 = vpop.permute.xlu0 %3256
  %3260 = vset.pattern.permute.xlu0 0
  %3261 = vperm.xlu0 %3260, %v3013
  %v3262 = vpop.permute.xlu0 %3261
  %3265 = vset.pattern.permute.xlu0 0
  %3266 = vperm.xlu0 %3265, %v3028
  %v3267 = vpop.permute.xlu0 %3266
  %3270 = vset.pattern.permute.xlu0 0
  %3271 = vperm.xlu0 %3270, %v3043
  %v3272 = vpop.permute.xlu0 %3271
  %3275 = vset.pattern.permute.xlu0 0
  %3276 = vperm.xlu0 %3275, %v3058
  %v3277 = vpop.permute.xlu0 %3276
  %3280 = vset.pattern.permute.xlu0 0
  %3281 = vperm.xlu0 %3280, %v3073
  %v3282 = vpop.permute.xlu0 %3281
  %3285 = vset.pattern.permute.xlu0 0
  %3286 = vperm.xlu0 %3285, %v3088
  %v3287 = vpop.permute.xlu0 %3286
  %3290 = vset.pattern.permute.xlu0 0
  %3291 = vperm.xlu0 %3290, %v3103
  %v3292 = vpop.permute.xlu0 %3291
  %3295 = vset.pattern.permute.xlu0 0
  %3296 = vperm.xlu0 %3295, %v3118
  %v3297 = vpop.permute.xlu0 %3296
  %3300 = vset.pattern.permute.xlu0 0
  %3301 = vperm.xlu0 %3300, %v3133
  %v3302 = vpop.permute.xlu0 %3301
  %3305 = vset.pattern.permute.xlu0 0
  %3306 = vperm.xlu0 %3305, %v3148
  %v3307 = vpop.permute.xlu0 %3306
  %3309 = vset.pattern.permute.xlu0 1
  %3310 = vperm.xlu0 %3309, %v2683
  %v3311 = vpop.permute.xlu0 %3310
  %3313 = vset.pattern.permute.xlu0 1
  %3314 = vperm.xlu0 %3313, %v2698
  %v3315 = vpop.permute.xlu0 %3314
  %3317 = vset.pattern.permute.xlu0 1
  %3318 = vperm.xlu0 %3317, %v2713
  %v3319 = vpop.permute.xlu0 %3318
  %3321 = vset.pattern.permute.xlu0 1
  %3322 = vperm.xlu0 %3321, %v2728
  %v3323 = vpop.permute.xlu0 %3322
  %3325 = vset.pattern.permute.xlu0 1
  %3326 = vperm.xlu0 %3325, %v2743
  %v3327 = vpop.permute.xlu0 %3326
  %3329 = vset.pattern.permute.xlu0 1
  %3330 = vperm.xlu0 %3329, %v2758
  %v3331 = vpop.permute.xlu0 %3330
  %3333 = vset.pattern.permute.xlu0 1
  %3334 = vperm.xlu0 %3333, %v2773
  %v3335 = vpop.permute.xlu0 %3334
  %3337 = vset.pattern.permute.xlu0 1
  %3338 = vperm.xlu0 %3337, %v2788
  %v3339 = vpop.permute.xlu0 %3338
  %3341 = vset.pattern.permute.xlu0 1
  %3342 = vperm.xlu0 %3341, %v2803
  %v3343 = vpop.permute.xlu0 %3342
  %3345 = vset.pattern.permute.xlu0 1
  %3346 = vperm.xlu0 %3345, %v2818
  %v3347 = vpop.permute.xlu0 %3346
  %3349 = vset.pattern.permute.xlu0 1
  %3350 = vperm.xlu0 %3349, %v2833
  %v3351 = vpop.permute.xlu0 %3350
  %3353 = vset.pattern.permute.xlu0 1
  %3354 = vperm.xlu0 %3353, %v2848
  %v3355 = vpop.permute.xlu0 %3354
  %3357 = vset.pattern.permute.xlu0 1
  %3358 = vperm.xlu0 %3357, %v2863
  %v3359 = vpop.permute.xlu0 %3358
  %3361 = vset.pattern.permute.xlu0 1
  %3362 = vperm.xlu0 %3361, %v2878
  %v3363 = vpop.permute.xlu0 %3362
  %3365 = vset.pattern.permute.xlu0 1
  %3366 = vperm.xlu0 %3365, %v2893
  %v3367 = vpop.permute.xlu0 %3366
  %3369 = vset.pattern.permute.xlu0 1
  %3370 = vperm.xlu0 %3369, %v2908
  %v3371 = vpop.permute.xlu0 %3370
  %3373 = vset.pattern.permute.xlu0 1
  %3374 = vperm.xlu0 %3373, %v2923
  %v3375 = vpop.permute.xlu0 %3374
  %3377 = vset.pattern.permute.xlu0 1
  %3378 = vperm.xlu0 %3377, %v2938
  %v3379 = vpop.permute.xlu0 %3378
  %3381 = vset.pattern.permute.xlu0 1
  %3382 = vperm.xlu0 %3381, %v2953
  %v3383 = vpop.permute.xlu0 %3382
  %3385 = vset.pattern.permute.xlu0 1
  %3386 = vperm.xlu0 %3385, %v2968
  %v3387 = vpop.permute.xlu0 %3386
  %3389 = vset.pattern.permute.xlu0 1
  %3390 = vperm.xlu0 %3389, %v2983
  %v3391 = vpop.permute.xlu0 %3390
  %3393 = vset.pattern.permute.xlu0 1
  %3394 = vperm.xlu0 %3393, %v2998
  %v3395 = vpop.permute.xlu0 %3394
  %3397 = vset.pattern.permute.xlu0 1
  %3398 = vperm.xlu0 %3397, %v3013
  %v3399 = vpop.permute.xlu0 %3398
  %3401 = vset.pattern.permute.xlu0 1
  %3402 = vperm.xlu0 %3401, %v3028
  %v3403 = vpop.permute.xlu0 %3402
  %3405 = vset.pattern.permute.xlu0 1
  %3406 = vperm.xlu0 %3405, %v3043
  %v3407 = vpop.permute.xlu0 %3406
  %3409 = vset.pattern.permute.xlu0 1
  %3410 = vperm.xlu0 %3409, %v3058
  %v3411 = vpop.permute.xlu0 %3410
  %3413 = vset.pattern.permute.xlu0 1
  %3414 = vperm.xlu0 %3413, %v3073
  %v3415 = vpop.permute.xlu0 %3414
  %3417 = vset.pattern.permute.xlu0 1
  %3418 = vperm.xlu0 %3417, %v3088
  %v3419 = vpop.permute.xlu0 %3418
  %3421 = vset.pattern.permute.xlu0 1
  %3422 = vperm.xlu0 %3421, %v3103
  %v3423 = vpop.permute.xlu0 %3422
  %3425 = vset.pattern.permute.xlu0 1
  %3426 = vperm.xlu0 %3425, %v3118
  %v3427 = vpop.permute.xlu0 %3426
  %3429 = vset.pattern.permute.xlu0 1
  %3430 = vperm.xlu0 %3429, %v3133
  %v3431 = vpop.permute.xlu0 %3430
  %3433 = vset.pattern.permute.xlu0 1
  %3434 = vperm.xlu0 %3433, %v3148
  %v3435 = vpop.permute.xlu0 %3434
  %v3437 = vsel %vm424, %v3152, %v3311
  %v3438 = vsel %vm424, %v3157, %v3315
  %v3439 = vsel %vm424, %v3162, %v3319
  %v3440 = vsel %vm424, %v3167, %v3323
  %v3441 = vsel %vm424, %v3172, %v3327
  %v3442 = vsel %vm424, %v3177, %v3331
  %v3443 = vsel %vm424, %v3182, %v3335
  %v3444 = vsel %vm424, %v3187, %v3339
  %v3445 = vsel %vm424, %v3192, %v3343
  %v3446 = vsel %vm424, %v3197, %v3347
  %v3447 = vsel %vm424, %v3202, %v3351
  %v3448 = vsel %vm424, %v3207, %v3355
  %v3449 = vsel %vm424, %v3212, %v3359
  %v3450 = vsel %vm424, %v3217, %v3363
  %v3451 = vsel %vm424, %v3222, %v3367
  %v3452 = vsel %vm424, %v3227, %v3371
  %v3453 = vsel %vm424, %v3232, %v3375
  %v3454 = vsel %vm424, %v3237, %v3379
  %v3455 = vsel %vm424, %v3242, %v3383
  %v3456 = vsel %vm424, %v3247, %v3387
  %v3457 = vsel %vm424, %v3252, %v3391
  %v3458 = vsel %vm424, %v3257, %v3395
  %v3459 = vsel %vm424, %v3262, %v3399
  %v3460 = vsel %vm424, %v3267, %v3403
  %v3461 = vsel %vm424, %v3272, %v3407
  %v3462 = vsel %vm424, %v3277, %v3411
  %v3463 = vsel %vm424, %v3282, %v3415
  %v3464 = vsel %vm424, %v3287, %v3419
  %v3465 = vsel %vm424, %v3292, %v3423
  %v3466 = vsel %vm424, %v3297, %v3427
  %v3467 = vsel %vm424, %v3302, %v3431
  %v3468 = vsel %vm424, %v3307, %v3435
  %v3469 = vmul.f32 %v3437, %v2461
  %v3470 = vmul.f32 %v3438, %v2464
  %v3471 = vmul.f32 %v3439, %v2467
  %v3472 = vmul.f32 %v3440, %v2470
  %v3473 = vmul.f32 %v3441, %v2473
  %v3474 = vmul.f32 %v3442, %v2476
  %v3475 = vmul.f32 %v3443, %v2479
  %v3476 = vmul.f32 %v3444, %v2482
  %v3477 = vmul.f32 %v3445, %v2485
  %v3478 = vmul.f32 %v3446, %v2488
  %v3479 = vmul.f32 %v3447, %v2491
  %v3480 = vmul.f32 %v3448, %v2494
  %v3481 = vmul.f32 %v3449, %v2497
  %v3482 = vmul.f32 %v3450, %v2500
  %v3483 = vmul.f32 %v3451, %v2503
  %v3484 = vmul.f32 %v3452, %v2506
  %v3485 = vmul.f32 %v3453, %v2509
  %v3486 = vmul.f32 %v3454, %v2512
  %v3487 = vmul.f32 %v3455, %v2515
  %v3488 = vmul.f32 %v3456, %v2518
  %v3489 = vmul.f32 %v3457, %v2521
  %v3490 = vmul.f32 %v3458, %v2524
  %v3491 = vmul.f32 %v3459, %v2527
  %v3492 = vmul.f32 %v3460, %v2530
  %v3493 = vmul.f32 %v3461, %v2533
  %v3494 = vmul.f32 %v3462, %v2536
  %v3495 = vmul.f32 %v3463, %v2539
  %v3496 = vmul.f32 %v3464, %v2542
  %v3497 = vmul.f32 %v3465, %v2545
  %v3498 = vmul.f32 %v3466, %v2548
  %v3499 = vmul.f32 %v3467, %v2551
  %v3500 = vmul.f32 %v3468, %v2554
  %v3501 = vadd.f32 %v3469, %v2010
  %v3502 = vadd.f32 %v3470, %v2013
  %v3503 = vadd.f32 %v3471, %v2016
  %v3504 = vadd.f32 %v3472, %v2019
  %v3505 = vadd.f32 %v3473, %v2022
  %v3506 = vadd.f32 %v3474, %v2025
  %v3507 = vadd.f32 %v3475, %v2028
  %v3508 = vadd.f32 %v3476, %v2031
  %v3509 = vadd.f32 %v3477, %v2034
  %v3510 = vadd.f32 %v3478, %v2037
  %v3511 = vadd.f32 %v3479, %v2040
  %v3512 = vadd.f32 %v3480, %v2043
  %v3513 = vadd.f32 %v3481, %v2046
  %v3514 = vadd.f32 %v3482, %v2049
  %v3515 = vadd.f32 %v3483, %v2052
  %v3516 = vadd.f32 %v3484, %v2055
  %v3517 = vadd.f32 %v3485, %v2058
  %v3518 = vadd.f32 %v3486, %v2061
  %v3519 = vadd.f32 %v3487, %v2064
  %v3520 = vadd.f32 %v3488, %v2067
  %v3521 = vadd.f32 %v3489, %v2070
  %v3522 = vadd.f32 %v3490, %v2073
  %v3523 = vadd.f32 %v3491, %v2076
  %v3524 = vadd.f32 %v3492, %v2079
  %v3525 = vadd.f32 %v3493, %v2082
  %v3526 = vadd.f32 %v3494, %v2085
  %v3527 = vadd.f32 %v3495, %v2088
  %v3528 = vadd.f32 %v3496, %v2091
  %v3529 = vadd.f32 %v3497, %v2094
  %v3530 = vadd.f32 %v3498, %v2097
  %v3531 = vadd.f32 %v3499, %v2100
  %v3532 = vadd.f32 %v3500, %v2103
  %v3533 = vmax.f32 %v3501, 0.0
  %v3534 = vmax.f32 %v3502, 0.0
  %v3535 = vmax.f32 %v3503, 0.0
  %v3536 = vmax.f32 %v3504, 0.0
  %v3537 = vmax.f32 %v3505, 0.0
  %v3538 = vmax.f32 %v3506, 0.0
  %v3539 = vmax.f32 %v3507, 0.0
  %v3540 = vmax.f32 %v3508, 0.0
  %v3541 = vmax.f32 %v3509, 0.0
  %v3542 = vmax.f32 %v3510, 0.0
  %v3543 = vmax.f32 %v3511, 0.0
  %v3544 = vmax.f32 %v3512, 0.0
  %v3545 = vmax.f32 %v3513, 0.0
  %v3546 = vmax.f32 %v3514, 0.0
  %v3547 = vmax.f32 %v3515, 0.0
  %v3548 = vmax.f32 %v3516, 0.0
  %v3549 = vmax.f32 %v3517, 0.0
  %v3550 = vmax.f32 %v3518, 0.0
  %v3551 = vmax.f32 %v3519, 0.0
  %v3552 = vmax.f32 %v3520, 0.0
  %v3553 = vmax.f32 %v3521, 0.0
  %v3554 = vmax.f32 %v3522, 0.0
  %v3555 = vmax.f32 %v3523, 0.0
  %v3556 = vmax.f32 %v3524, 0.0
  %v3557 = vmax.f32 %v3525, 0.0
  %v3558 = vmax.f32 %v3526, 0.0
  %v3559 = vmax.f32 %v3527, 0.0
  %v3560 = vmax.f32 %v3528, 0.0
  %v3561 = vmax.f32 %v3529, 0.0
  %v3562 = vmax.f32 %v3530, 0.0
  %v3563 = vmax.f32 %v3531, 0.0
  %v3564 = vmax.f32 %v3532, 0.0
  %v3565 = vld [vmem:[%s7] sm:$0xff]
  %v3566 = vld [vmem:[%s7 + $0x8] sm:$0xff]
  %v3567 = vld [vmem:[%s7 + $0x10] sm:$0xff]
  %v3568 = vld [vmem:[%s7 + $0x18] sm:$0xff]
  %v3569 = vld [vmem:[%s8] sm:$0x1]
  %v3571 = vsel %vm1895, %v3533, 0
  %v3574 = vsel %vm1895, %v3534, 0
  %v3577 = vsel %vm1895, %v3535, 0
  %v3580 = vsel %vm1895, %v3536, 0
  %v3583 = vsel %vm1895, %v3537, 0
  %v3586 = vsel %vm1895, %v3538, 0
  %v3589 = vsel %vm1895, %v3539, 0
  %v3592 = vsel %vm1895, %v3540, 0
  %v3595 = vsel %vm1895, %v3541, 0
  %v3598 = vsel %vm1895, %v3542, 0
  %v3601 = vsel %vm1895, %v3543, 0
  %v3604 = vsel %vm1895, %v3544, 0
  %v3607 = vsel %vm1895, %v3545, 0
  %v3610 = vsel %vm1895, %v3546, 0
  %v3613 = vsel %vm1895, %v3547, 0
  %v3616 = vsel %vm1895, %v3548, 0
  %v3619 = vsel %vm1895, %v3549, 0
  %v3622 = vsel %vm1895, %v3550, 0
  %v3625 = vsel %vm1895, %v3551, 0
  %v3628 = vsel %vm1895, %v3552, 0
  %v3631 = vsel %vm1895, %v3553, 0
  %v3634 = vsel %vm1895, %v3554, 0
  %v3637 = vsel %vm1895, %v3555, 0
  %v3640 = vsel %vm1895, %v3556, 0
  %v3643 = vsel %vm1895, %v3557, 0
  %v3646 = vsel %vm1895, %v3558, 0
  %v3649 = vsel %vm1895, %v3559, 0
  %v3652 = vsel %vm1895, %v3560, 0
  %v3655 = vsel %vm1895, %v3561, 0
  %v3658 = vsel %vm1895, %v3562, 0
  %v3661 = vsel %vm1895, %v3563, 0
  %v3664 = vsel %vm1895, %v3564, 0
  %3666 = vmatpush.msra.mxu0 0.0
  %3667 = vmatpush.msra.mxu0 0.0
  %3668 = vmatpush.msra.mxu0 0.0
  %3669 = vmatpush.msra.mxu0 0.0
  %3670 = vmatpush.msra.mxu0 0.0
  %3671 = vmatpush.msra.mxu0 0.0
  %3672 = vmatpush.msra.mxu0 0.0
  %3673 = vmatpush.msra.mxu0 0.0
  %3674 = vmatpush.msra.mxu0 0.0
  %3675 = vmatpush.msra.mxu0 0.0
  %3676 = vmatpush.msra.mxu0 0.0
  %3677 = vmatpush.msra.mxu0 0.0
  %3678 = vmatpush.msra.mxu0 %v3568
  %3679 = vmatpush.msra.mxu0 %v3567
  %3680 = vmatpush.msra.mxu0 %v3566
  %3681 = vmatpush.msra.mxu0 %v3565
  %3682 = vmatmul.f32.gmra.mxu0 %v3571
  %v3683 = vpop.f32.mrf.mxu0
  %v3684 = vadd.f32 0.0, %v3683
  %3685 = vmatmul.f32.gmra.mxu0 %v3574
  %v3686 = vpop.f32.mrf.mxu0
  %v3687 = vadd.f32 0.0, %v3686
  %3688 = vmatmul.f32.gmra.mxu0 %v3577
  %v3689 = vpop.f32.mrf.mxu0
  %v3690 = vadd.f32 0.0, %v3689
  %3691 = vmatmul.f32.gmra.mxu0 %v3580
  %v3692 = vpop.f32.mrf.mxu0
  %v3693 = vadd.f32 0.0, %v3692
  %3694 = vmatmul.f32.gmra.mxu0 %v3583
  %v3695 = vpop.f32.mrf.mxu0
  %v3696 = vadd.f32 0.0, %v3695
  %3697 = vmatmul.f32.gmra.mxu0 %v3586
  %v3698 = vpop.f32.mrf.mxu0
  %v3699 = vadd.f32 0.0, %v3698
  %3700 = vmatmul.f32.gmra.mxu0 %v3589
  %v3701 = vpop.f32.mrf.mxu0
  %v3702 = vadd.f32 0.0, %v3701
  %3703 = vmatmul.f32.gmra.mxu0 %v3592
  %v3704 = vpop.f32.mrf.mxu0
  %v3705 = vadd.f32 0.0, %v3704
  %3706 = vmatmul.f32.gmra.mxu0 %v3595
  %v3707 = vpop.f32.mrf.mxu0
  %v3708 = vadd.f32 0.0, %v3707
  %3709 = vmatmul.f32.gmra.mxu0 %v3598
  %v3710 = vpop.f32.mrf.mxu0
  %v3711 = vadd.f32 0.0, %v3710
  %3712 = vmatmul.f32.gmra.mxu0 %v3601
  %v3713 = vpop.f32.mrf.mxu0
  %v3714 = vadd.f32 0.0, %v3713
  %3715 = vmatmul.f32.gmra.mxu0 %v3604
  %v3716 = vpop.f32.mrf.mxu0
  %v3717 = vadd.f32 0.0, %v3716
  %3718 = vmatmul.f32.gmra.mxu0 %v3607
  %v3719 = vpop.f32.mrf.mxu0
  %v3720 = vadd.f32 0.0, %v3719
  %3721 = vmatmul.f32.gmra.mxu0 %v3610
  %v3722 = vpop.f32.mrf.mxu0
  %v3723 = vadd.f32 0.0, %v3722
  %3724 = vmatmul.f32.gmra.mxu0 %v3613
  %v3725 = vpop.f32.mrf.mxu0
  %v3726 = vadd.f32 0.0, %v3725
  %3727 = vmatmul.f32.gmra.mxu0 %v3616
  %v3728 = vpop.f32.mrf.mxu0
  %v3729 = vadd.f32 0.0, %v3728
  %3730 = vmatmul.f32.gmra.mxu0 %v3619
  %v3731 = vpop.f32.mrf.mxu0
  %v3732 = vadd.f32 0.0, %v3731
  %3733 = vmatmul.f32.gmra.mxu0 %v3622
  %v3734 = vpop.f32.mrf.mxu0
  %v3735 = vadd.f32 0.0, %v3734
  %3736 = vmatmul.f32.gmra.mxu0 %v3625
  %v3737 = vpop.f32.mrf.mxu0
  %v3738 = vadd.f32 0.0, %v3737
  %3739 = vmatmul.f32.gmra.mxu0 %v3628
  %v3740 = vpop.f32.mrf.mxu0
  %v3741 = vadd.f32 0.0, %v3740
  %3742 = vmatmul.f32.gmra.mxu0 %v3631
  %v3743 = vpop.f32.mrf.mxu0
  %v3744 = vadd.f32 0.0, %v3743
  %3745 = vmatmul.f32.gmra.mxu0 %v3634
  %v3746 = vpop.f32.mrf.mxu0
  %v3747 = vadd.f32 0.0, %v3746
  %3748 = vmatmul.f32.gmra.mxu0 %v3637
  %v3749 = vpop.f32.mrf.mxu0
  %v3750 = vadd.f32 0.0, %v3749
  %3751 = vmatmul.f32.gmra.mxu0 %v3640
  %v3752 = vpop.f32.mrf.mxu0
  %v3753 = vadd.f32 0.0, %v3752
  %3754 = vmatmul.f32.gmra.mxu0 %v3643
  %v3755 = vpop.f32.mrf.mxu0
  %v3756 = vadd.f32 0.0, %v3755
  %3757 = vmatmul.f32.gmra.mxu0 %v3646
  %v3758 = vpop.f32.mrf.mxu0
  %v3759 = vadd.f32 0.0, %v3758
  %3760 = vmatmul.f32.gmra.mxu0 %v3649
  %v3761 = vpop.f32.mrf.mxu0
  %v3762 = vadd.f32 0.0, %v3761
  %3763 = vmatmul.f32.gmra.mxu0 %v3652
  %v3764 = vpop.f32.mrf.mxu0
  %v3765 = vadd.f32 0.0, %v3764
  %3766 = vmatmul.f32.gmra.mxu0 %v3655
  %v3767 = vpop.f32.mrf.mxu0
  %v3768 = vadd.f32 0.0, %v3767
  %3769 = vmatmul.f32.gmra.mxu0 %v3658
  %v3770 = vpop.f32.mrf.mxu0
  %v3771 = vadd.f32 0.0, %v3770
  %3772 = vmatmul.f32.gmra.mxu0 %v3661
  %v3773 = vpop.f32.mrf.mxu0
  %v3774 = vadd.f32 0.0, %v3773
  %3775 = vmatmul.f32.gmra.mxu0 %v3664
  %v3776 = vpop.f32.mrf.mxu0
  %v3777 = vadd.f32 0.0, %v3776
  %3778 = vdwg.mxu0
  %3779 = vmatpush.msra.mxu0 %v3729
  %3780 = vmatpush.msra.mxu0 %v3726
  %3781 = vmatpush.msra.mxu0 %v3723
  %3782 = vmatpush.msra.mxu0 %v3720
  %3783 = vmatpush.msra.mxu0 %v3717
  %3784 = vmatpush.msra.mxu0 %v3714
  %3785 = vmatpush.msra.mxu0 %v3711
  %3786 = vmatpush.msra.mxu0 %v3708
  %3787 = vmatpush.msra.mxu0 %v3705
  %3788 = vmatpush.msra.mxu0 %v3702
  %3789 = vmatpush.msra.mxu0 %v3699
  %3790 = vmatpush.msra.mxu0 %v3696
  %3791 = vmatpush.msra.mxu0 %v3693
  %3792 = vmatpush.msra.mxu0 %v3690
  %3793 = vmatpush.msra.mxu0 %v3687
  %3794 = vmatpush.msra.mxu0 %v3684
  %3795 = vmatmul.f32.gmra.mxu0 %v64
  %v3796 = vpop.f32.mrf.mxu0
  %v3797 = vadd.f32 0.0, %v3796
  %3798 = vmatmul.f32.gmra.mxu0 %v66
  %v3799 = vpop.f32.mrf.mxu0
  %v3800 = vadd.f32 0.0, %v3799
  %3801 = vmatmul.f32.gmra.mxu0 %v68
  %v3802 = vpop.f32.mrf.mxu0
  %v3803 = vadd.f32 0.0, %v3802
  %3804 = vmatmul.f32.gmra.mxu0 %v70
  %v3805 = vpop.f32.mrf.mxu0
  %v3806 = vadd.f32 0.0, %v3805
  %3807 = vmatmul.f32.gmra.mxu0 %v72
  %v3808 = vpop.f32.mrf.mxu0
  %v3809 = vadd.f32 0.0, %v3808
  %3810 = vmatmul.f32.gmra.mxu0 %v74
  %v3811 = vpop.f32.mrf.mxu0
  %v3812 = vadd.f32 0.0, %v3811
  %3813 = vmatmul.f32.gmra.mxu0 %v76
  %v3814 = vpop.f32.mrf.mxu0
  %v3815 = vadd.f32 0.0, %v3814
  %3816 = vmatmul.f32.gmra.mxu0 %v78
  %v3817 = vpop.f32.mrf.mxu0
  %v3818 = vadd.f32 0.0, %v3817
  %3819 = vdwg.mxu0
  %3820 = vmatpush.msra.mxu0 %v3777
  %3821 = vmatpush.msra.mxu0 %v3774
  %3822 = vmatpush.msra.mxu0 %v3771
  %3823 = vmatpush.msra.mxu0 %v3768
  %3824 = vmatpush.msra.mxu0 %v3765
  %3825 = vmatpush.msra.mxu0 %v3762
  %3826 = vmatpush.msra.mxu0 %v3759
  %3827 = vmatpush.msra.mxu0 %v3756
  %3828 = vmatpush.msra.mxu0 %v3753
  %3829 = vmatpush.msra.mxu0 %v3750
  %3830 = vmatpush.msra.mxu0 %v3747
  %3831 = vmatpush.msra.mxu0 %v3744
  %3832 = vmatpush.msra.mxu0 %v3741
  %3833 = vmatpush.msra.mxu0 %v3738
  %3834 = vmatpush.msra.mxu0 %v3735
  %3835 = vmatpush.msra.mxu0 %v3732
  %3836 = vmatmul.f32.gmra.mxu0 %v65
  %v3837 = vpop.f32.mrf.mxu0
  %v3838 = vadd.f32 %v3797, %v3837
  %3839 = vmatmul.f32.gmra.mxu0 %v67
  %v3840 = vpop.f32.mrf.mxu0
  %v3841 = vadd.f32 %v3800, %v3840
  %3842 = vmatmul.f32.gmra.mxu0 %v69
  %v3843 = vpop.f32.mrf.mxu0
  %v3844 = vadd.f32 %v3803, %v3843
  %3845 = vmatmul.f32.gmra.mxu0 %v71
  %v3846 = vpop.f32.mrf.mxu0
  %v3847 = vadd.f32 %v3806, %v3846
  %3848 = vmatmul.f32.gmra.mxu0 %v73
  %v3849 = vpop.f32.mrf.mxu0
  %v3850 = vadd.f32 %v3809, %v3849
  %3851 = vmatmul.f32.gmra.mxu0 %v75
  %v3852 = vpop.f32.mrf.mxu0
  %v3853 = vadd.f32 %v3812, %v3852
  %3854 = vmatmul.f32.gmra.mxu0 %v77
  %v3855 = vpop.f32.mrf.mxu0
  %v3856 = vadd.f32 %v3815, %v3855
  %3857 = vmatmul.f32.gmra.mxu0 %v79
  %v3858 = vpop.f32.mrf.mxu0
  %v3859 = vadd.f32 %v3818, %v3858
  %3860 = vdwg.mxu0
  %v3862 = vperm.slane %v3569, 0
  %v3864 = vmul.f32 %v3838, %v3862
  %v3865 = vmul.f32 %v3841, %v3862
  %v3866 = vmul.f32 %v3844, %v3862
  %v3867 = vmul.f32 %v3847, %v3862
  %v3868 = vmul.f32 %v3850, %v3862
  %v3869 = vmul.f32 %v3853, %v3862
  %v3870 = vmul.f32 %v3856, %v3862
  %v3871 = vmul.f32 %v3859, %v3862
  %vm3872 = vcmask 64512
  %v3873 = vsel %vm3872, %v3864, 0.0
  %3874 = vadd.xlane.f32.xlu0 %v3873
  %v3875 = vpop.xlane.xlu0 %3874
  %v3876 = vsel %vm3872, %v3865, 0.0
  %3877 = vadd.xlane.f32.xlu0 %v3876
  %v3878 = vpop.xlane.xlu0 %3877
  %v3879 = vsel %vm3872, %v3866, 0.0
  %3880 = vadd.xlane.f32.xlu0 %v3879
  %v3881 = vpop.xlane.xlu0 %3880
  %v3882 = vsel %vm3872, %v3867, 0.0
  %3883 = vadd.xlane.f32.xlu0 %v3882
  %v3884 = vpop.xlane.xlu0 %3883
  %v3885 = vsel %vm3872, %v3868, 0.0
  %3886 = vadd.xlane.f32.xlu0 %v3885
  %v3887 = vpop.xlane.xlu0 %3886
  %v3888 = vsel %vm3872, %v3869, 0.0
  %3889 = vadd.xlane.f32.xlu0 %v3888
  %v3890 = vpop.xlane.xlu0 %3889
  %v3891 = vsel %vm3872, %v3870, 0.0
  %3892 = vadd.xlane.f32.xlu0 %v3891
  %v3893 = vpop.xlane.xlu0 %3892
  %v3894 = vsel %vm3872, %v3871, 0.0
  %3895 = vadd.xlane.f32.xlu0 %v3894
  %v3896 = vpop.xlane.xlu0 %3895
  %vm3897 = vcmp.ge.f32.partialorder %v3875, 0.0
  %vm3898 = vcmp.ge.f32.partialorder %v3878, 0.0
  %vm3899 = vcmp.ge.f32.partialorder %v3881, 0.0
  %vm3900 = vcmp.ge.f32.partialorder %v3884, 0.0
  %vm3901 = vcmp.ge.f32.partialorder %v3887, 0.0
  %vm3902 = vcmp.ge.f32.partialorder %v3890, 0.0
  %vm3903 = vcmp.ge.f32.partialorder %v3893, 0.0
  %vm3904 = vcmp.ge.f32.partialorder %v3896, 0.0
  %v3905 = vmul.f32 %v3875, 0.2
  %v3906 = vmul.f32 %v3878, 0.2
  %v3907 = vmul.f32 %v3881, 0.2
  %v3908 = vmul.f32 %v3884, 0.2
  %v3909 = vmul.f32 %v3887, 0.2
  %v3910 = vmul.f32 %v3890, 0.2
  %v3911 = vmul.f32 %v3893, 0.2
  %v3912 = vmul.f32 %v3896, 0.2
  %v3913 = vsel %vm3897, %v3875, %v3905
  %v3914 = vsel %vm3898, %v3878, %v3906
  %v3915 = vsel %vm3899, %v3881, %v3907
  %v3916 = vsel %vm3900, %v3884, %v3908
  %v3917 = vsel %vm3901, %v3887, %v3909
  %v3918 = vsel %vm3902, %v3890, %v3910
  %v3919 = vsel %vm3903, %v3893, %v3911
  %v3920 = vsel %vm3904, %v3896, %v3912
  %v3921 = vmax.f32 %v3913, %v3917
  %v3922 = vmax.f32 %v3914, %v3918
  %v3923 = vmax.f32 %v3915, %v3919
  %v3924 = vmax.f32 %v3916, %v3920
  %v3925 = vmax.f32 %v3921, %v3922
  %v3926 = vmax.f32 %v3923, %v3924
  %v3927 = vmax.f32 %v3925, %v3926
  %v3928 = vrot.slane %v3927, 4
  %v3929 = vmax.f32 %v3927, %v3928
  %v3930 = vrot.slane %v3929, 2
  %v3931 = vmax.f32 %v3929, %v3930
  %v3932 = vrot.slane %v3931, 1
  %v3933 = vmax.f32 %v3931, %v3932
  %v3934 = vsub.f32 %v3913, %v3933
  %v3935 = vsub.f32 %v3914, %v3933
  %v3936 = vsub.f32 %v3915, %v3933
  %v3937 = vsub.f32 %v3916, %v3933
  %v3938 = vsub.f32 %v3917, %v3933
  %v3939 = vsub.f32 %v3918, %v3933
  %v3940 = vsub.f32 %v3919, %v3933
  %v3941 = vsub.f32 %v3920, %v3933
  %v3942 = vmul.f32 %v3934, 1.442695
  %v3943 = vpow.pop %v3942
  %v3944 = vmul.f32 %v3935, 1.442695
  %v3945 = vpow.pop %v3944
  %v3946 = vmul.f32 %v3936, 1.442695
  %v3947 = vpow.pop %v3946
  %v3948 = vmul.f32 %v3937, 1.442695
  %v3949 = vpow.pop %v3948
  %v3950 = vmul.f32 %v3938, 1.442695
  %v3951 = vpow.pop %v3950
  %v3952 = vmul.f32 %v3939, 1.442695
  %v3953 = vpow.pop %v3952
  %v3954 = vmul.f32 %v3940, 1.442695
  %v3955 = vpow.pop %v3954
  %v3956 = vmul.f32 %v3941, 1.442695
  %v3957 = vpow.pop %v3956
  %v3958 = vmul.f32 %v3943, %v3838
  %v3959 = vmul.f32 %v3945, %v3841
  %v3960 = vmul.f32 %v3947, %v3844
  %v3961 = vmul.f32 %v3949, %v3847
  %v3962 = vmul.f32 %v3951, %v3850
  %v3963 = vmul.f32 %v3953, %v3853
  %v3964 = vmul.f32 %v3955, %v3856
  %v3965 = vmul.f32 %v3957, %v3859
  %3966 = vmatpush.msra.mxu0 0.0
  %3967 = vmatpush.msra.mxu0 0.0
  %3968 = vmatpush.msra.mxu0 0.0
  %3969 = vmatpush.msra.mxu0 0.0
  %3970 = vmatpush.msra.mxu0 0.0
  %3971 = vmatpush.msra.mxu0 0.0
  %3972 = vmatpush.msra.mxu0 0.0
  %3973 = vmatpush.msra.mxu0 0.0
  %3974 = vmatpush.msra.mxu0 %v3965
  %3975 = vmatpush.msra.mxu0 %v3964
  %3976 = vmatpush.msra.mxu0 %v3963
  %3977 = vmatpush.msra.mxu0 %v3962
  %3978 = vmatpush.msra.mxu0 %v3961
  %3979 = vmatpush.msra.mxu0 %v3960
  %3980 = vmatpush.msra.mxu0 %v3959
  %3981 = vmatpush.msra.mxu0 %v3958
  %3982 = vmatmul.f32.gmra.mxu0 %v673
  %v3983 = vpop.f32.mrf.mxu0
  %v3984 = vadd.f32 0.0, %v3983
  %3985 = vmatmul.f32.gmra.mxu0 %v676
  %v3986 = vpop.f32.mrf.mxu0
  %v3987 = vadd.f32 0.0, %v3986
  %3988 = vmatmul.f32.gmra.mxu0 %v679
  %v3989 = vpop.f32.mrf.mxu0
  %v3990 = vadd.f32 0.0, %v3989
  %3991 = vmatmul.f32.gmra.mxu0 %v682
  %v3992 = vpop.f32.mrf.mxu0
  %v3993 = vadd.f32 0.0, %v3992
  %3994 = vmatmul.f32.gmra.mxu0 %v685
  %v3995 = vpop.f32.mrf.mxu0
  %v3996 = vadd.f32 0.0, %v3995
  %3997 = vmatmul.f32.gmra.mxu0 %v688
  %v3998 = vpop.f32.mrf.mxu0
  %v3999 = vadd.f32 0.0, %v3998
  %4000 = vmatmul.f32.gmra.mxu0 %v691
  %v4001 = vpop.f32.mrf.mxu0
  %v4002 = vadd.f32 0.0, %v4001
  %4003 = vmatmul.f32.gmra.mxu0 %v694
  %v4004 = vpop.f32.mrf.mxu0
  %v4005 = vadd.f32 0.0, %v4004
  %4006 = vmatmul.f32.gmra.mxu0 %v697
  %v4007 = vpop.f32.mrf.mxu0
  %v4008 = vadd.f32 0.0, %v4007
  %4009 = vmatmul.f32.gmra.mxu0 %v700
  %v4010 = vpop.f32.mrf.mxu0
  %v4011 = vadd.f32 0.0, %v4010
  %4012 = vmatmul.f32.gmra.mxu0 %v703
  %v4013 = vpop.f32.mrf.mxu0
  %v4014 = vadd.f32 0.0, %v4013
  %4015 = vmatmul.f32.gmra.mxu0 %v706
  %v4016 = vpop.f32.mrf.mxu0
  %v4017 = vadd.f32 0.0, %v4016
  %4018 = vmatmul.f32.gmra.mxu0 %v709
  %v4019 = vpop.f32.mrf.mxu0
  %v4020 = vadd.f32 0.0, %v4019
  %4021 = vmatmul.f32.gmra.mxu0 %v712
  %v4022 = vpop.f32.mrf.mxu0
  %v4023 = vadd.f32 0.0, %v4022
  %4024 = vmatmul.f32.gmra.mxu0 %v715
  %v4025 = vpop.f32.mrf.mxu0
  %v4026 = vadd.f32 0.0, %v4025
  %4027 = vmatmul.f32.gmra.mxu0 %v718
  %v4028 = vpop.f32.mrf.mxu0
  %v4029 = vadd.f32 0.0, %v4028
  %4030 = vmatmul.f32.gmra.mxu0 %v721
  %v4031 = vpop.f32.mrf.mxu0
  %v4032 = vadd.f32 0.0, %v4031
  %4033 = vmatmul.f32.gmra.mxu0 %v724
  %v4034 = vpop.f32.mrf.mxu0
  %v4035 = vadd.f32 0.0, %v4034
  %4036 = vmatmul.f32.gmra.mxu0 %v727
  %v4037 = vpop.f32.mrf.mxu0
  %v4038 = vadd.f32 0.0, %v4037
  %4039 = vmatmul.f32.gmra.mxu0 %v730
  %v4040 = vpop.f32.mrf.mxu0
  %v4041 = vadd.f32 0.0, %v4040
  %4042 = vmatmul.f32.gmra.mxu0 %v733
  %v4043 = vpop.f32.mrf.mxu0
  %v4044 = vadd.f32 0.0, %v4043
  %4045 = vmatmul.f32.gmra.mxu0 %v736
  %v4046 = vpop.f32.mrf.mxu0
  %v4047 = vadd.f32 0.0, %v4046
  %4048 = vmatmul.f32.gmra.mxu0 %v739
  %v4049 = vpop.f32.mrf.mxu0
  %v4050 = vadd.f32 0.0, %v4049
  %4051 = vmatmul.f32.gmra.mxu0 %v742
  %v4052 = vpop.f32.mrf.mxu0
  %v4053 = vadd.f32 0.0, %v4052
  %4054 = vmatmul.f32.gmra.mxu0 %v745
  %v4055 = vpop.f32.mrf.mxu0
  %v4056 = vadd.f32 0.0, %v4055
  %4057 = vmatmul.f32.gmra.mxu0 %v748
  %v4058 = vpop.f32.mrf.mxu0
  %v4059 = vadd.f32 0.0, %v4058
  %4060 = vmatmul.f32.gmra.mxu0 %v751
  %v4061 = vpop.f32.mrf.mxu0
  %v4062 = vadd.f32 0.0, %v4061
  %4063 = vmatmul.f32.gmra.mxu0 %v754
  %v4064 = vpop.f32.mrf.mxu0
  %v4065 = vadd.f32 0.0, %v4064
  %4066 = vmatmul.f32.gmra.mxu0 %v757
  %v4067 = vpop.f32.mrf.mxu0
  %v4068 = vadd.f32 0.0, %v4067
  %4069 = vmatmul.f32.gmra.mxu0 %v760
  %v4070 = vpop.f32.mrf.mxu0
  %v4071 = vadd.f32 0.0, %v4070
  %4072 = vmatmul.f32.gmra.mxu0 %v763
  %v4073 = vpop.f32.mrf.mxu0
  %v4074 = vadd.f32 0.0, %v4073
  %4075 = vmatmul.f32.gmra.mxu0 %v766
  %v4076 = vpop.f32.mrf.mxu0
  %v4077 = vadd.f32 0.0, %v4076
  %4078 = vdwg.mxu0
  %4079 = vmatpush.msra.mxu0 0.0
  %4080 = vmatpush.msra.mxu0 0.0
  %4081 = vmatpush.msra.mxu0 0.0
  %4082 = vmatpush.msra.mxu0 0.0
  %4083 = vmatpush.msra.mxu0 0.0
  %4084 = vmatpush.msra.mxu0 0.0
  %4085 = vmatpush.msra.mxu0 0.0
  %4086 = vmatpush.msra.mxu0 0.0
  %4087 = vmatpush.msra.mxu0 %v3957
  %4088 = vmatpush.msra.mxu0 %v3955
  %4089 = vmatpush.msra.mxu0 %v3953
  %4090 = vmatpush.msra.mxu0 %v3951
  %4091 = vmatpush.msra.mxu0 %v3949
  %4092 = vmatpush.msra.mxu0 %v3947
  %4093 = vmatpush.msra.mxu0 %v3945
  %4094 = vmatpush.msra.mxu0 %v3943
  %4095 = vmatmul.f32.gmra.mxu0 %v673
  %v4096 = vpop.f32.mrf.mxu0
  %v4097 = vadd.f32 1e-16, %v4096
  %4098 = vmatmul.f32.gmra.mxu0 %v676
  %v4099 = vpop.f32.mrf.mxu0
  %v4100 = vadd.f32 1e-16, %v4099
  %4101 = vmatmul.f32.gmra.mxu0 %v679
  %v4102 = vpop.f32.mrf.mxu0
  %v4103 = vadd.f32 1e-16, %v4102
  %4104 = vmatmul.f32.gmra.mxu0 %v682
  %v4105 = vpop.f32.mrf.mxu0
  %v4106 = vadd.f32 1e-16, %v4105
  %4107 = vmatmul.f32.gmra.mxu0 %v685
  %v4108 = vpop.f32.mrf.mxu0
  %v4109 = vadd.f32 1e-16, %v4108
  %4110 = vmatmul.f32.gmra.mxu0 %v688
  %v4111 = vpop.f32.mrf.mxu0
  %v4112 = vadd.f32 1e-16, %v4111
  %4113 = vmatmul.f32.gmra.mxu0 %v691
  %v4114 = vpop.f32.mrf.mxu0
  %v4115 = vadd.f32 1e-16, %v4114
  %4116 = vmatmul.f32.gmra.mxu0 %v694
  %v4117 = vpop.f32.mrf.mxu0
  %v4118 = vadd.f32 1e-16, %v4117
  %4119 = vmatmul.f32.gmra.mxu0 %v697
  %v4120 = vpop.f32.mrf.mxu0
  %v4121 = vadd.f32 1e-16, %v4120
  %4122 = vmatmul.f32.gmra.mxu0 %v700
  %v4123 = vpop.f32.mrf.mxu0
  %v4124 = vadd.f32 1e-16, %v4123
  %4125 = vmatmul.f32.gmra.mxu0 %v703
  %v4126 = vpop.f32.mrf.mxu0
  %v4127 = vadd.f32 1e-16, %v4126
  %4128 = vmatmul.f32.gmra.mxu0 %v706
  %v4129 = vpop.f32.mrf.mxu0
  %v4130 = vadd.f32 1e-16, %v4129
  %4131 = vmatmul.f32.gmra.mxu0 %v709
  %v4132 = vpop.f32.mrf.mxu0
  %v4133 = vadd.f32 1e-16, %v4132
  %4134 = vmatmul.f32.gmra.mxu0 %v712
  %v4135 = vpop.f32.mrf.mxu0
  %v4136 = vadd.f32 1e-16, %v4135
  %4137 = vmatmul.f32.gmra.mxu0 %v715
  %v4138 = vpop.f32.mrf.mxu0
  %v4139 = vadd.f32 1e-16, %v4138
  %4140 = vmatmul.f32.gmra.mxu0 %v718
  %v4141 = vpop.f32.mrf.mxu0
  %v4142 = vadd.f32 1e-16, %v4141
  %4143 = vmatmul.f32.gmra.mxu0 %v721
  %v4144 = vpop.f32.mrf.mxu0
  %v4145 = vadd.f32 1e-16, %v4144
  %4146 = vmatmul.f32.gmra.mxu0 %v724
  %v4147 = vpop.f32.mrf.mxu0
  %v4148 = vadd.f32 1e-16, %v4147
  %4149 = vmatmul.f32.gmra.mxu0 %v727
  %v4150 = vpop.f32.mrf.mxu0
  %v4151 = vadd.f32 1e-16, %v4150
  %4152 = vmatmul.f32.gmra.mxu0 %v730
  %v4153 = vpop.f32.mrf.mxu0
  %v4154 = vadd.f32 1e-16, %v4153
  %4155 = vmatmul.f32.gmra.mxu0 %v733
  %v4156 = vpop.f32.mrf.mxu0
  %v4157 = vadd.f32 1e-16, %v4156
  %4158 = vmatmul.f32.gmra.mxu0 %v736
  %v4159 = vpop.f32.mrf.mxu0
  %v4160 = vadd.f32 1e-16, %v4159
  %4161 = vmatmul.f32.gmra.mxu0 %v739
  %v4162 = vpop.f32.mrf.mxu0
  %v4163 = vadd.f32 1e-16, %v4162
  %4164 = vmatmul.f32.gmra.mxu0 %v742
  %v4165 = vpop.f32.mrf.mxu0
  %v4166 = vadd.f32 1e-16, %v4165
  %4167 = vmatmul.f32.gmra.mxu0 %v745
  %v4168 = vpop.f32.mrf.mxu0
  %v4169 = vadd.f32 1e-16, %v4168
  %4170 = vmatmul.f32.gmra.mxu0 %v748
  %v4171 = vpop.f32.mrf.mxu0
  %v4172 = vadd.f32 1e-16, %v4171
  %4173 = vmatmul.f32.gmra.mxu0 %v751
  %v4174 = vpop.f32.mrf.mxu0
  %v4175 = vadd.f32 1e-16, %v4174
  %4176 = vmatmul.f32.gmra.mxu0 %v754
  %v4177 = vpop.f32.mrf.mxu0
  %v4178 = vadd.f32 1e-16, %v4177
  %4179 = vmatmul.f32.gmra.mxu0 %v757
  %v4180 = vpop.f32.mrf.mxu0
  %v4181 = vadd.f32 1e-16, %v4180
  %4182 = vmatmul.f32.gmra.mxu0 %v760
  %v4183 = vpop.f32.mrf.mxu0
  %v4184 = vadd.f32 1e-16, %v4183
  %4185 = vmatmul.f32.gmra.mxu0 %v763
  %v4186 = vpop.f32.mrf.mxu0
  %v4187 = vadd.f32 1e-16, %v4186
  %4188 = vmatmul.f32.gmra.mxu0 %v766
  %v4189 = vpop.f32.mrf.mxu0
  %v4190 = vadd.f32 1e-16, %v4189
  %4191 = vdwg.mxu0
  %v4192 = vrcp.pop %v4097
  %v4193 = vmul.f32 %v4097, %v4192
  %v4194 = vsub.f32 1.0, %v4193
  %v4195 = vmul.f32 %v4192, %v4194
  %v4196 = vadd.f32 %v4192, %v4195
  %vm4197 = vweird.f32 %v4097
  %vm4198 = vweird.f32 %v4192
  %vm4199 = vmor %vm4197, %vm4198
  %v4200 = vsel %vm4199, %v4192, %v4196
  %v4201 = vand.u32 2147483647, %v4097
  %vm4202 = vcmp.eq.f32.partialorder %v4201, 8.507059e+37
  %v4203 = vand.u32 %v4097, 2147483648
  %v4204 = vor.u32 1.1754944e-38, %v4203
  %v4205 = vsel %vm4202, %v4204, %v4200
  %v4206 = vmul.f32 1.0, %v4205
  %v4207 = vrcp.pop %v4100
  %v4208 = vmul.f32 %v4100, %v4207
  %v4209 = vsub.f32 1.0, %v4208
  %v4210 = vmul.f32 %v4207, %v4209
  %v4211 = vadd.f32 %v4207, %v4210
  %vm4212 = vweird.f32 %v4100
  %vm4213 = vweird.f32 %v4207
  %vm4214 = vmor %vm4212, %vm4213
  %v4215 = vsel %vm4214, %v4207, %v4211
  %v4216 = vand.u32 2147483647, %v4100
  %vm4217 = vcmp.eq.f32.partialorder %v4216, 8.507059e+37
  %v4218 = vand.u32 %v4100, 2147483648
  %v4219 = vor.u32 1.1754944e-38, %v4218
  %v4220 = vsel %vm4217, %v4219, %v4215
  %v4221 = vmul.f32 1.0, %v4220
  %v4222 = vrcp.pop %v4103
  %v4223 = vmul.f32 %v4103, %v4222
  %v4224 = vsub.f32 1.0, %v4223
  %v4225 = vmul.f32 %v4222, %v4224
  %v4226 = vadd.f32 %v4222, %v4225
  %vm4227 = vweird.f32 %v4103
  %vm4228 = vweird.f32 %v4222
  %vm4229 = vmor %vm4227, %vm4228
  %v4230 = vsel %vm4229, %v4222, %v4226
  %v4231 = vand.u32 2147483647, %v4103
  %vm4232 = vcmp.eq.f32.partialorder %v4231, 8.507059e+37
  %v4233 = vand.u32 %v4103, 2147483648
  %v4234 = vor.u32 1.1754944e-38, %v4233
  %v4235 = vsel %vm4232, %v4234, %v4230
  %v4236 = vmul.f32 1.0, %v4235
  %v4237 = vrcp.pop %v4106
  %v4238 = vmul.f32 %v4106, %v4237
  %v4239 = vsub.f32 1.0, %v4238
  %v4240 = vmul.f32 %v4237, %v4239
  %v4241 = vadd.f32 %v4237, %v4240
  %vm4242 = vweird.f32 %v4106
  %vm4243 = vweird.f32 %v4237
  %vm4244 = vmor %vm4242, %vm4243
  %v4245 = vsel %vm4244, %v4237, %v4241
  %v4246 = vand.u32 2147483647, %v4106
  %vm4247 = vcmp.eq.f32.partialorder %v4246, 8.507059e+37
  %v4248 = vand.u32 %v4106, 2147483648
  %v4249 = vor.u32 1.1754944e-38, %v4248
  %v4250 = vsel %vm4247, %v4249, %v4245
  %v4251 = vmul.f32 1.0, %v4250
  %v4252 = vrcp.pop %v4109
  %v4253 = vmul.f32 %v4109, %v4252
  %v4254 = vsub.f32 1.0, %v4253
  %v4255 = vmul.f32 %v4252, %v4254
  %v4256 = vadd.f32 %v4252, %v4255
  %vm4257 = vweird.f32 %v4109
  %vm4258 = vweird.f32 %v4252
  %vm4259 = vmor %vm4257, %vm4258
  %v4260 = vsel %vm4259, %v4252, %v4256
  %v4261 = vand.u32 2147483647, %v4109
  %vm4262 = vcmp.eq.f32.partialorder %v4261, 8.507059e+37
  %v4263 = vand.u32 %v4109, 2147483648
  %v4264 = vor.u32 1.1754944e-38, %v4263
  %v4265 = vsel %vm4262, %v4264, %v4260
  %v4266 = vmul.f32 1.0, %v4265
  %v4267 = vrcp.pop %v4112
  %v4268 = vmul.f32 %v4112, %v4267
  %v4269 = vsub.f32 1.0, %v4268
  %v4270 = vmul.f32 %v4267, %v4269
  %v4271 = vadd.f32 %v4267, %v4270
  %vm4272 = vweird.f32 %v4112
  %vm4273 = vweird.f32 %v4267
  %vm4274 = vmor %vm4272, %vm4273
  %v4275 = vsel %vm4274, %v4267, %v4271
  %v4276 = vand.u32 2147483647, %v4112
  %vm4277 = vcmp.eq.f32.partialorder %v4276, 8.507059e+37
  %v4278 = vand.u32 %v4112, 2147483648
  %v4279 = vor.u32 1.1754944e-38, %v4278
  %v4280 = vsel %vm4277, %v4279, %v4275
  %v4281 = vmul.f32 1.0, %v4280
  %v4282 = vrcp.pop %v4115
  %v4283 = vmul.f32 %v4115, %v4282
  %v4284 = vsub.f32 1.0, %v4283
  %v4285 = vmul.f32 %v4282, %v4284
  %v4286 = vadd.f32 %v4282, %v4285
  %vm4287 = vweird.f32 %v4115
  %vm4288 = vweird.f32 %v4282
  %vm4289 = vmor %vm4287, %vm4288
  %v4290 = vsel %vm4289, %v4282, %v4286
  %v4291 = vand.u32 2147483647, %v4115
  %vm4292 = vcmp.eq.f32.partialorder %v4291, 8.507059e+37
  %v4293 = vand.u32 %v4115, 2147483648
  %v4294 = vor.u32 1.1754944e-38, %v4293
  %v4295 = vsel %vm4292, %v4294, %v4290
  %v4296 = vmul.f32 1.0, %v4295
  %v4297 = vrcp.pop %v4118
  %v4298 = vmul.f32 %v4118, %v4297
  %v4299 = vsub.f32 1.0, %v4298
  %v4300 = vmul.f32 %v4297, %v4299
  %v4301 = vadd.f32 %v4297, %v4300
  %vm4302 = vweird.f32 %v4118
  %vm4303 = vweird.f32 %v4297
  %vm4304 = vmor %vm4302, %vm4303
  %v4305 = vsel %vm4304, %v4297, %v4301
  %v4306 = vand.u32 2147483647, %v4118
  %vm4307 = vcmp.eq.f32.partialorder %v4306, 8.507059e+37
  %v4308 = vand.u32 %v4118, 2147483648
  %v4309 = vor.u32 1.1754944e-38, %v4308
  %v4310 = vsel %vm4307, %v4309, %v4305
  %v4311 = vmul.f32 1.0, %v4310
  %v4312 = vrcp.pop %v4121
  %v4313 = vmul.f32 %v4121, %v4312
  %v4314 = vsub.f32 1.0, %v4313
  %v4315 = vmul.f32 %v4312, %v4314
  %v4316 = vadd.f32 %v4312, %v4315
  %vm4317 = vweird.f32 %v4121
  %vm4318 = vweird.f32 %v4312
  %vm4319 = vmor %vm4317, %vm4318
  %v4320 = vsel %vm4319, %v4312, %v4316
  %v4321 = vand.u32 2147483647, %v4121
  %vm4322 = vcmp.eq.f32.partialorder %v4321, 8.507059e+37
  %v4323 = vand.u32 %v4121, 2147483648
  %v4324 = vor.u32 1.1754944e-38, %v4323
  %v4325 = vsel %vm4322, %v4324, %v4320
  %v4326 = vmul.f32 1.0, %v4325
  %v4327 = vrcp.pop %v4124
  %v4328 = vmul.f32 %v4124, %v4327
  %v4329 = vsub.f32 1.0, %v4328
  %v4330 = vmul.f32 %v4327, %v4329
  %v4331 = vadd.f32 %v4327, %v4330
  %vm4332 = vweird.f32 %v4124
  %vm4333 = vweird.f32 %v4327
  %vm4334 = vmor %vm4332, %vm4333
  %v4335 = vsel %vm4334, %v4327, %v4331
  %v4336 = vand.u32 2147483647, %v4124
  %vm4337 = vcmp.eq.f32.partialorder %v4336, 8.507059e+37
  %v4338 = vand.u32 %v4124, 2147483648
  %v4339 = vor.u32 1.1754944e-38, %v4338
  %v4340 = vsel %vm4337, %v4339, %v4335
  %v4341 = vmul.f32 1.0, %v4340
  %v4342 = vrcp.pop %v4127
  %v4343 = vmul.f32 %v4127, %v4342
  %v4344 = vsub.f32 1.0, %v4343
  %v4345 = vmul.f32 %v4342, %v4344
  %v4346 = vadd.f32 %v4342, %v4345
  %vm4347 = vweird.f32 %v4127
  %vm4348 = vweird.f32 %v4342
  %vm4349 = vmor %vm4347, %vm4348
  %v4350 = vsel %vm4349, %v4342, %v4346
  %v4351 = vand.u32 2147483647, %v4127
  %vm4352 = vcmp.eq.f32.partialorder %v4351, 8.507059e+37
  %v4353 = vand.u32 %v4127, 2147483648
  %v4354 = vor.u32 1.1754944e-38, %v4353
  %v4355 = vsel %vm4352, %v4354, %v4350
  %v4356 = vmul.f32 1.0, %v4355
  %v4357 = vrcp.pop %v4130
  %v4358 = vmul.f32 %v4130, %v4357
  %v4359 = vsub.f32 1.0, %v4358
  %v4360 = vmul.f32 %v4357, %v4359
  %v4361 = vadd.f32 %v4357, %v4360
  %vm4362 = vweird.f32 %v4130
  %vm4363 = vweird.f32 %v4357
  %vm4364 = vmor %vm4362, %vm4363
  %v4365 = vsel %vm4364, %v4357, %v4361
  %v4366 = vand.u32 2147483647, %v4130
  %vm4367 = vcmp.eq.f32.partialorder %v4366, 8.507059e+37
  %v4368 = vand.u32 %v4130, 2147483648
  %v4369 = vor.u32 1.1754944e-38, %v4368
  %v4370 = vsel %vm4367, %v4369, %v4365
  %v4371 = vmul.f32 1.0, %v4370
  %v4372 = vrcp.pop %v4133
  %v4373 = vmul.f32 %v4133, %v4372
  %v4374 = vsub.f32 1.0, %v4373
  %v4375 = vmul.f32 %v4372, %v4374
  %v4376 = vadd.f32 %v4372, %v4375
  %vm4377 = vweird.f32 %v4133
  %vm4378 = vweird.f32 %v4372
  %vm4379 = vmor %vm4377, %vm4378
  %v4380 = vsel %vm4379, %v4372, %v4376
  %v4381 = vand.u32 2147483647, %v4133
  %vm4382 = vcmp.eq.f32.partialorder %v4381, 8.507059e+37
  %v4383 = vand.u32 %v4133, 2147483648
  %v4384 = vor.u32 1.1754944e-38, %v4383
  %v4385 = vsel %vm4382, %v4384, %v4380
  %v4386 = vmul.f32 1.0, %v4385
  %v4387 = vrcp.pop %v4136
  %v4388 = vmul.f32 %v4136, %v4387
  %v4389 = vsub.f32 1.0, %v4388
  %v4390 = vmul.f32 %v4387, %v4389
  %v4391 = vadd.f32 %v4387, %v4390
  %vm4392 = vweird.f32 %v4136
  %vm4393 = vweird.f32 %v4387
  %vm4394 = vmor %vm4392, %vm4393
  %v4395 = vsel %vm4394, %v4387, %v4391
  %v4396 = vand.u32 2147483647, %v4136
  %vm4397 = vcmp.eq.f32.partialorder %v4396, 8.507059e+37
  %v4398 = vand.u32 %v4136, 2147483648
  %v4399 = vor.u32 1.1754944e-38, %v4398
  %v4400 = vsel %vm4397, %v4399, %v4395
  %v4401 = vmul.f32 1.0, %v4400
  %v4402 = vrcp.pop %v4139
  %v4403 = vmul.f32 %v4139, %v4402
  %v4404 = vsub.f32 1.0, %v4403
  %v4405 = vmul.f32 %v4402, %v4404
  %v4406 = vadd.f32 %v4402, %v4405
  %vm4407 = vweird.f32 %v4139
  %vm4408 = vweird.f32 %v4402
  %vm4409 = vmor %vm4407, %vm4408
  %v4410 = vsel %vm4409, %v4402, %v4406
  %v4411 = vand.u32 2147483647, %v4139
  %vm4412 = vcmp.eq.f32.partialorder %v4411, 8.507059e+37
  %v4413 = vand.u32 %v4139, 2147483648
  %v4414 = vor.u32 1.1754944e-38, %v4413
  %v4415 = vsel %vm4412, %v4414, %v4410
  %v4416 = vmul.f32 1.0, %v4415
  %v4417 = vrcp.pop %v4142
  %v4418 = vmul.f32 %v4142, %v4417
  %v4419 = vsub.f32 1.0, %v4418
  %v4420 = vmul.f32 %v4417, %v4419
  %v4421 = vadd.f32 %v4417, %v4420
  %vm4422 = vweird.f32 %v4142
  %vm4423 = vweird.f32 %v4417
  %vm4424 = vmor %vm4422, %vm4423
  %v4425 = vsel %vm4424, %v4417, %v4421
  %v4426 = vand.u32 2147483647, %v4142
  %vm4427 = vcmp.eq.f32.partialorder %v4426, 8.507059e+37
  %v4428 = vand.u32 %v4142, 2147483648
  %v4429 = vor.u32 1.1754944e-38, %v4428
  %v4430 = vsel %vm4427, %v4429, %v4425
  %v4431 = vmul.f32 1.0, %v4430
  %v4432 = vrcp.pop %v4145
  %v4433 = vmul.f32 %v4145, %v4432
  %v4434 = vsub.f32 1.0, %v4433
  %v4435 = vmul.f32 %v4432, %v4434
  %v4436 = vadd.f32 %v4432, %v4435
  %vm4437 = vweird.f32 %v4145
  %vm4438 = vweird.f32 %v4432
  %vm4439 = vmor %vm4437, %vm4438
  %v4440 = vsel %vm4439, %v4432, %v4436
  %v4441 = vand.u32 2147483647, %v4145
  %vm4442 = vcmp.eq.f32.partialorder %v4441, 8.507059e+37
  %v4443 = vand.u32 %v4145, 2147483648
  %v4444 = vor.u32 1.1754944e-38, %v4443
  %v4445 = vsel %vm4442, %v4444, %v4440
  %v4446 = vmul.f32 1.0, %v4445
  %v4447 = vrcp.pop %v4148
  %v4448 = vmul.f32 %v4148, %v4447
  %v4449 = vsub.f32 1.0, %v4448
  %v4450 = vmul.f32 %v4447, %v4449
  %v4451 = vadd.f32 %v4447, %v4450
  %vm4452 = vweird.f32 %v4148
  %vm4453 = vweird.f32 %v4447
  %vm4454 = vmor %vm4452, %vm4453
  %v4455 = vsel %vm4454, %v4447, %v4451
  %v4456 = vand.u32 2147483647, %v4148
  %vm4457 = vcmp.eq.f32.partialorder %v4456, 8.507059e+37
  %v4458 = vand.u32 %v4148, 2147483648
  %v4459 = vor.u32 1.1754944e-38, %v4458
  %v4460 = vsel %vm4457, %v4459, %v4455
  %v4461 = vmul.f32 1.0, %v4460
  %v4462 = vrcp.pop %v4151
  %v4463 = vmul.f32 %v4151, %v4462
  %v4464 = vsub.f32 1.0, %v4463
  %v4465 = vmul.f32 %v4462, %v4464
  %v4466 = vadd.f32 %v4462, %v4465
  %vm4467 = vweird.f32 %v4151
  %vm4468 = vweird.f32 %v4462
  %vm4469 = vmor %vm4467, %vm4468
  %v4470 = vsel %vm4469, %v4462, %v4466
  %v4471 = vand.u32 2147483647, %v4151
  %vm4472 = vcmp.eq.f32.partialorder %v4471, 8.507059e+37
  %v4473 = vand.u32 %v4151, 2147483648
  %v4474 = vor.u32 1.1754944e-38, %v4473
  %v4475 = vsel %vm4472, %v4474, %v4470
  %v4476 = vmul.f32 1.0, %v4475
  %v4477 = vrcp.pop %v4154
  %v4478 = vmul.f32 %v4154, %v4477
  %v4479 = vsub.f32 1.0, %v4478
  %v4480 = vmul.f32 %v4477, %v4479
  %v4481 = vadd.f32 %v4477, %v4480
  %vm4482 = vweird.f32 %v4154
  %vm4483 = vweird.f32 %v4477
  %vm4484 = vmor %vm4482, %vm4483
  %v4485 = vsel %vm4484, %v4477, %v4481
  %v4486 = vand.u32 2147483647, %v4154
  %vm4487 = vcmp.eq.f32.partialorder %v4486, 8.507059e+37
  %v4488 = vand.u32 %v4154, 2147483648
  %v4489 = vor.u32 1.1754944e-38, %v4488
  %v4490 = vsel %vm4487, %v4489, %v4485
  %v4491 = vmul.f32 1.0, %v4490
  %v4492 = vrcp.pop %v4157
  %v4493 = vmul.f32 %v4157, %v4492
  %v4494 = vsub.f32 1.0, %v4493
  %v4495 = vmul.f32 %v4492, %v4494
  %v4496 = vadd.f32 %v4492, %v4495
  %vm4497 = vweird.f32 %v4157
  %vm4498 = vweird.f32 %v4492
  %vm4499 = vmor %vm4497, %vm4498
  %v4500 = vsel %vm4499, %v4492, %v4496
  %v4501 = vand.u32 2147483647, %v4157
  %vm4502 = vcmp.eq.f32.partialorder %v4501, 8.507059e+37
  %v4503 = vand.u32 %v4157, 2147483648
  %v4504 = vor.u32 1.1754944e-38, %v4503
  %v4505 = vsel %vm4502, %v4504, %v4500
  %v4506 = vmul.f32 1.0, %v4505
  %v4507 = vrcp.pop %v4160
  %v4508 = vmul.f32 %v4160, %v4507
  %v4509 = vsub.f32 1.0, %v4508
  %v4510 = vmul.f32 %v4507, %v4509
  %v4511 = vadd.f32 %v4507, %v4510
  %vm4512 = vweird.f32 %v4160
  %vm4513 = vweird.f32 %v4507
  %vm4514 = vmor %vm4512, %vm4513
  %v4515 = vsel %vm4514, %v4507, %v4511
  %v4516 = vand.u32 2147483647, %v4160
  %vm4517 = vcmp.eq.f32.partialorder %v4516, 8.507059e+37
  %v4518 = vand.u32 %v4160, 2147483648
  %v4519 = vor.u32 1.1754944e-38, %v4518
  %v4520 = vsel %vm4517, %v4519, %v4515
  %v4521 = vmul.f32 1.0, %v4520
  %v4522 = vrcp.pop %v4163
  %v4523 = vmul.f32 %v4163, %v4522
  %v4524 = vsub.f32 1.0, %v4523
  %v4525 = vmul.f32 %v4522, %v4524
  %v4526 = vadd.f32 %v4522, %v4525
  %vm4527 = vweird.f32 %v4163
  %vm4528 = vweird.f32 %v4522
  %vm4529 = vmor %vm4527, %vm4528
  %v4530 = vsel %vm4529, %v4522, %v4526
  %v4531 = vand.u32 2147483647, %v4163
  %vm4532 = vcmp.eq.f32.partialorder %v4531, 8.507059e+37
  %v4533 = vand.u32 %v4163, 2147483648
  %v4534 = vor.u32 1.1754944e-38, %v4533
  %v4535 = vsel %vm4532, %v4534, %v4530
  %v4536 = vmul.f32 1.0, %v4535
  %v4537 = vrcp.pop %v4166
  %v4538 = vmul.f32 %v4166, %v4537
  %v4539 = vsub.f32 1.0, %v4538
  %v4540 = vmul.f32 %v4537, %v4539
  %v4541 = vadd.f32 %v4537, %v4540
  %vm4542 = vweird.f32 %v4166
  %vm4543 = vweird.f32 %v4537
  %vm4544 = vmor %vm4542, %vm4543
  %v4545 = vsel %vm4544, %v4537, %v4541
  %v4546 = vand.u32 2147483647, %v4166
  %vm4547 = vcmp.eq.f32.partialorder %v4546, 8.507059e+37
  %v4548 = vand.u32 %v4166, 2147483648
  %v4549 = vor.u32 1.1754944e-38, %v4548
  %v4550 = vsel %vm4547, %v4549, %v4545
  %v4551 = vmul.f32 1.0, %v4550
  %v4552 = vrcp.pop %v4169
  %v4553 = vmul.f32 %v4169, %v4552
  %v4554 = vsub.f32 1.0, %v4553
  %v4555 = vmul.f32 %v4552, %v4554
  %v4556 = vadd.f32 %v4552, %v4555
  %vm4557 = vweird.f32 %v4169
  %vm4558 = vweird.f32 %v4552
  %vm4559 = vmor %vm4557, %vm4558
  %v4560 = vsel %vm4559, %v4552, %v4556
  %v4561 = vand.u32 2147483647, %v4169
  %vm4562 = vcmp.eq.f32.partialorder %v4561, 8.507059e+37
  %v4563 = vand.u32 %v4169, 2147483648
  %v4564 = vor.u32 1.1754944e-38, %v4563
  %v4565 = vsel %vm4562, %v4564, %v4560
  %v4566 = vmul.f32 1.0, %v4565
  %v4567 = vrcp.pop %v4172
  %v4568 = vmul.f32 %v4172, %v4567
  %v4569 = vsub.f32 1.0, %v4568
  %v4570 = vmul.f32 %v4567, %v4569
  %v4571 = vadd.f32 %v4567, %v4570
  %vm4572 = vweird.f32 %v4172
  %vm4573 = vweird.f32 %v4567
  %vm4574 = vmor %vm4572, %vm4573
  %v4575 = vsel %vm4574, %v4567, %v4571
  %v4576 = vand.u32 2147483647, %v4172
  %vm4577 = vcmp.eq.f32.partialorder %v4576, 8.507059e+37
  %v4578 = vand.u32 %v4172, 2147483648
  %v4579 = vor.u32 1.1754944e-38, %v4578
  %v4580 = vsel %vm4577, %v4579, %v4575
  %v4581 = vmul.f32 1.0, %v4580
  %v4582 = vrcp.pop %v4175
  %v4583 = vmul.f32 %v4175, %v4582
  %v4584 = vsub.f32 1.0, %v4583
  %v4585 = vmul.f32 %v4582, %v4584
  %v4586 = vadd.f32 %v4582, %v4585
  %vm4587 = vweird.f32 %v4175
  %vm4588 = vweird.f32 %v4582
  %vm4589 = vmor %vm4587, %vm4588
  %v4590 = vsel %vm4589, %v4582, %v4586
  %v4591 = vand.u32 2147483647, %v4175
  %vm4592 = vcmp.eq.f32.partialorder %v4591, 8.507059e+37
  %v4593 = vand.u32 %v4175, 2147483648
  %v4594 = vor.u32 1.1754944e-38, %v4593
  %v4595 = vsel %vm4592, %v4594, %v4590
  %v4596 = vmul.f32 1.0, %v4595
  %v4597 = vrcp.pop %v4178
  %v4598 = vmul.f32 %v4178, %v4597
  %v4599 = vsub.f32 1.0, %v4598
  %v4600 = vmul.f32 %v4597, %v4599
  %v4601 = vadd.f32 %v4597, %v4600
  %vm4602 = vweird.f32 %v4178
  %vm4603 = vweird.f32 %v4597
  %vm4604 = vmor %vm4602, %vm4603
  %v4605 = vsel %vm4604, %v4597, %v4601
  %v4606 = vand.u32 2147483647, %v4178
  %vm4607 = vcmp.eq.f32.partialorder %v4606, 8.507059e+37
  %v4608 = vand.u32 %v4178, 2147483648
  %v4609 = vor.u32 1.1754944e-38, %v4608
  %v4610 = vsel %vm4607, %v4609, %v4605
  %v4611 = vmul.f32 1.0, %v4610
  %v4612 = vrcp.pop %v4181
  %v4613 = vmul.f32 %v4181, %v4612
  %v4614 = vsub.f32 1.0, %v4613
  %v4615 = vmul.f32 %v4612, %v4614
  %v4616 = vadd.f32 %v4612, %v4615
  %vm4617 = vweird.f32 %v4181
  %vm4618 = vweird.f32 %v4612
  %vm4619 = vmor %vm4617, %vm4618
  %v4620 = vsel %vm4619, %v4612, %v4616
  %v4621 = vand.u32 2147483647, %v4181
  %vm4622 = vcmp.eq.f32.partialorder %v4621, 8.507059e+37
  %v4623 = vand.u32 %v4181, 2147483648
  %v4624 = vor.u32 1.1754944e-38, %v4623
  %v4625 = vsel %vm4622, %v4624, %v4620
  %v4626 = vmul.f32 1.0, %v4625
  %v4627 = vrcp.pop %v4184
  %v4628 = vmul.f32 %v4184, %v4627
  %v4629 = vsub.f32 1.0, %v4628
  %v4630 = vmul.f32 %v4627, %v4629
  %v4631 = vadd.f32 %v4627, %v4630
  %vm4632 = vweird.f32 %v4184
  %vm4633 = vweird.f32 %v4627
  %vm4634 = vmor %vm4632, %vm4633
  %v4635 = vsel %vm4634, %v4627, %v4631
  %v4636 = vand.u32 2147483647, %v4184
  %vm4637 = vcmp.eq.f32.partialorder %v4636, 8.507059e+37
  %v4638 = vand.u32 %v4184, 2147483648
  %v4639 = vor.u32 1.1754944e-38, %v4638
  %v4640 = vsel %vm4637, %v4639, %v4635
  %v4641 = vmul.f32 1.0, %v4640
  %v4642 = vrcp.pop %v4187
  %v4643 = vmul.f32 %v4187, %v4642
  %v4644 = vsub.f32 1.0, %v4643
  %v4645 = vmul.f32 %v4642, %v4644
  %v4646 = vadd.f32 %v4642, %v4645
  %vm4647 = vweird.f32 %v4187
  %vm4648 = vweird.f32 %v4642
  %vm4649 = vmor %vm4647, %vm4648
  %v4650 = vsel %vm4649, %v4642, %v4646
  %v4651 = vand.u32 2147483647, %v4187
  %vm4652 = vcmp.eq.f32.partialorder %v4651, 8.507059e+37
  %v4653 = vand.u32 %v4187, 2147483648
  %v4654 = vor.u32 1.1754944e-38, %v4653
  %v4655 = vsel %vm4652, %v4654, %v4650
  %v4656 = vmul.f32 1.0, %v4655
  %v4657 = vrcp.pop %v4190
  %v4658 = vmul.f32 %v4190, %v4657
  %v4659 = vsub.f32 1.0, %v4658
  %v4660 = vmul.f32 %v4657, %v4659
  %v4661 = vadd.f32 %v4657, %v4660
  %vm4662 = vweird.f32 %v4190
  %vm4663 = vweird.f32 %v4657
  %vm4664 = vmor %vm4662, %vm4663
  %v4665 = vsel %vm4664, %v4657, %v4661
  %v4666 = vand.u32 2147483647, %v4190
  %vm4667 = vcmp.eq.f32.partialorder %v4666, 8.507059e+37
  %v4668 = vand.u32 %v4190, 2147483648
  %v4669 = vor.u32 1.1754944e-38, %v4668
  %v4670 = vsel %vm4667, %v4669, %v4665
  %v4671 = vmul.f32 1.0, %v4670
  %4673 = vset.pattern.permute.xlu0 0
  %4674 = vperm.xlu0 %4673, %v4206
  %v4675 = vpop.permute.xlu0 %4674
  %4678 = vset.pattern.permute.xlu0 0
  %4679 = vperm.xlu0 %4678, %v4221
  %v4680 = vpop.permute.xlu0 %4679
  %4683 = vset.pattern.permute.xlu0 0
  %4684 = vperm.xlu0 %4683, %v4236
  %v4685 = vpop.permute.xlu0 %4684
  %4688 = vset.pattern.permute.xlu0 0
  %4689 = vperm.xlu0 %4688, %v4251
  %v4690 = vpop.permute.xlu0 %4689
  %4693 = vset.pattern.permute.xlu0 0
  %4694 = vperm.xlu0 %4693, %v4266
  %v4695 = vpop.permute.xlu0 %4694
  %4698 = vset.pattern.permute.xlu0 0
  %4699 = vperm.xlu0 %4698, %v4281
  %v4700 = vpop.permute.xlu0 %4699
  %4703 = vset.pattern.permute.xlu0 0
  %4704 = vperm.xlu0 %4703, %v4296
  %v4705 = vpop.permute.xlu0 %4704
  %4708 = vset.pattern.permute.xlu0 0
  %4709 = vperm.xlu0 %4708, %v4311
  %v4710 = vpop.permute.xlu0 %4709
  %4713 = vset.pattern.permute.xlu0 0
  %4714 = vperm.xlu0 %4713, %v4326
  %v4715 = vpop.permute.xlu0 %4714
  %4718 = vset.pattern.permute.xlu0 0
  %4719 = vperm.xlu0 %4718, %v4341
  %v4720 = vpop.permute.xlu0 %4719
  %4723 = vset.pattern.permute.xlu0 0
  %4724 = vperm.xlu0 %4723, %v4356
  %v4725 = vpop.permute.xlu0 %4724
  %4728 = vset.pattern.permute.xlu0 0
  %4729 = vperm.xlu0 %4728, %v4371
  %v4730 = vpop.permute.xlu0 %4729
  %4733 = vset.pattern.permute.xlu0 0
  %4734 = vperm.xlu0 %4733, %v4386
  %v4735 = vpop.permute.xlu0 %4734
  %4738 = vset.pattern.permute.xlu0 0
  %4739 = vperm.xlu0 %4738, %v4401
  %v4740 = vpop.permute.xlu0 %4739
  %4743 = vset.pattern.permute.xlu0 0
  %4744 = vperm.xlu0 %4743, %v4416
  %v4745 = vpop.permute.xlu0 %4744
  %4748 = vset.pattern.permute.xlu0 0
  %4749 = vperm.xlu0 %4748, %v4431
  %v4750 = vpop.permute.xlu0 %4749
  %4753 = vset.pattern.permute.xlu0 0
  %4754 = vperm.xlu0 %4753, %v4446
  %v4755 = vpop.permute.xlu0 %4754
  %4758 = vset.pattern.permute.xlu0 0
  %4759 = vperm.xlu0 %4758, %v4461
  %v4760 = vpop.permute.xlu0 %4759
  %4763 = vset.pattern.permute.xlu0 0
  %4764 = vperm.xlu0 %4763, %v4476
  %v4765 = vpop.permute.xlu0 %4764
  %4768 = vset.pattern.permute.xlu0 0
  %4769 = vperm.xlu0 %4768, %v4491
  %v4770 = vpop.permute.xlu0 %4769
  %4773 = vset.pattern.permute.xlu0 0
  %4774 = vperm.xlu0 %4773, %v4506
  %v4775 = vpop.permute.xlu0 %4774
  %4778 = vset.pattern.permute.xlu0 0
  %4779 = vperm.xlu0 %4778, %v4521
  %v4780 = vpop.permute.xlu0 %4779
  %4783 = vset.pattern.permute.xlu0 0
  %4784 = vperm.xlu0 %4783, %v4536
  %v4785 = vpop.permute.xlu0 %4784
  %4788 = vset.pattern.permute.xlu0 0
  %4789 = vperm.xlu0 %4788, %v4551
  %v4790 = vpop.permute.xlu0 %4789
  %4793 = vset.pattern.permute.xlu0 0
  %4794 = vperm.xlu0 %4793, %v4566
  %v4795 = vpop.permute.xlu0 %4794
  %4798 = vset.pattern.permute.xlu0 0
  %4799 = vperm.xlu0 %4798, %v4581
  %v4800 = vpop.permute.xlu0 %4799
  %4803 = vset.pattern.permute.xlu0 0
  %4804 = vperm.xlu0 %4803, %v4596
  %v4805 = vpop.permute.xlu0 %4804
  %4808 = vset.pattern.permute.xlu0 0
  %4809 = vperm.xlu0 %4808, %v4611
  %v4810 = vpop.permute.xlu0 %4809
  %4813 = vset.pattern.permute.xlu0 0
  %4814 = vperm.xlu0 %4813, %v4626
  %v4815 = vpop.permute.xlu0 %4814
  %4818 = vset.pattern.permute.xlu0 0
  %4819 = vperm.xlu0 %4818, %v4641
  %v4820 = vpop.permute.xlu0 %4819
  %4823 = vset.pattern.permute.xlu0 0
  %4824 = vperm.xlu0 %4823, %v4656
  %v4825 = vpop.permute.xlu0 %4824
  %4828 = vset.pattern.permute.xlu0 0
  %4829 = vperm.xlu0 %4828, %v4671
  %v4830 = vpop.permute.xlu0 %4829
  %v4832 = vmul.f32 %v4675, %v3984
  %v4833 = vmul.f32 %v4680, %v3987
  %v4834 = vmul.f32 %v4685, %v3990
  %v4835 = vmul.f32 %v4690, %v3993
  %v4836 = vmul.f32 %v4695, %v3996
  %v4837 = vmul.f32 %v4700, %v3999
  %v4838 = vmul.f32 %v4705, %v4002
  %v4839 = vmul.f32 %v4710, %v4005
  %v4840 = vmul.f32 %v4715, %v4008
  %v4841 = vmul.f32 %v4720, %v4011
  %v4842 = vmul.f32 %v4725, %v4014
  %v4843 = vmul.f32 %v4730, %v4017
  %v4844 = vmul.f32 %v4735, %v4020
  %v4845 = vmul.f32 %v4740, %v4023
  %v4846 = vmul.f32 %v4745, %v4026
  %v4847 = vmul.f32 %v4750, %v4029
  %v4848 = vmul.f32 %v4755, %v4032
  %v4849 = vmul.f32 %v4760, %v4035
  %v4850 = vmul.f32 %v4765, %v4038
  %v4851 = vmul.f32 %v4770, %v4041
  %v4852 = vmul.f32 %v4775, %v4044
  %v4853 = vmul.f32 %v4780, %v4047
  %v4854 = vmul.f32 %v4785, %v4050
  %v4855 = vmul.f32 %v4790, %v4053
  %v4856 = vmul.f32 %v4795, %v4056
  %v4857 = vmul.f32 %v4800, %v4059
  %v4858 = vmul.f32 %v4805, %v4062
  %v4859 = vmul.f32 %v4810, %v4065
  %v4860 = vmul.f32 %v4815, %v4068
  %v4861 = vmul.f32 %v4820, %v4071
  %v4862 = vmul.f32 %v4825, %v4074
  %v4863 = vmul.f32 %v4830, %v4077
  %v4864 = vadd.f32 %v4832, %v3684
  %v4865 = vadd.f32 %v4833, %v3687
  %v4866 = vadd.f32 %v4834, %v3690
  %v4867 = vadd.f32 %v4835, %v3693
  %v4868 = vadd.f32 %v4836, %v3696
  %v4869 = vadd.f32 %v4837, %v3699
  %v4870 = vadd.f32 %v4838, %v3702
  %v4871 = vadd.f32 %v4839, %v3705
  %v4872 = vadd.f32 %v4840, %v3708
  %v4873 = vadd.f32 %v4841, %v3711
  %v4874 = vadd.f32 %v4842, %v3714
  %v4875 = vadd.f32 %v4843, %v3717
  %v4876 = vadd.f32 %v4844, %v3720
  %v4877 = vadd.f32 %v4845, %v3723
  %v4878 = vadd.f32 %v4846, %v3726
  %v4879 = vadd.f32 %v4847, %v3729
  %v4880 = vadd.f32 %v4848, %v3732
  %v4881 = vadd.f32 %v4849, %v3735
  %v4882 = vadd.f32 %v4850, %v3738
  %v4883 = vadd.f32 %v4851, %v3741
  %v4884 = vadd.f32 %v4852, %v3744
  %v4885 = vadd.f32 %v4853, %v3747
  %v4886 = vadd.f32 %v4854, %v3750
  %v4887 = vadd.f32 %v4855, %v3753
  %v4888 = vadd.f32 %v4856, %v3756
  %v4889 = vadd.f32 %v4857, %v3759
  %v4890 = vadd.f32 %v4858, %v3762
  %v4891 = vadd.f32 %v4859, %v3765
  %v4892 = vadd.f32 %v4860, %v3768
  %v4893 = vadd.f32 %v4861, %v3771
  %v4894 = vadd.f32 %v4862, %v3774
  %v4895 = vadd.f32 %v4863, %v3777
  %v4896 = vsel %vm3872, %v4864, -inf
  %4897 = vmax.xlane.f32.xlu0 %v4896
  %v4898 = vpop.xlane.xlu0 %4897
  %v4899 = vsel %vm3872, %v4865, -inf
  %4900 = vmax.xlane.f32.xlu0 %v4899
  %v4901 = vpop.xlane.xlu0 %4900
  %v4902 = vsel %vm3872, %v4866, -inf
  %4903 = vmax.xlane.f32.xlu0 %v4902
  %v4904 = vpop.xlane.xlu0 %4903
  %v4905 = vsel %vm3872, %v4867, -inf
  %4906 = vmax.xlane.f32.xlu0 %v4905
  %v4907 = vpop.xlane.xlu0 %4906
  %v4908 = vsel %vm3872, %v4868, -inf
  %4909 = vmax.xlane.f32.xlu0 %v4908
  %v4910 = vpop.xlane.xlu0 %4909
  %v4911 = vsel %vm3872, %v4869, -inf
  %4912 = vmax.xlane.f32.xlu0 %v4911
  %v4913 = vpop.xlane.xlu0 %4912
  %v4914 = vsel %vm3872, %v4870, -inf
  %4915 = vmax.xlane.f32.xlu0 %v4914
  %v4916 = vpop.xlane.xlu0 %4915
  %v4917 = vsel %vm3872, %v4871, -inf
  %4918 = vmax.xlane.f32.xlu0 %v4917
  %v4919 = vpop.xlane.xlu0 %4918
  %v4920 = vsel %vm3872, %v4872, -inf
  %4921 = vmax.xlane.f32.xlu0 %v4920
  %v4922 = vpop.xlane.xlu0 %4921
  %v4923 = vsel %vm3872, %v4873, -inf
  %4924 = vmax.xlane.f32.xlu0 %v4923
  %v4925 = vpop.xlane.xlu0 %4924
  %v4926 = vsel %vm3872, %v4874, -inf
  %4927 = vmax.xlane.f32.xlu0 %v4926
  %v4928 = vpop.xlane.xlu0 %4927
  %v4929 = vsel %vm3872, %v4875, -inf
  %4930 = vmax.xlane.f32.xlu0 %v4929
  %v4931 = vpop.xlane.xlu0 %4930
  %v4932 = vsel %vm3872, %v4876, -inf
  %4933 = vmax.xlane.f32.xlu0 %v4932
  %v4934 = vpop.xlane.xlu0 %4933
  %v4935 = vsel %vm3872, %v4877, -inf
  %4936 = vmax.xlane.f32.xlu0 %v4935
  %v4937 = vpop.xlane.xlu0 %4936
  %v4938 = vsel %vm3872, %v4878, -inf
  %4939 = vmax.xlane.f32.xlu0 %v4938
  %v4940 = vpop.xlane.xlu0 %4939
  %v4941 = vsel %vm3872, %v4879, -inf
  %4942 = vmax.xlane.f32.xlu0 %v4941
  %v4943 = vpop.xlane.xlu0 %4942
  %v4944 = vsel %vm3872, %v4880, -inf
  %4945 = vmax.xlane.f32.xlu0 %v4944
  %v4946 = vpop.xlane.xlu0 %4945
  %v4947 = vsel %vm3872, %v4881, -inf
  %4948 = vmax.xlane.f32.xlu0 %v4947
  %v4949 = vpop.xlane.xlu0 %4948
  %v4950 = vsel %vm3872, %v4882, -inf
  %4951 = vmax.xlane.f32.xlu0 %v4950
  %v4952 = vpop.xlane.xlu0 %4951
  %v4953 = vsel %vm3872, %v4883, -inf
  %4954 = vmax.xlane.f32.xlu0 %v4953
  %v4955 = vpop.xlane.xlu0 %4954
  %v4956 = vsel %vm3872, %v4884, -inf
  %4957 = vmax.xlane.f32.xlu0 %v4956
  %v4958 = vpop.xlane.xlu0 %4957
  %v4959 = vsel %vm3872, %v4885, -inf
  %4960 = vmax.xlane.f32.xlu0 %v4959
  %v4961 = vpop.xlane.xlu0 %4960
  %v4962 = vsel %vm3872, %v4886, -inf
  %4963 = vmax.xlane.f32.xlu0 %v4962
  %v4964 = vpop.xlane.xlu0 %4963
  %v4965 = vsel %vm3872, %v4887, -inf
  %4966 = vmax.xlane.f32.xlu0 %v4965
  %v4967 = vpop.xlane.xlu0 %4966
  %v4968 = vsel %vm3872, %v4888, -inf
  %4969 = vmax.xlane.f32.xlu0 %v4968
  %v4970 = vpop.xlane.xlu0 %4969
  %v4971 = vsel %vm3872, %v4889, -inf
  %4972 = vmax.xlane.f32.xlu0 %v4971
  %v4973 = vpop.xlane.xlu0 %4972
  %v4974 = vsel %vm3872, %v4890, -inf
  %4975 = vmax.xlane.f32.xlu0 %v4974
  %v4976 = vpop.xlane.xlu0 %4975
  %v4977 = vsel %vm3872, %v4891, -inf
  %4978 = vmax.xlane.f32.xlu0 %v4977
  %v4979 = vpop.xlane.xlu0 %4978
  %v4980 = vsel %vm3872, %v4892, -inf
  %4981 = vmax.xlane.f32.xlu0 %v4980
  %v4982 = vpop.xlane.xlu0 %4981
  %v4983 = vsel %vm3872, %v4893, -inf
  %4984 = vmax.xlane.f32.xlu0 %v4983
  %v4985 = vpop.xlane.xlu0 %4984
  %v4986 = vsel %vm3872, %v4894, -inf
  %4987 = vmax.xlane.f32.xlu0 %v4986
  %v4988 = vpop.xlane.xlu0 %4987
  %v4989 = vsel %vm3872, %v4895, -inf
  %4990 = vmax.xlane.f32.xlu0 %v4989
  %v4991 = vpop.xlane.xlu0 %4990
  %v4992 = vsub.f32 %v4864, %v4898
  %v4993 = vsub.f32 %v4865, %v4901
  %v4994 = vsub.f32 %v4866, %v4904
  %v4995 = vsub.f32 %v4867, %v4907
  %v4996 = vsub.f32 %v4868, %v4910
  %v4997 = vsub.f32 %v4869, %v4913
  %v4998 = vsub.f32 %v4870, %v4916
  %v4999 = vsub.f32 %v4871, %v4919
  %v5000 = vsub.f32 %v4872, %v4922
  %v5001 = vsub.f32 %v4873, %v4925
  %v5002 = vsub.f32 %v4874, %v4928
  %v5003 = vsub.f32 %v4875, %v4931
  %v5004 = vsub.f32 %v4876, %v4934
  %v5005 = vsub.f32 %v4877, %v4937
  %v5006 = vsub.f32 %v4878, %v4940
  %v5007 = vsub.f32 %v4879, %v4943
  %v5008 = vsub.f32 %v4880, %v4946
  %v5009 = vsub.f32 %v4881, %v4949
  %v5010 = vsub.f32 %v4882, %v4952
  %v5011 = vsub.f32 %v4883, %v4955
  %v5012 = vsub.f32 %v4884, %v4958
  %v5013 = vsub.f32 %v4885, %v4961
  %v5014 = vsub.f32 %v4886, %v4964
  %v5015 = vsub.f32 %v4887, %v4967
  %v5016 = vsub.f32 %v4888, %v4970
  %v5017 = vsub.f32 %v4889, %v4973
  %v5018 = vsub.f32 %v4890, %v4976
  %v5019 = vsub.f32 %v4891, %v4979
  %v5020 = vsub.f32 %v4892, %v4982
  %v5021 = vsub.f32 %v4893, %v4985
  %v5022 = vsub.f32 %v4894, %v4988
  %v5023 = vsub.f32 %v4895, %v4991
  %v5024 = vmul.f32 %v4992, 1.442695
  %v5025 = vpow.pop %v5024
  %v5026 = vmul.f32 %v4993, 1.442695
  %v5027 = vpow.pop %v5026
  %v5028 = vmul.f32 %v4994, 1.442695
  %v5029 = vpow.pop %v5028
  %v5030 = vmul.f32 %v4995, 1.442695
  %v5031 = vpow.pop %v5030
  %v5032 = vmul.f32 %v4996, 1.442695
  %v5033 = vpow.pop %v5032
  %v5034 = vmul.f32 %v4997, 1.442695
  %v5035 = vpow.pop %v5034
  %v5036 = vmul.f32 %v4998, 1.442695
  %v5037 = vpow.pop %v5036
  %v5038 = vmul.f32 %v4999, 1.442695
  %v5039 = vpow.pop %v5038
  %v5040 = vmul.f32 %v5000, 1.442695
  %v5041 = vpow.pop %v5040
  %v5042 = vmul.f32 %v5001, 1.442695
  %v5043 = vpow.pop %v5042
  %v5044 = vmul.f32 %v5002, 1.442695
  %v5045 = vpow.pop %v5044
  %v5046 = vmul.f32 %v5003, 1.442695
  %v5047 = vpow.pop %v5046
  %v5048 = vmul.f32 %v5004, 1.442695
  %v5049 = vpow.pop %v5048
  %v5050 = vmul.f32 %v5005, 1.442695
  %v5051 = vpow.pop %v5050
  %v5052 = vmul.f32 %v5006, 1.442695
  %v5053 = vpow.pop %v5052
  %v5054 = vmul.f32 %v5007, 1.442695
  %v5055 = vpow.pop %v5054
  %v5056 = vmul.f32 %v5008, 1.442695
  %v5057 = vpow.pop %v5056
  %v5058 = vmul.f32 %v5009, 1.442695
  %v5059 = vpow.pop %v5058
  %v5060 = vmul.f32 %v5010, 1.442695
  %v5061 = vpow.pop %v5060
  %v5062 = vmul.f32 %v5011, 1.442695
  %v5063 = vpow.pop %v5062
  %v5064 = vmul.f32 %v5012, 1.442695
  %v5065 = vpow.pop %v5064
  %v5066 = vmul.f32 %v5013, 1.442695
  %v5067 = vpow.pop %v5066
  %v5068 = vmul.f32 %v5014, 1.442695
  %v5069 = vpow.pop %v5068
  %v5070 = vmul.f32 %v5015, 1.442695
  %v5071 = vpow.pop %v5070
  %v5072 = vmul.f32 %v5016, 1.442695
  %v5073 = vpow.pop %v5072
  %v5074 = vmul.f32 %v5017, 1.442695
  %v5075 = vpow.pop %v5074
  %v5076 = vmul.f32 %v5018, 1.442695
  %v5077 = vpow.pop %v5076
  %v5078 = vmul.f32 %v5019, 1.442695
  %v5079 = vpow.pop %v5078
  %v5080 = vmul.f32 %v5020, 1.442695
  %v5081 = vpow.pop %v5080
  %v5082 = vmul.f32 %v5021, 1.442695
  %v5083 = vpow.pop %v5082
  %v5084 = vmul.f32 %v5022, 1.442695
  %v5085 = vpow.pop %v5084
  %v5086 = vmul.f32 %v5023, 1.442695
  %v5087 = vpow.pop %v5086
  %v5088 = vsel %vm3872, %v5025, 0.0
  %5089 = vadd.xlane.f32.xlu0 %v5088
  %v5090 = vpop.xlane.xlu0 %5089
  %v5091 = vsel %vm3872, %v5027, 0.0
  %5092 = vadd.xlane.f32.xlu0 %v5091
  %v5093 = vpop.xlane.xlu0 %5092
  %v5094 = vsel %vm3872, %v5029, 0.0
  %5095 = vadd.xlane.f32.xlu0 %v5094
  %v5096 = vpop.xlane.xlu0 %5095
  %v5097 = vsel %vm3872, %v5031, 0.0
  %5098 = vadd.xlane.f32.xlu0 %v5097
  %v5099 = vpop.xlane.xlu0 %5098
  %v5100 = vsel %vm3872, %v5033, 0.0
  %5101 = vadd.xlane.f32.xlu0 %v5100
  %v5102 = vpop.xlane.xlu0 %5101
  %v5103 = vsel %vm3872, %v5035, 0.0
  %5104 = vadd.xlane.f32.xlu0 %v5103
  %v5105 = vpop.xlane.xlu0 %5104
  %v5106 = vsel %vm3872, %v5037, 0.0
  %5107 = vadd.xlane.f32.xlu0 %v5106
  %v5108 = vpop.xlane.xlu0 %5107
  %v5109 = vsel %vm3872, %v5039, 0.0
  %5110 = vadd.xlane.f32.xlu0 %v5109
  %v5111 = vpop.xlane.xlu0 %5110
  %v5112 = vsel %vm3872, %v5041, 0.0
  %5113 = vadd.xlane.f32.xlu0 %v5112
  %v5114 = vpop.xlane.xlu0 %5113
  %v5115 = vsel %vm3872, %v5043, 0.0
  %5116 = vadd.xlane.f32.xlu0 %v5115
  %v5117 = vpop.xlane.xlu0 %5116
  %v5118 = vsel %vm3872, %v5045, 0.0
  %5119 = vadd.xlane.f32.xlu0 %v5118
  %v5120 = vpop.xlane.xlu0 %5119
  %v5121 = vsel %vm3872, %v5047, 0.0
  %5122 = vadd.xlane.f32.xlu0 %v5121
  %v5123 = vpop.xlane.xlu0 %5122
  %v5124 = vsel %vm3872, %v5049, 0.0
  %5125 = vadd.xlane.f32.xlu0 %v5124
  %v5126 = vpop.xlane.xlu0 %5125
  %v5127 = vsel %vm3872, %v5051, 0.0
  %5128 = vadd.xlane.f32.xlu0 %v5127
  %v5129 = vpop.xlane.xlu0 %5128
  %v5130 = vsel %vm3872, %v5053, 0.0
  %5131 = vadd.xlane.f32.xlu0 %v5130
  %v5132 = vpop.xlane.xlu0 %5131
  %v5133 = vsel %vm3872, %v5055, 0.0
  %5134 = vadd.xlane.f32.xlu0 %v5133
  %v5135 = vpop.xlane.xlu0 %5134
  %v5136 = vsel %vm3872, %v5057, 0.0
  %5137 = vadd.xlane.f32.xlu0 %v5136
  %v5138 = vpop.xlane.xlu0 %5137
  %v5139 = vsel %vm3872, %v5059, 0.0
  %5140 = vadd.xlane.f32.xlu0 %v5139
  %v5141 = vpop.xlane.xlu0 %5140
  %v5142 = vsel %vm3872, %v5061, 0.0
  %5143 = vadd.xlane.f32.xlu0 %v5142
  %v5144 = vpop.xlane.xlu0 %5143
  %v5145 = vsel %vm3872, %v5063, 0.0
  %5146 = vadd.xlane.f32.xlu0 %v5145
  %v5147 = vpop.xlane.xlu0 %5146
  %v5148 = vsel %vm3872, %v5065, 0.0
  %5149 = vadd.xlane.f32.xlu0 %v5148
  %v5150 = vpop.xlane.xlu0 %5149
  %v5151 = vsel %vm3872, %v5067, 0.0
  %5152 = vadd.xlane.f32.xlu0 %v5151
  %v5153 = vpop.xlane.xlu0 %5152
  %v5154 = vsel %vm3872, %v5069, 0.0
  %5155 = vadd.xlane.f32.xlu0 %v5154
  %v5156 = vpop.xlane.xlu0 %5155
  %v5157 = vsel %vm3872, %v5071, 0.0
  %5158 = vadd.xlane.f32.xlu0 %v5157
  %v5159 = vpop.xlane.xlu0 %5158
  %v5160 = vsel %vm3872, %v5073, 0.0
  %5161 = vadd.xlane.f32.xlu0 %v5160
  %v5162 = vpop.xlane.xlu0 %5161
  %v5163 = vsel %vm3872, %v5075, 0.0
  %5164 = vadd.xlane.f32.xlu0 %v5163
  %v5165 = vpop.xlane.xlu0 %5164
  %v5166 = vsel %vm3872, %v5077, 0.0
  %5167 = vadd.xlane.f32.xlu0 %v5166
  %v5168 = vpop.xlane.xlu0 %5167
  %v5169 = vsel %vm3872, %v5079, 0.0
  %5170 = vadd.xlane.f32.xlu0 %v5169
  %v5171 = vpop.xlane.xlu0 %5170
  %v5172 = vsel %vm3872, %v5081, 0.0
  %5173 = vadd.xlane.f32.xlu0 %v5172
  %v5174 = vpop.xlane.xlu0 %5173
  %v5175 = vsel %vm3872, %v5083, 0.0
  %5176 = vadd.xlane.f32.xlu0 %v5175
  %v5177 = vpop.xlane.xlu0 %5176
  %v5178 = vsel %vm3872, %v5085, 0.0
  %5179 = vadd.xlane.f32.xlu0 %v5178
  %v5180 = vpop.xlane.xlu0 %5179
  %v5181 = vsel %vm3872, %v5087, 0.0
  %5182 = vadd.xlane.f32.xlu0 %v5181
  %v5183 = vpop.xlane.xlu0 %5182
  %v5184 = vlog2.pop %v5090
  %v5185 = vmul.f32 %v5184, 0.6931472
  %v5186 = vlog2.pop %v5093
  %v5187 = vmul.f32 %v5186, 0.6931472
  %v5188 = vlog2.pop %v5096
  %v5189 = vmul.f32 %v5188, 0.6931472
  %v5190 = vlog2.pop %v5099
  %v5191 = vmul.f32 %v5190, 0.6931472
  %v5192 = vlog2.pop %v5102
  %v5193 = vmul.f32 %v5192, 0.6931472
  %v5194 = vlog2.pop %v5105
  %v5195 = vmul.f32 %v5194, 0.6931472
  %v5196 = vlog2.pop %v5108
  %v5197 = vmul.f32 %v5196, 0.6931472
  %v5198 = vlog2.pop %v5111
  %v5199 = vmul.f32 %v5198, 0.6931472
  %v5200 = vlog2.pop %v5114
  %v5201 = vmul.f32 %v5200, 0.6931472
  %v5202 = vlog2.pop %v5117
  %v5203 = vmul.f32 %v5202, 0.6931472
  %v5204 = vlog2.pop %v5120
  %v5205 = vmul.f32 %v5204, 0.6931472
  %v5206 = vlog2.pop %v5123
  %v5207 = vmul.f32 %v5206, 0.6931472
  %v5208 = vlog2.pop %v5126
  %v5209 = vmul.f32 %v5208, 0.6931472
  %v5210 = vlog2.pop %v5129
  %v5211 = vmul.f32 %v5210, 0.6931472
  %v5212 = vlog2.pop %v5132
  %v5213 = vmul.f32 %v5212, 0.6931472
  %v5214 = vlog2.pop %v5135
  %v5215 = vmul.f32 %v5214, 0.6931472
  %v5216 = vlog2.pop %v5138
  %v5217 = vmul.f32 %v5216, 0.6931472
  %v5218 = vlog2.pop %v5141
  %v5219 = vmul.f32 %v5218, 0.6931472
  %v5220 = vlog2.pop %v5144
  %v5221 = vmul.f32 %v5220, 0.6931472
  %v5222 = vlog2.pop %v5147
  %v5223 = vmul.f32 %v5222, 0.6931472
  %v5224 = vlog2.pop %v5150
  %v5225 = vmul.f32 %v5224, 0.6931472
  %v5226 = vlog2.pop %v5153
  %v5227 = vmul.f32 %v5226, 0.6931472
  %v5228 = vlog2.pop %v5156
  %v5229 = vmul.f32 %v5228, 0.6931472
  %v5230 = vlog2.pop %v5159
  %v5231 = vmul.f32 %v5230, 0.6931472
  %v5232 = vlog2.pop %v5162
  %v5233 = vmul.f32 %v5232, 0.6931472
  %v5234 = vlog2.pop %v5165
  %v5235 = vmul.f32 %v5234, 0.6931472
  %v5236 = vlog2.pop %v5168
  %v5237 = vmul.f32 %v5236, 0.6931472
  %v5238 = vlog2.pop %v5171
  %v5239 = vmul.f32 %v5238, 0.6931472
  %v5240 = vlog2.pop %v5174
  %v5241 = vmul.f32 %v5240, 0.6931472
  %v5242 = vlog2.pop %v5177
  %v5243 = vmul.f32 %v5242, 0.6931472
  %v5244 = vlog2.pop %v5180
  %v5245 = vmul.f32 %v5244, 0.6931472
  %v5246 = vlog2.pop %v5183
  %v5247 = vmul.f32 %v5246, 0.6931472
  %v5248 = vsub.f32 %v4992, %v5185
  %v5249 = vsub.f32 %v4993, %v5187
  %v5250 = vsub.f32 %v4994, %v5189
  %v5251 = vsub.f32 %v4995, %v5191
  %v5252 = vsub.f32 %v4996, %v5193
  %v5253 = vsub.f32 %v4997, %v5195
  %v5254 = vsub.f32 %v4998, %v5197
  %v5255 = vsub.f32 %v4999, %v5199
  %v5256 = vsub.f32 %v5000, %v5201
  %v5257 = vsub.f32 %v5001, %v5203
  %v5258 = vsub.f32 %v5002, %v5205
  %v5259 = vsub.f32 %v5003, %v5207
  %v5260 = vsub.f32 %v5004, %v5209
  %v5261 = vsub.f32 %v5005, %v5211
  %v5262 = vsub.f32 %v5006, %v5213
  %v5263 = vsub.f32 %v5007, %v5215
  %v5264 = vsub.f32 %v5008, %v5217
  %v5265 = vsub.f32 %v5009, %v5219
  %v5266 = vsub.f32 %v5010, %v5221
  %v5267 = vsub.f32 %v5011, %v5223
  %v5268 = vsub.f32 %v5012, %v5225
  %v5269 = vsub.f32 %v5013, %v5227
  %v5270 = vsub.f32 %v5014, %v5229
  %v5271 = vsub.f32 %v5015, %v5231
  %v5272 = vsub.f32 %v5016, %v5233
  %v5273 = vsub.f32 %v5017, %v5235
  %v5274 = vsub.f32 %v5018, %v5237
  %v5275 = vsub.f32 %v5019, %v5239
  %v5276 = vsub.f32 %v5020, %v5241
  %v5277 = vsub.f32 %v5021, %v5243
  %v5278 = vsub.f32 %v5022, %v5245
  %v5279 = vsub.f32 %v5023, %v5247
  %5280 = vst.msk [vmem:[%s9] sm:$0xff] %vm3872, %v5248
  %5281 = vst.msk [vmem:[%s9 + $0x8] sm:$0xff] %vm3872, %v5249
  %5282 = vst.msk [vmem:[%s9 + $0x10] sm:$0xff] %vm3872, %v5250
  %5283 = vst.msk [vmem:[%s9 + $0x18] sm:$0xff] %vm3872, %v5251
  %5284 = vst.msk [vmem:[%s9 + $0x20] sm:$0xff] %vm3872, %v5252
  %5285 = vst.msk [vmem:[%s9 + $0x28] sm:$0xff] %vm3872, %v5253
  %5286 = vst.msk [vmem:[%s9 + $0x30] sm:$0xff] %vm3872, %v5254
  %5287 = vst.msk [vmem:[%s9 + $0x38] sm:$0xff] %vm3872, %v5255
  %5288 = vst.msk [vmem:[%s9 + $0x40] sm:$0xff] %vm3872, %v5256
  %5289 = vst.msk [vmem:[%s9 + $0x48] sm:$0xff] %vm3872, %v5257
  %5290 = vst.msk [vmem:[%s9 + $0x50] sm:$0xff] %vm3872, %v5258
  %5291 = vst.msk [vmem:[%s9 + $0x58] sm:$0xff] %vm3872, %v5259
  %5292 = vst.msk [vmem:[%s9 + $0x60] sm:$0xff] %vm3872, %v5260
  %5293 = vst.msk [vmem:[%s9 + $0x68] sm:$0xff] %vm3872, %v5261
  %5294 = vst.msk [vmem:[%s9 + $0x70] sm:$0xff] %vm3872, %v5262
  %5295 = vst.msk [vmem:[%s9 + $0x78] sm:$0xff] %vm3872, %v5263
  %5296 = vst.msk [vmem:[%s9 + $0x80] sm:$0xff] %vm3872, %v5264
  %5297 = vst.msk [vmem:[%s9 + $0x88] sm:$0xff] %vm3872, %v5265
  %5298 = vst.msk [vmem:[%s9 + $0x90] sm:$0xff] %vm3872, %v5266
  %5299 = vst.msk [vmem:[%s9 + $0x98] sm:$0xff] %vm3872, %v5267
  %5300 = vst.msk [vmem:[%s9 + $0xa0] sm:$0xff] %vm3872, %v5268
  %5301 = vst.msk [vmem:[%s9 + $0xa8] sm:$0xff] %vm3872, %v5269
  %5302 = vst.msk [vmem:[%s9 + $0xb0] sm:$0xff] %vm3872, %v5270
  %5303 = vst.msk [vmem:[%s9 + $0xb8] sm:$0xff] %vm3872, %v5271
  %5304 = vst.msk [vmem:[%s9 + $0xc0] sm:$0xff] %vm3872, %v5272
  %5305 = vst.msk [vmem:[%s9 + $0xc8] sm:$0xff] %vm3872, %v5273
  %5306 = vst.msk [vmem:[%s9 + $0xd0] sm:$0xff] %vm3872, %v5274
  %5307 = vst.msk [vmem:[%s9 + $0xd8] sm:$0xff] %vm3872, %v5275
  %5308 = vst.msk [vmem:[%s9 + $0xe0] sm:$0xff] %vm3872, %v5276
  %5309 = vst.msk [vmem:[%s9 + $0xe8] sm:$0xff] %vm3872, %v5277
  %5310 = vst.msk [vmem:[%s9 + $0xf0] sm:$0xff] %vm3872, %v5278
  %5311 = vst.msk [vmem:[%s9 + $0xf8] sm:$0xff] %vm3872, %v5279
  // Predicated region
  $region38: #{tpu_custom_call.1} parent=0 // pred_check
    _
  $region39: #{tpu_custom_call.1} parent=0 // pred_check_branch
    %5313 = sbr.rel (0) target = $region41
  $region40: #{tpu_custom_call.1} parent=0 // pred_region
    _
  $region41: #{tpu_custom_call.1} parent=0 // pred_fallthru
    _
  // Predicated region
  $region42: #{tpu_custom_call.1} parent=0 // pred_check
    _
  $region43: #{tpu_custom_call.1} parent=0 // pred_check_branch
    %5315 = sbr.rel (0) target = $region45
  $region44: #{tpu_custom_call.1} parent=0 // pred_region
    _
  $region45: #{tpu_custom_call.1} parent=0 // pred_fallthru
    _

</llo_original>
